<compile_context>
chip_gen: v6e
topology: v6e:2x2x1
jax: 0.10.0
libtpu: 0.0.40
codegen_flags: <defaults>
</compile_context>

<pallas_src>
import numpy as np
import jax
import jax.numpy as jnp
from jax.experimental import pallas as pl
from jax.experimental.pallas import tpu as pltpu


# ----------------------------------------------------------------------------
# Pallas kernel: accumulates  sum_d sum_k -domain_prob[d,k] * dist2[d,k]
# over doc tiles (outer grid axis) and vocab chunks (inner grid axis).
# ----------------------------------------------------------------------------
def _vi_g1_kernel(pt_ref, sp_ref, pdt_ref, eld_ref, out_ref, unorm_ref, acc_ref):
    di = pl.program_id(0)                    # doc tile
    vi = pl.program_id(1)                    # vocab chunk
    last_d = pl.num_programs(0) - 1
    last_v = pl.num_programs(1) - 1

    tile_d = pt_ref.shape[0]
    n_topics = pt_ref.shape[2]
    n_dom = pdt_ref.shape[1]
    n_bins = eld_ref.shape[0]
    pad = (n_bins - n_topics % n_bins) % n_bins
    grp = (n_topics + pad) // n_bins         # topics per bin (contiguous groups)
    eps = 1e-20

    @pl.when(jnp.logical_and(di == 0, vi == 0))
    def _():
        acc_ref[0] = jnp.float32(0.0)

    @pl.when(vi == 0)
    def _():
        unorm_ref[...] = jnp.zeros_like(unorm_ref)

    # ---- topic softmax over the lane axis (T), fused with the sp weight -----
    pt = pt_ref[...].astype(jnp.float32)                       # (td, vt, T)
    e = jnp.exp(pt - jnp.max(pt, axis=-1, keepdims=True))
    den = jnp.sum(e, axis=-1, keepdims=True)                   # (td, vt, 1)
    w = sp_ref[...].astype(jnp.float32)[:, :, None] * pl.reciprocal(den, approx=True)
    unorm_ref[...] = unorm_ref[...] + jnp.sum(e * w, axis=1)   # (td, T), sum over vocab chunk

    # ---- last vocab chunk: decon binning + Gaussian term for this doc tile --
    @pl.when(vi == last_v)
    def _():
        unorm = unorm_ref[...]                                  # (td, T)
        ct = unorm / (jnp.sum(unorm, axis=-1, keepdims=True) + eps)

        pdt = pdt_ref[...]                                      # (td, K)
        pdt_shift = pdt - jnp.max(pdt, axis=-1, keepdims=True)
        pdt_exp = jnp.exp(pdt_shift)
        dp = pdt_exp / jnp.sum(pdt_exp, axis=-1, keepdims=True)

        eld = eld_ref[...]                                      # (B, K) = exp_log_dtot^T
        dist2 = jnp.zeros((tile_d, n_dom), jnp.float32)
        for b in range(n_bins):                                 # static, tiny B
            lo = b * grp
            hi = min((b + 1) * grp, n_topics)
            if lo < n_topics:
                col = jnp.sum(ct[:, lo:hi], axis=-1, keepdims=True)   # (td, 1)
            else:                                               # bin of pure zero padding
                col = jnp.zeros((tile_d, 1), jnp.float32)
            diff = col - eld[b:b + 1, :]                        # (td, K)
            dist2 = dist2 + diff * diff
        acc_ref[0] = acc_ref[0] + jnp.sum(-dp * dist2)

    @pl.when(jnp.logical_and(di == last_d, vi == last_v))
    def _():
        out_ref[0, 0] = acc_ref[0]


# ----------------------------------------------------------------------------
# VMEM-aware tile selection
# ----------------------------------------------------------------------------
def _round_up(x, m):
    return -(-x // m) * m


def _block_footprint(td, vt, T, K, B, in_itemsize):
    """Rough padded-VMEM footprint of one grid step (bytes)."""
    Tl = _round_up(T, 128)
    sub = 16 if in_itemsize < 4 else 8
    pt_blk = td * _round_up(vt, sub) * Tl * in_itemsize
    sp_blk = _round_up(td, sub) * _round_up(vt, 128) * in_itemsize
    pdt_blk = _round_up(td, 8) * _round_up(K, 128) * 4
    eld_blk = _round_up(B, 8) * _round_up(K, 128) * 4
    inputs = 2 * (pt_blk + sp_blk + pdt_blk + eld_blk)          # double-buffered
    temps = 3 * td * _round_up(vt, 8) * Tl * 4                  # f32 softmax intermediates
    scratch = _round_up(td, 8) * Tl * 4                         # unorm accumulator
    return inputs + temps + scratch


def _select_tiles(D, V, T, K, B, in_itemsize, budget):
    td_cands = [d for d in range(8, min(D, 512) + 1, 8) if D % d == 0] or [D]
    vt_exact = [v for v in range(128, V + 1, 128) if V % v == 0]
    vt_exact.append(V)                                           # full-V block always legal
    vt_exact = sorted(set(vt_exact), reverse=True)

    fp = lambda td, vt: _block_footprint(td, vt, T, K, B, in_itemsize)

    # 1) exact (no-padding) vocab chunks, biggest first, then biggest doc tile.
    for vt in vt_exact:
        for td in sorted(td_cands, reverse=True):
            if fp(td, vt) <= budget:
                return td, vt
    # 2) generic multiple-of-128 chunk (wrapper pads the vocab axis with zeros).
    if V > 128:
        td = min(td_cands)
        vt = 128
        for cand in range(_round_up(V, 128), 127, -128):
            if fp(td, cand) <= budget:
                vt = cand
                break
        for cand in sorted(td_cands, reverse=True):
            if fp(cand, vt) <= budget:
                td = cand
                break
        return td, vt
    # 3) nothing fits cleanly; smallest blocks, let the compiler cope.
    return min(td_cands), min(vt_exact)


# ----------------------------------------------------------------------------
# Wrapper: Pallas g1 + XLA epilogue (entropy / f2 / f3), combined loss.
# ----------------------------------------------------------------------------
def vi_domain_forward(post_domain, post_topic, sp_count, exp_log_dtot,
                      prior_pi, kernel_list, partition, *,
                      tile_d=None, v_tile=None, input_dtype=jnp.bfloat16):
    D, V, T = post_topic.shape
    K = post_domain.shape[1]
    B = exp_log_dtot.shape[1]
    in_itemsize = jnp.dtype(input_dtype).itemsize

    # ---- generation-aware VMEM budget ----------------------------------------
    try:
        vmem_cap = int(pltpu.get_tpu_info().vmem_capacity_bytes)
    except Exception:
        vmem_cap = 64 << 20               # conservative default, fits every TPU gen
    budget = int(vmem_cap * 0.75)         # ~48 MiB on v7x, ~96 MiB on v5e/v6e

    auto_td, auto_vt = _select_tiles(D, V, T, K, B, in_itemsize, budget)
    if tile_d is None or not (tile_d == D or (tile_d % 8 == 0 and D % tile_d == 0)):
        tile_d = auto_td
    if v_tile is None or not (v_tile == V or v_tile % 128 == 0):
        v_tile = auto_vt

    # ---- dtype / layout prep (no transpose of the dominant tensor) -----------
    pt = post_topic if post_topic.dtype == input_dtype else post_topic.astype(input_dtype)
    sp = sp_count if sp_count.dtype == input_dtype else sp_count.astype(input_dtype)
    v_pad = (-V) % v_tile
    if v_pad:
        # Zero-padded vocab tail contributes exactly 0 to unorm (sp == 0 there).
        # TODO(synk): mask the tail chunk in-kernel to avoid this extra pad copy.
        pt = jnp.pad(pt, ((0, 0), (0, v_pad), (0, 0)))
        sp = jnp.pad(sp, ((0, 0), (0, v_pad)))
    Vp = V + v_pad

    pd = post_domain.astype(jnp.float32)
    eld_t = exp_log_dtot.astype(jnp.float32).T               # (B, K)

    n_doc_tiles = D // tile_d
    n_v_tiles = Vp // v_tile

    fp_est = _block_footprint(tile_d, v_tile, T, K, B, in_itemsize)
    vmem_limit = int(min(budget, max(fp_est + (8 << 20), 32 << 20)))

    in_specs = [
        pl.BlockSpec((tile_d, v_tile, T), lambda i, j: (i, j, 0)),   # post_topic tile
        pl.BlockSpec((tile_d, v_tile),    lambda i, j: (i, j)),      # sp_count tile (2-D)
        pl.BlockSpec((tile_d, K),         lambda i, j: (i, 0)),      # post_domain tile
        pl.BlockSpec((B, K),              lambda i, j: (0, 0)),      # exp_log_dtot^T (resident)
    ]

    g1_sum = pl.pallas_call(
        _vi_g1_kernel,
        out_shape=jax.ShapeDtypeStruct((1, 1), jnp.float32),
        grid_spec=pltpu.PrefetchScalarGridSpec(
            num_scalar_prefetch=0,
            grid=(n_doc_tiles, n_v_tiles),
            in_specs=in_specs,
            out_specs=pl.BlockSpec(memory_space=pltpu.MemorySpace.SMEM),
            scratch_shapes=[pltpu.VMEM((tile_d, T), jnp.float32),    # unorm carry
                            pltpu.SMEM((1,), jnp.float32)]),         # g1 accumulator
        # TODO(synk): megacore (v7x) split of the doc axis would need per-core
        # partial g1 outputs combined by a follow-up reduction; kept sequential.
        compiler_params=pltpu.CompilerParams(
            dimension_semantics=("arbitrary", "arbitrary"),
            vmem_limit_bytes=vmem_limit),
    )(pt, sp, pd, eld_t)

    g1 = g1_sum[0, 0] / D

    # ---- tiny (D,K)-scale epilogue in plain XLA (moved out of the hot kernel) -
    dp = jax.nn.softmax(pd, axis=-1)
    entropy = jnp.mean(jnp.sum(-dp * jax.nn.log_softmax(pd, axis=-1), axis=-1))
    pi = prior_pi.astype(jnp.float32)
    f2_sum = jnp.float32(0.0)
    f3_sum = jnp.float32(0.0)
    for i, (lo, hi) in enumerate(partition):
        kern = kernel_list[i].astype(jnp.float32)
        bp = jax.nn.softmax(kern, axis=1) @ pi[lo:hi, :]
        f2_sum = f2_sum + jnp.sum(dp[lo:hi, :] * jnp.log(bp + 1e-20))
        adj = (kern > 0).astype(jnp.float32)
        dpc = dp[lo:hi, :]
        # trace(C^T L C) without materialising L (and without the adj @ (C*C) matmul)
        f3_sum = f3_sum + (jnp.dot(adj.sum(axis=0), jnp.sum(dpc * dpc, axis=-1))
                           - jnp.sum(dpc * (adj @ dpc)))
    f2 = f2_sum / D
    f3 = f3_sum / D

    return 0.2 * f3 - 2000.0 * g1 - 0.2 * (f2 + entropy)


# ----------------------------------------------------------------------------
# Pure-JAX literal reference (mirrors the PyTorch forward) for checking.
# ----------------------------------------------------------------------------
def vi_domain_reference(post_domain, post_topic, sp_count, exp_log_dtot,
                        prior_pi, kernel_list, partition):
    D, V, T = post_topic.shape
    B = exp_log_dtot.shape[1]

    domain_prob = jax.nn.softmax(post_domain, axis=-1)
    entropy = (-domain_prob * jax.nn.log_softmax(post_domain, axis=-1)).sum(-1)

    # decon
    unorm = (jax.nn.softmax(post_topic, axis=-1) * sp_count[:, :, None]).sum(1)
    ct = unorm / (unorm.sum(-1, keepdims=True) + 1e-20)
    pad = (B - T % B) % B
    ct_p = jnp.pad(ct, ((0, 0), (0, pad)))
    exp_tmp1 = ct_p.reshape(D, B, (T + pad) // B).sum(2)

    g1 = (-domain_prob *
          ((exp_tmp1[:, None, :] - exp_log_dtot[None]) ** 2).sum(-1)).sum(1).mean()

    # f2 (batch_product)
    bp = []
    for i, (lo, hi) in enumerate(partition):
        bp.append(jax.nn.softmax(kernel_list[i], axis=1) @ prior_pi[lo:hi, :])
    bp = jnp.concatenate(bp, axis=0)
    f2 = (domain_prob * jnp.log(bp + 1e-20)).sum(1).mean()

    # f3
    loss3 = 0.0
    for i, (lo, hi) in enumerate(partition):
        c = domain_prob[lo:hi, :]
        adj = (kernel_list[i] > 0).astype(jnp.float32)
        lap = jnp.diag(adj.sum(0)) - adj
        loss3 = loss3 + jnp.trace(c.T @ lap @ c)
    f3 = loss3 / D

    return 0.2 * f3 - 2000.0 * g1 - 0.2 * (f2 + entropy.mean())


if __name__ == "__main__":
    def make_case(key, D, V, T, K, B, partition):
        ks = jax.random.split(key, 2 + len(partition) + 3)
        sp_count = jax.random.uniform(ks[0], (D, V), minval=0.0, maxval=5.0)
        post_topic = jax.random.normal(ks[1], (D, V, T))
        post_domain = jax.random.normal(ks[2], (D, K))
        exp_log_dtot = jax.random.normal(ks[3], (K, B))
        prior_pi = jax.random.uniform(ks[4], (D, K), minval=0.1, maxval=1.0)
        kernel_list = [jax.random.uniform(ks[5 + i], (hi - lo, hi - lo),
                                          minval=-1.0, maxval=1.0)
                       for i, (lo, hi) in enumerate(partition)]
        return sp_count, post_topic, post_domain, exp_log_dtot, prior_pi, kernel_list

    key = jax.random.PRNGKey(0)
    k1, k2 = jax.random.split(key)

    # Case 1: 2 doc tiles x 2 vocab chunks; topic-bin padding path (T % B != 0).
    # Case 2: tile_d=D fallback (D not a multiple of 8), vocab padded to the chunk.
    cases = [
        dict(key=k1, D=16, V=256, T=12, K=4, B=5,
             partition=[(0, 8), (8, 16)], tile_d=8, v_tile=128),
        dict(key=k2, D=12, V=200, T=7, K=3, B=2,
             partition=[(0, 5), (5, 12)], tile_d=None, v_tile=128),
    ]

    for c in cases:
        sp_count, post_topic, post_domain, exp_log_dtot, prior_pi, kernel_list = \
            make_case(c["key"], c["D"], c["V"], c["T"], c["K"], c["B"], c["partition"])

        # Kernel stores the two big tensors in bf16; feed the reference the same
        # quantised values so the check isolates kernel error from quantisation.
        pt_q = post_topic.astype(jnp.bfloat16)
        sp_q = sp_count.astype(jnp.bfloat16)

        loss = vi_domain_forward(post_domain, pt_q, sp_q, exp_log_dtot, prior_pi,
                                 kernel_list, c["partition"],
                                 tile_d=c["tile_d"], v_tile=c["v_tile"])
        loss = jax.block_until_ready(loss)

        ref = vi_domain_reference(post_domain, pt_q.astype(jnp.float32),
                                  sp_q.astype(jnp.float32), exp_log_dtot, prior_pi,
                                  kernel_list, c["partition"])
        np.testing.assert_allclose(np.asarray(loss), np.asarray(ref),
                                   rtol=5e-3, atol=1e-3)

    print("KERNEL_OK")
</pallas_src>

<mosaic_0001>
module attributes {stable_mosaic.version = 11 : i64} {
  func.func @_vi_g1_kernel(%arg0: i32, %arg1: i32, %arg2: memref<8x128x12xbf16, #tpu.memory_space<vmem>>, %arg3: memref<8x128xbf16, #tpu.memory_space<vmem>>, %arg4: memref<8x4xf32, #tpu.memory_space<vmem>>, %arg5: memref<5x4xf32, #tpu.memory_space<vmem>>, %arg6: memref<1x1xf32, #tpu.memory_space<smem>>, %arg7: memref<8x12xf32, #tpu.memory_space<vmem>>, %arg8: memref<1xf32, #tpu.memory_space<smem>>) attributes {dimension_semantics = [#tpu.dimension_semantics<arbitrary>, #tpu.dimension_semantics<arbitrary>], iteration_bounds = array<i64: 2, 2>, scalar_prefetch = 0 : i64, scratch_operands = 2 : i64, tpu.core_type = #tpu.core_type<tc>, window_params = [{transform_indices = @transform_0, window_bounds = array<i64: 8, 128, 12>}, {transform_indices = @transform_1, window_bounds = array<i64: 8, 128>}, {transform_indices = @transform_2, window_bounds = array<i64: 8, 4>}, {pipeline_mode = #tpu.pipeline_mode<synchronous>, transform_indices = @transform_3, window_bounds = array<i64: 5, 4>}, {transform_indices = @transform_4, window_bounds = array<i64: 1, 1>}]} {
    %c0_i32 = arith.constant 0 : i32
    %0 = arith.cmpi eq, %arg0, %c0_i32 : i32
    %c0_i32_0 = arith.constant 0 : i32
    %1 = arith.cmpi eq, %arg1, %c0_i32_0 : i32
    %2 = arith.andi %0, %1 : i1
    %3 = arith.extui %2 : i1 to i32
    %c0_i32_1 = arith.constant 0 : i32
    %4 = arith.cmpi ne, %3, %c0_i32_1 : i32
    scf.if %4 {
      %cst_18 = arith.constant 0.000000e+00 : f32
      %c0_19 = arith.constant 0 : index
      %36 = memref.load %arg8[%c0_19] : memref<1xf32, #tpu.memory_space<smem>>
      memref.store %cst_18, %arg8[%c0_19] : memref<1xf32, #tpu.memory_space<smem>>
    } else {
    }
    %c0_i32_2 = arith.constant 0 : i32
    %5 = arith.cmpi eq, %arg1, %c0_i32_2 : i32
    %6 = arith.extui %5 : i1 to i32
    %c0_i32_3 = arith.constant 0 : i32
    %7 = arith.cmpi ne, %6, %c0_i32_3 : i32
    scf.if %7 {
      %cst_18 = arith.constant 0.000000e+00 : f32
      %36 = vector.broadcast %cst_18 : f32 to vector<8x12xf32>
      %c0_19 = arith.constant 0 : index
      %c0_20 = arith.constant 0 : index
      %37 = vector.load %arg7[%c0_19, %c0_20] : memref<8x12xf32, #tpu.memory_space<vmem>>, vector<8x12xf32>
      tpu.vector_store %arg7[%c0_19, %c0_20], %36 {strides = array<i32>} : memref<8x12xf32, #tpu.memory_space<vmem>>, vector<8x12xf32>,
    } else {
    }
    %c0 = arith.constant 0 : index
    %c0_4 = arith.constant 0 : index
    %c0_5 = arith.constant 0 : index
    %8 = vector.load %arg2[%c0, %c0_4, %c0_5] : memref<8x128x12xbf16, #tpu.memory_space<vmem>>, vector<8x128x12xbf16>
    %9 = arith.extf %8 : vector<8x128x12xbf16> to vector<8x128x12xf32>
    %cst = arith.constant dense<0xFF800000> : vector<8x128xf32>
    %10 = vector.multi_reduction <maximumf>, %9, %cst [2] : vector<8x128x12xf32> to vector<8x128xf32>
    %11 = vector.shape_cast %10 : vector<8x128xf32> to vector<8x128x1xf32>
    %12 = vector.broadcast %11 : vector<8x128x1xf32> to vector<8x128x12xf32>
    %13 = arith.subf %9, %12 : vector<8x128x12xf32>
    %14 = math.exp %13 : vector<8x128x12xf32>
    %cst_6 = arith.constant dense<0.000000e+00> : vector<8x128xf32>
    %15 = vector.multi_reduction <add>, %14, %cst_6 [2] : vector<8x128x12xf32> to vector<8x128xf32>
    %16 = vector.shape_cast %15 : vector<8x128xf32> to vector<8x128x1xf32>
    %c0_7 = arith.constant 0 : index
    %c0_8 = arith.constant 0 : index
    %17 = vector.load %arg3[%c0_7, %c0_8] : memref<8x128xbf16, #tpu.memory_space<vmem>>, vector<8x128xbf16>
    %18 = arith.extf %17 : vector<8x128xbf16> to vector<8x128xf32>
    %19 = vector.shape_cast %18 : vector<8x128xf32> to vector<8x128x1xf32>
    %20 = tpu.reciprocal %16 {approx = true} : vector<8x128x1xf32> -> vector<8x128x1xf32>
    %21 = arith.mulf %19, %20 : vector<8x128x1xf32>
    %c0_9 = arith.constant 0 : index
    %c0_10 = arith.constant 0 : index
    %22 = vector.load %arg7[%c0_9, %c0_10] : memref<8x12xf32, #tpu.memory_space<vmem>>, vector<8x12xf32>
    %23 = vector.broadcast %21 : vector<8x128x1xf32> to vector<8x128x12xf32>
    %24 = arith.mulf %14, %23 : vector<8x128x12xf32>
    %cst_11 = arith.constant dense<0.000000e+00> : vector<8x12xf32>
    %25 = vector.multi_reduction <add>, %24, %cst_11 [1] : vector<8x128x12xf32> to vector<8x12xf32>
    %26 = arith.addf %22, %25 : vector<8x12xf32>
    %c0_12 = arith.constant 0 : index
    %c0_13 = arith.constant 0 : index
    %27 = vector.load %arg7[%c0_12, %c0_13] : memref<8x12xf32, #tpu.memory_space<vmem>>, vector<8x12xf32>
    tpu.vector_store %arg7[%c0_12, %c0_13], %26 {strides = array<i32>} : memref<8x12xf32, #tpu.memory_space<vmem>>, vector<8x12xf32>,
    %c1_i32 = arith.constant 1 : i32
    %28 = arith.cmpi eq, %arg1, %c1_i32 : i32
    %29 = arith.extui %28 : i1 to i32
    %c0_i32_14 = arith.constant 0 : i32
    %30 = arith.cmpi ne, %29, %c0_i32_14 : i32
    scf.if %30 {
      %c0_18 = arith.constant 0 : index
      %c0_19 = arith.constant 0 : index
      %36 = vector.load %arg7[%c0_18, %c0_19] : memref<8x12xf32, #tpu.memory_space<vmem>>, vector<8x12xf32>
      %cst_20 = arith.constant dense<0.000000e+00> : vector<8xf32>
      %37 = vector.multi_reduction <add>, %36, %cst_20 [1] : vector<8x12xf32> to vector<8xf32>
      %38 = vector.shape_cast %37 : vector<8xf32> to vector<8x1xf32>
      %cst_21 = arith.constant 9.99999968E-21 : f32
      %39 = vector.broadcast %cst_21 : f32 to vector<8x1xf32>
      %40 = arith.addf %38, %39 : vector<8x1xf32>
      %41 = vector.broadcast %40 : vector<8x1xf32> to vector<8x12xf32>
      %42 = arith.divf %36, %41 : vector<8x12xf32>
      %c0_22 = arith.constant 0 : index
      %c0_23 = arith.constant 0 : index
      %43 = vector.load %arg4[%c0_22, %c0_23] : memref<8x4xf32, #tpu.memory_space<vmem>>, vector<8x4xf32>
      %cst_24 = arith.constant dense<0xFF800000> : vector<8xf32>
      %44 = vector.multi_reduction <maximumf>, %43, %cst_24 [1] : vector<8x4xf32> to vector<8xf32>
      %45 = vector.shape_cast %44 : vector<8xf32> to vector<8x1xf32>
      %46 = vector.broadcast %45 : vector<8x1xf32> to vector<8x4xf32>
      %47 = arith.subf %43, %46 : vector<8x4xf32>
      %48 = math.exp %47 : vector<8x4xf32>
      %cst_25 = arith.constant dense<0.000000e+00> : vector<8xf32>
      %49 = vector.multi_reduction <add>, %48, %cst_25 [1] : vector<8x4xf32> to vector<8xf32>
      %50 = vector.shape_cast %49 : vector<8xf32> to vector<8x1xf32>
      %51 = vector.broadcast %50 : vector<8x1xf32> to vector<8x4xf32>
      %52 = arith.divf %48, %51 : vector<8x4xf32>
      %c0_26 = arith.constant 0 : index
      %c0_27 = arith.constant 0 : index
      %53 = vector.load %arg5[%c0_26, %c0_27] : memref<5x4xf32, #tpu.memory_space<vmem>>, vector<5x4xf32>
      %cst_28 = arith.constant 0.000000e+00 : f32
      %54 = vector.broadcast %cst_28 : f32 to vector<8x4xf32>
      %55 = vector.extract_strided_slice %42 {offsets = [0, 0], sizes = [8, 3], strides = [1, 1]} : vector<8x12xf32> to vector<8x3xf32>
      %cst_29 = arith.constant dense<0.000000e+00> : vector<8xf32>
      %56 = vector.multi_reduction <add>, %55, %cst_29 [1] : vector<8x3xf32> to vector<8xf32>
      %57 = vector.shape_cast %56 : vector<8xf32> to vector<8x1xf32>
      %58 = vector.extract_strided_slice %53 {offsets = [0, 0], sizes = [1, 4], strides = [1, 1]} : vector<5x4xf32> to vector<1x4xf32>
      %59 = vector.broadcast %57 : vector<8x1xf32> to vector<8x4xf32>
      %60 = vector.broadcast %58 : vector<1x4xf32> to vector<8x4xf32>
      %61 = arith.subf %59, %60 : vector<8x4xf32>
      %62 = arith.mulf %61, %61 : vector<8x4xf32>
      %63 = arith.addf %54, %62 : vector<8x4xf32>
      %64 = vector.extract_strided_slice %42 {offsets = [0, 3], sizes = [8, 3], strides = [1, 1]} : vector<8x12xf32> to vector<8x3xf32>
      %cst_30 = arith.constant dense<0.000000e+00> : vector<8xf32>
      %65 = vector.multi_reduction <add>, %64, %cst_30 [1] : vector<8x3xf32> to vector<8xf32>
      %66 = vector.shape_cast %65 : vector<8xf32> to vector<8x1xf32>
      %67 = vector.extract_strided_slice %53 {offsets = [1, 0], sizes = [1, 4], strides = [1, 1]} : vector<5x4xf32> to vector<1x4xf32>
      %68 = vector.broadcast %66 : vector<8x1xf32> to vector<8x4xf32>
      %69 = vector.broadcast %67 : vector<1x4xf32> to vector<8x4xf32>
      %70 = arith.subf %68, %69 : vector<8x4xf32>
      %71 = arith.mulf %70, %70 : vector<8x4xf32>
      %72 = arith.addf %63, %71 : vector<8x4xf32>
      %73 = vector.extract_strided_slice %42 {offsets = [0, 6], sizes = [8, 3], strides = [1, 1]} : vector<8x12xf32> to vector<8x3xf32>
      %cst_31 = arith.constant dense<0.000000e+00> : vector<8xf32>
      %74 = vector.multi_reduction <add>, %73, %cst_31 [1] : vector<8x3xf32> to vector<8xf32>
      %75 = vector.shape_cast %74 : vector<8xf32> to vector<8x1xf32>
      %76 = vector.extract_strided_slice %53 {offsets = [2, 0], sizes = [1, 4], strides = [1, 1]} : vector<5x4xf32> to vector<1x4xf32>
      %77 = vector.broadcast %75 : vector<8x1xf32> to vector<8x4xf32>
      %78 = vector.broadcast %76 : vector<1x4xf32> to vector<8x4xf32>
      %79 = arith.subf %77, %78 : vector<8x4xf32>
      %80 = arith.mulf %79, %79 : vector<8x4xf32>
      %81 = arith.addf %72, %80 : vector<8x4xf32>
      %82 = vector.extract_strided_slice %42 {offsets = [0, 9], sizes = [8, 3], strides = [1, 1]} : vector<8x12xf32> to vector<8x3xf32>
      %cst_32 = arith.constant dense<0.000000e+00> : vector<8xf32>
      %83 = vector.multi_reduction <add>, %82, %cst_32 [1] : vector<8x3xf32> to vector<8xf32>
      %84 = vector.shape_cast %83 : vector<8xf32> to vector<8x1xf32>
      %85 = vector.extract_strided_slice %53 {offsets = [3, 0], sizes = [1, 4], strides = [1, 1]} : vector<5x4xf32> to vector<1x4xf32>
      %86 = vector.broadcast %84 : vector<8x1xf32> to vector<8x4xf32>
      %87 = vector.broadcast %85 : vector<1x4xf32> to vector<8x4xf32>
      %88 = arith.subf %86, %87 : vector<8x4xf32>
      %89 = arith.mulf %88, %88 : vector<8x4xf32>
      %90 = arith.addf %81, %89 : vector<8x4xf32>
      %cst_33 = arith.constant 0.000000e+00 : f32
      %91 = vector.broadcast %cst_33 : f32 to vector<8x1xf32>
      %92 = vector.extract_strided_slice %53 {offsets = [4, 0], sizes = [1, 4], strides = [1, 1]} : vector<5x4xf32> to vector<1x4xf32>
      %93 = vector.broadcast %91 : vector<8x1xf32> to vector<8x4xf32>
      %94 = vector.broadcast %92 : vector<1x4xf32> to vector<8x4xf32>
      %95 = arith.subf %93, %94 : vector<8x4xf32>
      %96 = arith.mulf %95, %95 : vector<8x4xf32>
      %97 = arith.addf %90, %96 : vector<8x4xf32>
      %c0_34 = arith.constant 0 : index
      %98 = memref.load %arg8[%c0_34] : memref<1xf32, #tpu.memory_space<smem>>
      %cst_35 = arith.constant 0.000000e+00 : f32
      %99 = vector.broadcast %cst_35 : f32 to vector<8x4xf32>
      %100 = arith.subf %99, %52 : vector<8x4xf32>
      %101 = arith.mulf %100, %97 : vector<8x4xf32>
      %102 = vector.shape_cast %101 : vector<8x4xf32> to vector<1x8x4xf32>
      %cst_36 = arith.constant dense<0.000000e+00> : vector<1xf32>
      %103 = vector.multi_reduction <add>, %102, %cst_36 [1, 2] : vector<1x8x4xf32> to vector<1xf32>
      %104 = vector.shape_cast %103 : vector<1xf32> to vector<1x1x1xf32>
      %105 = vector.extract %104[0, 0, 0] : f32 from vector<1x1x1xf32>
      %106 = arith.addf %98, %105 : f32
      %c0_37 = arith.constant 0 : index
      %107 = memref.load %arg8[%c0_37] : memref<1xf32, #tpu.memory_space<smem>>
      memref.store %106, %arg8[%c0_37] : memref<1xf32, #tpu.memory_space<smem>>
    } else {
    }
    %c1_i32_15 = arith.constant 1 : i32
    %31 = arith.cmpi eq, %arg0, %c1_i32_15 : i32
    %c1_i32_16 = arith.constant 1 : i32
    %32 = arith.cmpi eq, %arg1, %c1_i32_16 : i32
    %33 = arith.andi %31, %32 : i1
    %34 = arith.extui %33 : i1 to i32
    %c0_i32_17 = arith.constant 0 : i32
    %35 = arith.cmpi ne, %34, %c0_i32_17 : i32
    scf.if %35 {
      %c0_18 = arith.constant 0 : index
      %36 = memref.load %arg8[%c0_18] : memref<1xf32, #tpu.memory_space<smem>>
      %c0_19 = arith.constant 0 : index
      %c0_20 = arith.constant 0 : index
      %37 = memref.load %arg6[%c0_19, %c0_20] : memref<1x1xf32, #tpu.memory_space<smem>>
      memref.store %36, %arg6[%c0_19, %c0_20] : memref<1x1xf32, #tpu.memory_space<smem>>
    } else {
    }
    return
  }
  func.func @transform_0(%arg0: i32, %arg1: i32) -> (i32, i32, i32) {
    %c0_i32 = arith.constant 0 : i32
    %c0_i32_0 = arith.constant 0 : i32
    return %arg0, %arg1, %c0_i32 : i32, i32, i32
  }
  func.func @transform_1(%arg0: i32, %arg1: i32) -> (i32, i32) {
    %c0_i32 = arith.constant 0 : i32
    return %arg0, %arg1 : i32, i32
  }
  func.func @transform_2(%arg0: i32, %arg1: i32) -> (i32, i32) {
    %c0_i32 = arith.constant 0 : i32
    %c0_i32_0 = arith.constant 0 : i32
    return %arg0, %c0_i32 : i32, i32
  }
  func.func @transform_3(%arg0: i32, %arg1: i32) -> (i32, i32) {
    %c0_i32 = arith.constant 0 : i32
    %c0_i32_0 = arith.constant 0 : i32
    %c0_i32_1 = arith.constant 0 : i32
    return %c0_i32, %c0_i32_0 : i32, i32
  }
  func.func @transform_4(%arg0: i32, %arg1: i32) -> (i32, i32) {
    %c0_i32 = arith.constant 0 : i32
    %c0_i32_0 = arith.constant 0 : i32
    %c0_i32_1 = arith.constant 0 : i32
    return %c0_i32, %c0_i32_0 : i32, i32
  }
}

</mosaic_0001>

<llo_original>
// kernel: tpu_custom_call.1
$region0: #{tpu_custom_call.1}
  #allocation0 [shape = 'u32[]', space=smem, size = 0x4, offset = 0x4, fixed_abs, tag = 'smem constant byte address 0x4 - core index']
  #allocation1 [shape = 'u32[144,128]{1,0:T(1,128)}', space=vmem, size = 0x12000, scoped, tag = 'internal scratch']
  #allocation2 [shape = 'f32[8,12]{1,0:T(8,128)}', space=vmem, size = 0x1000, scoped, tag = 'scratch operand']
  #allocation3 [shape = 'f32[1]{0:T(128)}', space=smem, size = 0x200, scoped, tag = 'scratch operand']
  %s0 = inlined_call_operand.vmem [shape: bf16[16,256,12], index: 0, kind: input, shape index: {}]
  %s1 = inlined_call_operand.vmem [shape: bf16[16,256], index: 1, kind: input, shape index: {}]
  %s2 = inlined_call_operand.vmem [shape: f32[16,4], index: 2, kind: input, shape index: {}]
  %s3 = inlined_call_operand.vmem [shape: f32[5,4], index: 3, kind: input, shape index: {}]
  %s4 = inlined_call_operand.hbm [shape: f32[1,1], index: 4, kind: output, shape index: {}]
  %s5 = sld [smem:[#allocation0]]
  $region106: #{tpu_custom_call.1} parent=0
    _
  %s7 = ssub.s32 1, %s5
  %s8 = scalar_select 0, %s7, %s5
  $region1: #{tpu_custom_call.1} parent=0
    #allocation4 [shape = 'u8[524288]{0}', space=vmem, size = 0x80000, scoped, tag = 'input window, operand 0']
    #allocation5 [shape = 'u8[512]{0}', space=smem, size = 0x200, scoped, tag = 'output window, operand 0, single buffered']
    #allocation6 [shape = 's32[2]{0}', space=sflag, size = 0x8, scoped, tag = 'scoped memory for tpu_custom_call.1']
    %9 = vsyncpa [#allocation6], 0
    loop: start=0, step=1, limit=6
    $region2: #{tpu_custom_call.1} parent=1 // loop_pre_header
      _
    $region3: #{tpu_custom_call.1} parent=1 // loop_header
      %s11 = sphi 0, %s15
      %p12 = scmp.ge.s32.totalorder %s11, 6
      %s18 = sphi 0, %s30
      %s19 = sphi 0, %s26
      %s20 = sphi 0, %s18
      %s21 = sphi 0, %s19
      %s22 = sphi 0, %s20
      %s23 = sphi 0, %s21
      %s35 = sphi 0, %s37
      %s38 = sphi 0, %s35
      %s39 = sphi 0, %s38
      %s55 = sphi 0, %s39
      %s63 = sphi 0, %s65
      %s66 = sphi 0, %s63
      %s67 = sphi 0, %s66
      %s83 = sphi 0, %s67
      %s89 = sphi 0, %s91
      %s92 = sphi 0, %s89
      %s93 = sphi 0, %s92
      %s109 = sphi 0, %s93
      %s113 = sphi 0, %s113
      %s115 = sphi 0, %s113
      %s116 = sphi 0, %s115
      %s130 = sphi 0, %s116
      %s134 = sphi 0, %s134
      %s136 = sphi 0, %s134
      %s137 = sphi 0, %s136
      %s151 = sphi 0, %s137
    $region4: #{tpu_custom_call.1} parent=1 // loop_header_branch
      %14 = sbr.rel (%p12) target = $region8
    $region5: #{tpu_custom_call.1} parent=1 // loop_body
      %s16 = ssub.s32 %s11, 1
      %s17 = ssub.s32 %s11, 2
      %s24 = sadd.s32 1, %s19
      %p25 = scmp.ge.s32.totalorder %s24, 2
      %s26 = scalar_select %p25, 0, %s24
      %s27 = sadd.s32 1, %s18
      %s28 = scalar_select %p25, %s27, %s18
      %p29 = scmp.ge.s32.totalorder %s28, 2
      %s30 = scalar_select %p29, 0, %s28
      %s31 = ssub.s32 %s18, %s30
      %s32 = ssub.s32 %s19, %s26
      %s33 = sor.u32 %s31, %s32
      %p34 = scmp.eq.s32.totalorder %s33, 0
      %s36 = sadd.s32 %s35, 1
      %s37 = scalar_select %p34, %s35, %s36
      %p40 = pneg %p34
      %p41 = scmp.eq.s32.totalorder %s11, 3
      %p42 = por %p40, %p41
      %p43 = scmp.ne.s32.totalorder %s35, %s38
      %p44 = scmp.eq.s32.totalorder %s11, 0
      %p45 = por %p43, %p44
      %p46 = scmp.ne.s32.totalorder %s35, %s38
      %p47 = scmp.eq.s32.totalorder %s16, 3
      %p48 = por %p46, %p47
      %p49 = scmp.ne.s32.totalorder %s38, %s39
      %p50 = scmp.eq.s32.totalorder %s16, 0
      %p51 = por %p49, %p50
      %p52 = scmp.ne.s32.totalorder %s38, %s39
      %p53 = scmp.eq.s32.totalorder %s17, 3
      %p54 = por %p52, %p53
      %p56 = scmp.ne.s32.totalorder %s39, %s55
      %p57 = scmp.eq.s32.totalorder %s17, 0
      %p58 = por %p56, %p57
      %s59 = ssub.s32 %s18, %s30
      %s60 = ssub.s32 %s19, %s26
      %s61 = sor.u32 %s59, %s60
      %p62 = scmp.eq.s32.totalorder %s61, 0
      %s64 = sadd.s32 %s63, 1
      %s65 = scalar_select %p62, %s63, %s64
      %p68 = pneg %p62
      %p69 = scmp.eq.s32.totalorder %s11, 3
      %p70 = por %p68, %p69
      %p71 = scmp.ne.s32.totalorder %s63, %s66
      %p72 = scmp.eq.s32.totalorder %s11, 0
      %p73 = por %p71, %p72
      %p74 = scmp.ne.s32.totalorder %s63, %s66
      %p75 = scmp.eq.s32.totalorder %s16, 3
      %p76 = por %p74, %p75
      %p77 = scmp.ne.s32.totalorder %s66, %s67
      %p78 = scmp.eq.s32.totalorder %s16, 0
      %p79 = por %p77, %p78
      %p80 = scmp.ne.s32.totalorder %s66, %s67
      %p81 = scmp.eq.s32.totalorder %s17, 3
      %p82 = por %p80, %p81
      %p84 = scmp.ne.s32.totalorder %s67, %s83
      %p85 = scmp.eq.s32.totalorder %s17, 0
      %p86 = por %p84, %p85
      %s87 = ssub.s32 %s18, %s30
      %p88 = scmp.eq.s32.totalorder %s87, 0
      %s90 = sadd.s32 %s89, 1
      %s91 = scalar_select %p88, %s89, %s90
      %p94 = pneg %p88
      %p95 = scmp.eq.s32.totalorder %s11, 3
      %p96 = por %p94, %p95
      %p97 = scmp.ne.s32.totalorder %s89, %s92
      %p98 = scmp.eq.s32.totalorder %s11, 0
      %p99 = por %p97, %p98
      %p100 = scmp.ne.s32.totalorder %s89, %s92
      %p101 = scmp.eq.s32.totalorder %s16, 3
      %p102 = por %p100, %p101
      %p103 = scmp.ne.s32.totalorder %s92, %s93
      %p104 = scmp.eq.s32.totalorder %s16, 0
      %p105 = por %p103, %p104
      %p106 = scmp.ne.s32.totalorder %s92, %s93
      %p107 = scmp.eq.s32.totalorder %s17, 3
      %p108 = por %p106, %p107
      %p110 = scmp.ne.s32.totalorder %s93, %s109
      %p111 = scmp.eq.s32.totalorder %s17, 0
      %p112 = por %p110, %p111
      %s114 = sadd.s32 %s113, 1
      %p117 = scmp.eq.s32.totalorder %s11, 3
      %p118 = scmp.ne.s32.totalorder %s113, %s115
      %p119 = scmp.eq.s32.totalorder %s11, 0
      %p120 = por %p118, %p119
      %p121 = scmp.ne.s32.totalorder %s113, %s115
      %p122 = scmp.eq.s32.totalorder %s16, 3
      %p123 = por %p121, %p122
      %p124 = scmp.ne.s32.totalorder %s115, %s116
      %p125 = scmp.eq.s32.totalorder %s16, 0
      %p126 = por %p124, %p125
      %p127 = scmp.ne.s32.totalorder %s115, %s116
      %p128 = scmp.eq.s32.totalorder %s17, 3
      %p129 = por %p127, %p128
      %p131 = scmp.ne.s32.totalorder %s116, %s130
      %p132 = scmp.eq.s32.totalorder %s17, 0
      %p133 = por %p131, %p132
      %s135 = sadd.s32 %s134, 1
      %p138 = scmp.eq.s32.totalorder %s11, 3
      %p139 = scmp.ne.s32.totalorder %s134, %s136
      %p140 = scmp.eq.s32.totalorder %s11, 0
      %p141 = por %p139, %p140
      %p142 = scmp.ne.s32.totalorder %s134, %s136
      %p143 = scmp.eq.s32.totalorder %s16, 3
      %p144 = por %p142, %p143
      %p145 = scmp.ne.s32.totalorder %s136, %s137
      %p146 = scmp.eq.s32.totalorder %s16, 0
      %p147 = por %p145, %p146
      %p148 = scmp.ne.s32.totalorder %s136, %s137
      %p149 = scmp.eq.s32.totalorder %s17, 3
      %p150 = por %p148, %p149
      %p152 = scmp.ne.s32.totalorder %s137, %s151
      %p153 = scmp.eq.s32.totalorder %s17, 0
      %p154 = por %p152, %p153
      %p155 = scmp.le.s32.totalorder 1, %s11
      %p156 = scmp.lt.s32.totalorder %s11, 5
      %p157 = pnand %p155, %p156
      %p158 = pneg %p157
      // Predicated region
      $region9: #{tpu_custom_call.1} parent=5 // pred_check
        _
      $region10: #{tpu_custom_call.1} parent=5 // pred_check_branch
        %160 = sbr.rel (%p157) target = $region12
      $region11: #{tpu_custom_call.1} parent=5 // pred_region
        %s161 = ssub.s32 %s11, 1
        // Predicated region
        $region13: #{tpu_custom_call.1} parent=11 // pred_check
          %p162 = pneg %p126
        $region14: #{tpu_custom_call.1} parent=11 // pred_check_branch
          %164 = sbr.rel (%p162) target = $region16
        $region15: #{tpu_custom_call.1} parent=11 // pred_region
          _
        $region16: #{tpu_custom_call.1} parent=11 // pred_fallthru
          _
      $region12: #{tpu_custom_call.1} parent=5 // pred_fallthru
        _
      %p165 = scmp.lt.s32.totalorder %s11, 4
      // Predicated region
      $region17: #{tpu_custom_call.1} parent=5 // pred_check
        %p166 = pneg %p165
      $region18: #{tpu_custom_call.1} parent=5 // pred_check_branch
        %168 = sbr.rel (%p166) target = $region20
      $region19: #{tpu_custom_call.1} parent=5 // pred_region
        // Predicated region
        $region21: #{tpu_custom_call.1} parent=19 // pred_check
          %p169 = pneg %p45
        $region22: #{tpu_custom_call.1} parent=19 // pred_check_branch
          %171 = sbr.rel (%p169) target = $region24
        $region23: #{tpu_custom_call.1} parent=19 // pred_region
          %s172 = sand.u32 %s35, 1
          %s173 = sand.u32 %s35, 1
          %s174 = smul.addr %s173, 512
          %s175 = scalar_lea.vmem [#allocation4], %s174
          %s176 = smul.u32 8, %s18
          %s177 = smul.u32 16, %s19
          %s178 = smul.addr %s176, 32
          %s179 = sadd.s32 %s177, %s178
          %s180 = smul.addr %s179, 4
          %s181 = scalar_lea.vmem %s0, %s180
          // Predicated region
          $region25: #{tpu_custom_call.1} parent=23 // pred_check
            _
          $region26: #{tpu_custom_call.1} parent=23 // pred_check_branch
            %183 = sbr.rel (0) target = $region28
          $region27: #{tpu_custom_call.1} parent=23 // pred_region
            // Predicated region
            $region29: #{tpu_custom_call.1} parent=27 // pred_check
              _
            $region30: #{tpu_custom_call.1} parent=27 // pred_check_branch
              %185 = sbr.rel target = $region32
            $region31: #{tpu_custom_call.1} parent=27 // pred_region
              // Predicated region
              $region44: #{tpu_custom_call.1} parent=31 // pred_check
                _
              $region45: #{tpu_custom_call.1} parent=31 // pred_check_branch
                %455 = sbr.rel (0) target = $region47
              $region46: #{tpu_custom_call.1} parent=31 // pred_region
                loop: start=0, step=1, limit=1
                $region48: #{tpu_custom_call.1} parent=46 // loop_pre_header
                  _
                $region49: #{tpu_custom_call.1} parent=46 // loop_header
                  %s457 = sphi 0, %s461
                  %p458 = scmp.ge.s32.totalorder %s457, 1
                  %s462 = sphi %s181, %s181
                  %s463 = sphi %s175, %s175
                $region50: #{tpu_custom_call.1} parent=46 // loop_header_branch
                  %460 = sbr.rel (%p458) target = $region54
                $region51: #{tpu_custom_call.1} parent=46 // loop_body
                  _
                $region52: #{tpu_custom_call.1} parent=46 // loop_footer
                  %s461 = sadd.s32 1, %s457
                $region53: #{tpu_custom_call.1} parent=46 // loop_footer_branch
                  %456 = sbr.rel target = $region49
                $region54: #{tpu_custom_call.1} parent=46 // loop_exit
                  _
                %s465 = ssub.s32 16, 1
                loop: start=0, step=1, limit=1
                $region55: #{tpu_custom_call.1} parent=46 // loop_pre_header
                  _
                $region56: #{tpu_custom_call.1} parent=46 // loop_header
                  %s467 = sphi 0, %s471
                  %p468 = scmp.ge.s32.totalorder %s467, 1
                  %s472 = sphi %s181, %s181
                  %s473 = sphi %s175, %s175
                $region57: #{tpu_custom_call.1} parent=46 // loop_header_branch
                  %470 = sbr.rel (%p468) target = $region61
                $region58: #{tpu_custom_call.1} parent=46 // loop_body
                  %v474 = vld [vmem:[%s472] sm:%s465]
                  %475 = vst [vmem:[%s473] sm:%s465] %v474
                  %v476 = vld [vmem:[%s472 + $0x4] sm:%s465]
                  %477 = vst [vmem:[%s473 + $0x4] sm:%s465] %v476
                  %v478 = vld [vmem:[%s472 + $0x8] sm:%s465]
                  %479 = vst [vmem:[%s473 + $0x8] sm:%s465] %v478
                  %v480 = vld [vmem:[%s472 + $0xc] sm:%s465]
                  %481 = vst [vmem:[%s473 + $0xc] sm:%s465] %v480
                  %v482 = vld [vmem:[%s472 + $0x10] sm:%s465]
                  %483 = vst [vmem:[%s473 + $0x10] sm:%s465] %v482
                  %v484 = vld [vmem:[%s472 + $0x14] sm:%s465]
                  %485 = vst [vmem:[%s473 + $0x14] sm:%s465] %v484
                  %v486 = vld [vmem:[%s472 + $0x18] sm:%s465]
                  %487 = vst [vmem:[%s473 + $0x18] sm:%s465] %v486
                  %v488 = vld [vmem:[%s472 + $0x1c] sm:%s465]
                  %489 = vst [vmem:[%s473 + $0x1c] sm:%s465] %v488
                  %v490 = vld [vmem:[%s472 + $0x20] sm:%s465]
                  %491 = vst [vmem:[%s473 + $0x20] sm:%s465] %v490
                  %v492 = vld [vmem:[%s472 + $0x24] sm:%s465]
                  %493 = vst [vmem:[%s473 + $0x24] sm:%s465] %v492
                  %v494 = vld [vmem:[%s472 + $0x28] sm:%s465]
                  %495 = vst [vmem:[%s473 + $0x28] sm:%s465] %v494
                  %v496 = vld [vmem:[%s472 + $0x2c] sm:%s465]
                  %497 = vst [vmem:[%s473 + $0x2c] sm:%s465] %v496
                  %v498 = vld [vmem:[%s472 + $0x30] sm:%s465]
                  %499 = vst [vmem:[%s473 + $0x30] sm:%s465] %v498
                  %v500 = vld [vmem:[%s472 + $0x34] sm:%s465]
                  %501 = vst [vmem:[%s473 + $0x34] sm:%s465] %v500
                  %v502 = vld [vmem:[%s472 + $0x38] sm:%s465]
                  %503 = vst [vmem:[%s473 + $0x38] sm:%s465] %v502
                  %v504 = vld [vmem:[%s472 + $0x3c] sm:%s465]
                  %505 = vst [vmem:[%s473 + $0x3c] sm:%s465] %v504
                  %v506 = vld [vmem:[%s472 + $0x80] sm:%s465]
                  %507 = vst [vmem:[%s473 + $0x40] sm:%s465] %v506
                  %v508 = vld [vmem:[%s472 + $0x84] sm:%s465]
                  %509 = vst [vmem:[%s473 + $0x44] sm:%s465] %v508
                  %v510 = vld [vmem:[%s472 + $0x88] sm:%s465]
                  %511 = vst [vmem:[%s473 + $0x48] sm:%s465] %v510
                  %v512 = vld [vmem:[%s472 + $0x8c] sm:%s465]
                  %513 = vst [vmem:[%s473 + $0x4c] sm:%s465] %v512
                  %v514 = vld [vmem:[%s472 + $0x90] sm:%s465]
                  %515 = vst [vmem:[%s473 + $0x50] sm:%s465] %v514
                  %v516 = vld [vmem:[%s472 + $0x94] sm:%s465]
                  %517 = vst [vmem:[%s473 + $0x54] sm:%s465] %v516
                  %v518 = vld [vmem:[%s472 + $0x98] sm:%s465]
                  %519 = vst [vmem:[%s473 + $0x58] sm:%s465] %v518
                  %v520 = vld [vmem:[%s472 + $0x9c] sm:%s465]
                  %521 = vst [vmem:[%s473 + $0x5c] sm:%s465] %v520
                  %v522 = vld [vmem:[%s472 + $0xa0] sm:%s465]
                  %523 = vst [vmem:[%s473 + $0x60] sm:%s465] %v522
                  %v524 = vld [vmem:[%s472 + $0xa4] sm:%s465]
                  %525 = vst [vmem:[%s473 + $0x64] sm:%s465] %v524
                  %v526 = vld [vmem:[%s472 + $0xa8] sm:%s465]
                  %527 = vst [vmem:[%s473 + $0x68] sm:%s465] %v526
                  %v528 = vld [vmem:[%s472 + $0xac] sm:%s465]
                  %529 = vst [vmem:[%s473 + $0x6c] sm:%s465] %v528
                  %v530 = vld [vmem:[%s472 + $0xb0] sm:%s465]
                  %531 = vst [vmem:[%s473 + $0x70] sm:%s465] %v530
                  %v532 = vld [vmem:[%s472 + $0xb4] sm:%s465]
                  %533 = vst [vmem:[%s473 + $0x74] sm:%s465] %v532
                  %v534 = vld [vmem:[%s472 + $0xb8] sm:%s465]
                  %535 = vst [vmem:[%s473 + $0x78] sm:%s465] %v534
                  %v536 = vld [vmem:[%s472 + $0xbc] sm:%s465]
                  %537 = vst [vmem:[%s473 + $0x7c] sm:%s465] %v536
                  %v538 = vld [vmem:[%s472 + $0x100] sm:%s465]
                  %539 = vst [vmem:[%s473 + $0x80] sm:%s465] %v538
                  %v540 = vld [vmem:[%s472 + $0x104] sm:%s465]
                  %541 = vst [vmem:[%s473 + $0x84] sm:%s465] %v540
                  %v542 = vld [vmem:[%s472 + $0x108] sm:%s465]
                  %543 = vst [vmem:[%s473 + $0x88] sm:%s465] %v542
                  %v544 = vld [vmem:[%s472 + $0x10c] sm:%s465]
                  %545 = vst [vmem:[%s473 + $0x8c] sm:%s465] %v544
                  %v546 = vld [vmem:[%s472 + $0x110] sm:%s465]
                  %547 = vst [vmem:[%s473 + $0x90] sm:%s465] %v546
                  %v548 = vld [vmem:[%s472 + $0x114] sm:%s465]
                  %549 = vst [vmem:[%s473 + $0x94] sm:%s465] %v548
                  %v550 = vld [vmem:[%s472 + $0x118] sm:%s465]
                  %551 = vst [vmem:[%s473 + $0x98] sm:%s465] %v550
                  %v552 = vld [vmem:[%s472 + $0x11c] sm:%s465]
                  %553 = vst [vmem:[%s473 + $0x9c] sm:%s465] %v552
                  %v554 = vld [vmem:[%s472 + $0x120] sm:%s465]
                  %555 = vst [vmem:[%s473 + $0xa0] sm:%s465] %v554
                  %v556 = vld [vmem:[%s472 + $0x124] sm:%s465]
                  %557 = vst [vmem:[%s473 + $0xa4] sm:%s465] %v556
                  %v558 = vld [vmem:[%s472 + $0x128] sm:%s465]
                  %559 = vst [vmem:[%s473 + $0xa8] sm:%s465] %v558
                  %v560 = vld [vmem:[%s472 + $0x12c] sm:%s465]
                  %561 = vst [vmem:[%s473 + $0xac] sm:%s465] %v560
                  %v562 = vld [vmem:[%s472 + $0x130] sm:%s465]
                  %563 = vst [vmem:[%s473 + $0xb0] sm:%s465] %v562
                  %v564 = vld [vmem:[%s472 + $0x134] sm:%s465]
                  %565 = vst [vmem:[%s473 + $0xb4] sm:%s465] %v564
                  %v566 = vld [vmem:[%s472 + $0x138] sm:%s465]
                  %567 = vst [vmem:[%s473 + $0xb8] sm:%s465] %v566
                  %v568 = vld [vmem:[%s472 + $0x13c] sm:%s465]
                  %569 = vst [vmem:[%s473 + $0xbc] sm:%s465] %v568
                  %v570 = vld [vmem:[%s472 + $0x180] sm:%s465]
                  %571 = vst [vmem:[%s473 + $0xc0] sm:%s465] %v570
                  %v572 = vld [vmem:[%s472 + $0x184] sm:%s465]
                  %573 = vst [vmem:[%s473 + $0xc4] sm:%s465] %v572
                  %v574 = vld [vmem:[%s472 + $0x188] sm:%s465]
                  %575 = vst [vmem:[%s473 + $0xc8] sm:%s465] %v574
                  %v576 = vld [vmem:[%s472 + $0x18c] sm:%s465]
                  %577 = vst [vmem:[%s473 + $0xcc] sm:%s465] %v576
                  %v578 = vld [vmem:[%s472 + $0x190] sm:%s465]
                  %579 = vst [vmem:[%s473 + $0xd0] sm:%s465] %v578
                  %v580 = vld [vmem:[%s472 + $0x194] sm:%s465]
                  %581 = vst [vmem:[%s473 + $0xd4] sm:%s465] %v580
                  %v582 = vld [vmem:[%s472 + $0x198] sm:%s465]
                  %583 = vst [vmem:[%s473 + $0xd8] sm:%s465] %v582
                  %v584 = vld [vmem:[%s472 + $0x19c] sm:%s465]
                  %585 = vst [vmem:[%s473 + $0xdc] sm:%s465] %v584
                  %v586 = vld [vmem:[%s472 + $0x1a0] sm:%s465]
                  %587 = vst [vmem:[%s473 + $0xe0] sm:%s465] %v586
                  %v588 = vld [vmem:[%s472 + $0x1a4] sm:%s465]
                  %589 = vst [vmem:[%s473 + $0xe4] sm:%s465] %v588
                  %v590 = vld [vmem:[%s472 + $0x1a8] sm:%s465]
                  %591 = vst [vmem:[%s473 + $0xe8] sm:%s465] %v590
                  %v592 = vld [vmem:[%s472 + $0x1ac] sm:%s465]
                  %593 = vst [vmem:[%s473 + $0xec] sm:%s465] %v592
                  %v594 = vld [vmem:[%s472 + $0x1b0] sm:%s465]
                  %595 = vst [vmem:[%s473 + $0xf0] sm:%s465] %v594
                  %v596 = vld [vmem:[%s472 + $0x1b4] sm:%s465]
                  %597 = vst [vmem:[%s473 + $0xf4] sm:%s465] %v596
                  %v598 = vld [vmem:[%s472 + $0x1b8] sm:%s465]
                  %599 = vst [vmem:[%s473 + $0xf8] sm:%s465] %v598
                  %v600 = vld [vmem:[%s472 + $0x1bc] sm:%s465]
                  %601 = vst [vmem:[%s473 + $0xfc] sm:%s465] %v600
                  %v602 = vld [vmem:[%s472 + $0x200] sm:%s465]
                  %603 = vst [vmem:[%s473 + $0x100] sm:%s465] %v602
                  %v604 = vld [vmem:[%s472 + $0x204] sm:%s465]
                  %605 = vst [vmem:[%s473 + $0x104] sm:%s465] %v604
                  %v606 = vld [vmem:[%s472 + $0x208] sm:%s465]
                  %607 = vst [vmem:[%s473 + $0x108] sm:%s465] %v606
                  %v608 = vld [vmem:[%s472 + $0x20c] sm:%s465]
                  %609 = vst [vmem:[%s473 + $0x10c] sm:%s465] %v608
                  %v610 = vld [vmem:[%s472 + $0x210] sm:%s465]
                  %611 = vst [vmem:[%s473 + $0x110] sm:%s465] %v610
                  %v612 = vld [vmem:[%s472 + $0x214] sm:%s465]
                  %613 = vst [vmem:[%s473 + $0x114] sm:%s465] %v612
                  %v614 = vld [vmem:[%s472 + $0x218] sm:%s465]
                  %615 = vst [vmem:[%s473 + $0x118] sm:%s465] %v614
                  %v616 = vld [vmem:[%s472 + $0x21c] sm:%s465]
                  %617 = vst [vmem:[%s473 + $0x11c] sm:%s465] %v616
                  %v618 = vld [vmem:[%s472 + $0x220] sm:%s465]
                  %619 = vst [vmem:[%s473 + $0x120] sm:%s465] %v618
                  %v620 = vld [vmem:[%s472 + $0x224] sm:%s465]
                  %621 = vst [vmem:[%s473 + $0x124] sm:%s465] %v620
                  %v622 = vld [vmem:[%s472 + $0x228] sm:%s465]
                  %623 = vst [vmem:[%s473 + $0x128] sm:%s465] %v622
                  %v624 = vld [vmem:[%s472 + $0x22c] sm:%s465]
                  %625 = vst [vmem:[%s473 + $0x12c] sm:%s465] %v624
                  %v626 = vld [vmem:[%s472 + $0x230] sm:%s465]
                  %627 = vst [vmem:[%s473 + $0x130] sm:%s465] %v626
                  %v628 = vld [vmem:[%s472 + $0x234] sm:%s465]
                  %629 = vst [vmem:[%s473 + $0x134] sm:%s465] %v628
                  %v630 = vld [vmem:[%s472 + $0x238] sm:%s465]
                  %631 = vst [vmem:[%s473 + $0x138] sm:%s465] %v630
                  %v632 = vld [vmem:[%s472 + $0x23c] sm:%s465]
                  %633 = vst [vmem:[%s473 + $0x13c] sm:%s465] %v632
                  %v634 = vld [vmem:[%s472 + $0x280] sm:%s465]
                  %635 = vst [vmem:[%s473 + $0x140] sm:%s465] %v634
                  %v636 = vld [vmem:[%s472 + $0x284] sm:%s465]
                  %637 = vst [vmem:[%s473 + $0x144] sm:%s465] %v636
                  %v638 = vld [vmem:[%s472 + $0x288] sm:%s465]
                  %639 = vst [vmem:[%s473 + $0x148] sm:%s465] %v638
                  %v640 = vld [vmem:[%s472 + $0x28c] sm:%s465]
                  %641 = vst [vmem:[%s473 + $0x14c] sm:%s465] %v640
                  %v642 = vld [vmem:[%s472 + $0x290] sm:%s465]
                  %643 = vst [vmem:[%s473 + $0x150] sm:%s465] %v642
                  %v644 = vld [vmem:[%s472 + $0x294] sm:%s465]
                  %645 = vst [vmem:[%s473 + $0x154] sm:%s465] %v644
                  %v646 = vld [vmem:[%s472 + $0x298] sm:%s465]
                  %647 = vst [vmem:[%s473 + $0x158] sm:%s465] %v646
                  %v648 = vld [vmem:[%s472 + $0x29c] sm:%s465]
                  %649 = vst [vmem:[%s473 + $0x15c] sm:%s465] %v648
                  %v650 = vld [vmem:[%s472 + $0x2a0] sm:%s465]
                  %651 = vst [vmem:[%s473 + $0x160] sm:%s465] %v650
                  %v652 = vld [vmem:[%s472 + $0x2a4] sm:%s465]
                  %653 = vst [vmem:[%s473 + $0x164] sm:%s465] %v652
                  %v654 = vld [vmem:[%s472 + $0x2a8] sm:%s465]
                  %655 = vst [vmem:[%s473 + $0x168] sm:%s465] %v654
                  %v656 = vld [vmem:[%s472 + $0x2ac] sm:%s465]
                  %657 = vst [vmem:[%s473 + $0x16c] sm:%s465] %v656
                  %v658 = vld [vmem:[%s472 + $0x2b0] sm:%s465]
                  %659 = vst [vmem:[%s473 + $0x170] sm:%s465] %v658
                  %v660 = vld [vmem:[%s472 + $0x2b4] sm:%s465]
                  %661 = vst [vmem:[%s473 + $0x174] sm:%s465] %v660
                  %v662 = vld [vmem:[%s472 + $0x2b8] sm:%s465]
                  %663 = vst [vmem:[%s473 + $0x178] sm:%s465] %v662
                  %v664 = vld [vmem:[%s472 + $0x2bc] sm:%s465]
                  %665 = vst [vmem:[%s473 + $0x17c] sm:%s465] %v664
                  %v666 = vld [vmem:[%s472 + $0x300] sm:%s465]
                  %667 = vst [vmem:[%s473 + $0x180] sm:%s465] %v666
                  %v668 = vld [vmem:[%s472 + $0x304] sm:%s465]
                  %669 = vst [vmem:[%s473 + $0x184] sm:%s465] %v668
                  %v670 = vld [vmem:[%s472 + $0x308] sm:%s465]
                  %671 = vst [vmem:[%s473 + $0x188] sm:%s465] %v670
                  %v672 = vld [vmem:[%s472 + $0x30c] sm:%s465]
                  %673 = vst [vmem:[%s473 + $0x18c] sm:%s465] %v672
                  %v674 = vld [vmem:[%s472 + $0x310] sm:%s465]
                  %675 = vst [vmem:[%s473 + $0x190] sm:%s465] %v674
                  %v676 = vld [vmem:[%s472 + $0x314] sm:%s465]
                  %677 = vst [vmem:[%s473 + $0x194] sm:%s465] %v676
                  %v678 = vld [vmem:[%s472 + $0x318] sm:%s465]
                  %679 = vst [vmem:[%s473 + $0x198] sm:%s465] %v678
                  %v680 = vld [vmem:[%s472 + $0x31c] sm:%s465]
                  %681 = vst [vmem:[%s473 + $0x19c] sm:%s465] %v680
                  %v682 = vld [vmem:[%s472 + $0x320] sm:%s465]
                  %683 = vst [vmem:[%s473 + $0x1a0] sm:%s465] %v682
                  %v684 = vld [vmem:[%s472 + $0x324] sm:%s465]
                  %685 = vst [vmem:[%s473 + $0x1a4] sm:%s465] %v684
                  %v686 = vld [vmem:[%s472 + $0x328] sm:%s465]
                  %687 = vst [vmem:[%s473 + $0x1a8] sm:%s465] %v686
                  %v688 = vld [vmem:[%s472 + $0x32c] sm:%s465]
                  %689 = vst [vmem:[%s473 + $0x1ac] sm:%s465] %v688
                  %v690 = vld [vmem:[%s472 + $0x330] sm:%s465]
                  %691 = vst [vmem:[%s473 + $0x1b0] sm:%s465] %v690
                  %v692 = vld [vmem:[%s472 + $0x334] sm:%s465]
                  %693 = vst [vmem:[%s473 + $0x1b4] sm:%s465] %v692
                  %v694 = vld [vmem:[%s472 + $0x338] sm:%s465]
                  %695 = vst [vmem:[%s473 + $0x1b8] sm:%s465] %v694
                  %v696 = vld [vmem:[%s472 + $0x33c] sm:%s465]
                  %697 = vst [vmem:[%s473 + $0x1bc] sm:%s465] %v696
                  %v698 = vld [vmem:[%s472 + $0x380] sm:%s465]
                  %699 = vst [vmem:[%s473 + $0x1c0] sm:%s465] %v698
                  %v700 = vld [vmem:[%s472 + $0x384] sm:%s465]
                  %701 = vst [vmem:[%s473 + $0x1c4] sm:%s465] %v700
                  %v702 = vld [vmem:[%s472 + $0x388] sm:%s465]
                  %703 = vst [vmem:[%s473 + $0x1c8] sm:%s465] %v702
                  %v704 = vld [vmem:[%s472 + $0x38c] sm:%s465]
                  %705 = vst [vmem:[%s473 + $0x1cc] sm:%s465] %v704
                  %v706 = vld [vmem:[%s472 + $0x390] sm:%s465]
                  %707 = vst [vmem:[%s473 + $0x1d0] sm:%s465] %v706
                  %v708 = vld [vmem:[%s472 + $0x394] sm:%s465]
                  %709 = vst [vmem:[%s473 + $0x1d4] sm:%s465] %v708
                  %v710 = vld [vmem:[%s472 + $0x398] sm:%s465]
                  %711 = vst [vmem:[%s473 + $0x1d8] sm:%s465] %v710
                  %v712 = vld [vmem:[%s472 + $0x39c] sm:%s465]
                  %713 = vst [vmem:[%s473 + $0x1dc] sm:%s465] %v712
                  %v714 = vld [vmem:[%s472 + $0x3a0] sm:%s465]
                  %715 = vst [vmem:[%s473 + $0x1e0] sm:%s465] %v714
                  %v716 = vld [vmem:[%s472 + $0x3a4] sm:%s465]
                  %717 = vst [vmem:[%s473 + $0x1e4] sm:%s465] %v716
                  %v718 = vld [vmem:[%s472 + $0x3a8] sm:%s465]
                  %719 = vst [vmem:[%s473 + $0x1e8] sm:%s465] %v718
                  %v720 = vld [vmem:[%s472 + $0x3ac] sm:%s465]
                  %721 = vst [vmem:[%s473 + $0x1ec] sm:%s465] %v720
                  %v722 = vld [vmem:[%s472 + $0x3b0] sm:%s465]
                  %723 = vst [vmem:[%s473 + $0x1f0] sm:%s465] %v722
                  %v724 = vld [vmem:[%s472 + $0x3b4] sm:%s465]
                  %725 = vst [vmem:[%s473 + $0x1f4] sm:%s465] %v724
                  %v726 = vld [vmem:[%s472 + $0x3b8] sm:%s465]
                  %727 = vst [vmem:[%s473 + $0x1f8] sm:%s465] %v726
                  %v728 = vld [vmem:[%s472 + $0x3bc] sm:%s465]
                  %729 = vst [vmem:[%s473 + $0x1fc] sm:%s465] %v728
                $region59: #{tpu_custom_call.1} parent=46 // loop_footer
                  %s471 = sadd.s32 1, %s467
                $region60: #{tpu_custom_call.1} parent=46 // loop_footer_branch
                  %466 = sbr.rel target = $region56
                $region61: #{tpu_custom_call.1} parent=46 // loop_exit
                  _
              $region47: #{tpu_custom_call.1} parent=31 // pred_fallthru
                _
            $region32: #{tpu_custom_call.1} parent=27 // pred_fallthru
              _
            // Predicated region
            $region33: #{tpu_custom_call.1} parent=27 // pred_check
              _
            $region34: #{tpu_custom_call.1} parent=27 // pred_check_branch
              %187 = sbr.rel (0) target = $region36
            $region35: #{tpu_custom_call.1} parent=27 // pred_region
              %s189 = ssub.s32 16, 1
              loop: start=0, step=1, limit=1
              $region37: #{tpu_custom_call.1} parent=35 // loop_pre_header
                _
              $region38: #{tpu_custom_call.1} parent=35 // loop_header
                %s191 = sphi 0, %s195
                %p192 = scmp.ge.s32.totalorder %s191, 1
                %s196 = sphi %s181, %s181
                %s197 = sphi %s175, %s175
              $region39: #{tpu_custom_call.1} parent=35 // loop_header_branch
                %194 = sbr.rel (%p192) target = $region43
              $region40: #{tpu_custom_call.1} parent=35 // loop_body
                %v198 = vld [vmem:[%s196] sm:%s189]
                %199 = vst [vmem:[%s197] sm:%s189] %v198
                %v200 = vld [vmem:[%s196 + $0x4] sm:%s189]
                %201 = vst [vmem:[%s197 + $0x4] sm:%s189] %v200
                %v202 = vld [vmem:[%s196 + $0x8] sm:%s189]
                %203 = vst [vmem:[%s197 + $0x8] sm:%s189] %v202
                %v204 = vld [vmem:[%s196 + $0xc] sm:%s189]
                %205 = vst [vmem:[%s197 + $0xc] sm:%s189] %v204
                %v206 = vld [vmem:[%s196 + $0x10] sm:%s189]
                %207 = vst [vmem:[%s197 + $0x10] sm:%s189] %v206
                %v208 = vld [vmem:[%s196 + $0x14] sm:%s189]
                %209 = vst [vmem:[%s197 + $0x14] sm:%s189] %v208
                %v210 = vld [vmem:[%s196 + $0x18] sm:%s189]
                %211 = vst [vmem:[%s197 + $0x18] sm:%s189] %v210
                %v212 = vld [vmem:[%s196 + $0x1c] sm:%s189]
                %213 = vst [vmem:[%s197 + $0x1c] sm:%s189] %v212
                %v214 = vld [vmem:[%s196 + $0x20] sm:%s189]
                %215 = vst [vmem:[%s197 + $0x20] sm:%s189] %v214
                %v216 = vld [vmem:[%s196 + $0x24] sm:%s189]
                %217 = vst [vmem:[%s197 + $0x24] sm:%s189] %v216
                %v218 = vld [vmem:[%s196 + $0x28] sm:%s189]
                %219 = vst [vmem:[%s197 + $0x28] sm:%s189] %v218
                %v220 = vld [vmem:[%s196 + $0x2c] sm:%s189]
                %221 = vst [vmem:[%s197 + $0x2c] sm:%s189] %v220
                %v222 = vld [vmem:[%s196 + $0x30] sm:%s189]
                %223 = vst [vmem:[%s197 + $0x30] sm:%s189] %v222
                %v224 = vld [vmem:[%s196 + $0x34] sm:%s189]
                %225 = vst [vmem:[%s197 + $0x34] sm:%s189] %v224
                %v226 = vld [vmem:[%s196 + $0x38] sm:%s189]
                %227 = vst [vmem:[%s197 + $0x38] sm:%s189] %v226
                %v228 = vld [vmem:[%s196 + $0x3c] sm:%s189]
                %229 = vst [vmem:[%s197 + $0x3c] sm:%s189] %v228
                %v230 = vld [vmem:[%s196 + $0x80] sm:%s189]
                %231 = vst [vmem:[%s197 + $0x40] sm:%s189] %v230
                %v232 = vld [vmem:[%s196 + $0x84] sm:%s189]
                %233 = vst [vmem:[%s197 + $0x44] sm:%s189] %v232
                %v234 = vld [vmem:[%s196 + $0x88] sm:%s189]
                %235 = vst [vmem:[%s197 + $0x48] sm:%s189] %v234
                %v236 = vld [vmem:[%s196 + $0x8c] sm:%s189]
                %237 = vst [vmem:[%s197 + $0x4c] sm:%s189] %v236
                %v238 = vld [vmem:[%s196 + $0x90] sm:%s189]
                %239 = vst [vmem:[%s197 + $0x50] sm:%s189] %v238
                %v240 = vld [vmem:[%s196 + $0x94] sm:%s189]
                %241 = vst [vmem:[%s197 + $0x54] sm:%s189] %v240
                %v242 = vld [vmem:[%s196 + $0x98] sm:%s189]
                %243 = vst [vmem:[%s197 + $0x58] sm:%s189] %v242
                %v244 = vld [vmem:[%s196 + $0x9c] sm:%s189]
                %245 = vst [vmem:[%s197 + $0x5c] sm:%s189] %v244
                %v246 = vld [vmem:[%s196 + $0xa0] sm:%s189]
                %247 = vst [vmem:[%s197 + $0x60] sm:%s189] %v246
                %v248 = vld [vmem:[%s196 + $0xa4] sm:%s189]
                %249 = vst [vmem:[%s197 + $0x64] sm:%s189] %v248
                %v250 = vld [vmem:[%s196 + $0xa8] sm:%s189]
                %251 = vst [vmem:[%s197 + $0x68] sm:%s189] %v250
                %v252 = vld [vmem:[%s196 + $0xac] sm:%s189]
                %253 = vst [vmem:[%s197 + $0x6c] sm:%s189] %v252
                %v254 = vld [vmem:[%s196 + $0xb0] sm:%s189]
                %255 = vst [vmem:[%s197 + $0x70] sm:%s189] %v254
                %v256 = vld [vmem:[%s196 + $0xb4] sm:%s189]
                %257 = vst [vmem:[%s197 + $0x74] sm:%s189] %v256
                %v258 = vld [vmem:[%s196 + $0xb8] sm:%s189]
                %259 = vst [vmem:[%s197 + $0x78] sm:%s189] %v258
                %v260 = vld [vmem:[%s196 + $0xbc] sm:%s189]
                %261 = vst [vmem:[%s197 + $0x7c] sm:%s189] %v260
                %v262 = vld [vmem:[%s196 + $0x100] sm:%s189]
                %263 = vst [vmem:[%s197 + $0x80] sm:%s189] %v262
                %v264 = vld [vmem:[%s196 + $0x104] sm:%s189]
                %265 = vst [vmem:[%s197 + $0x84] sm:%s189] %v264
                %v266 = vld [vmem:[%s196 + $0x108] sm:%s189]
                %267 = vst [vmem:[%s197 + $0x88] sm:%s189] %v266
                %v268 = vld [vmem:[%s196 + $0x10c] sm:%s189]
                %269 = vst [vmem:[%s197 + $0x8c] sm:%s189] %v268
                %v270 = vld [vmem:[%s196 + $0x110] sm:%s189]
                %271 = vst [vmem:[%s197 + $0x90] sm:%s189] %v270
                %v272 = vld [vmem:[%s196 + $0x114] sm:%s189]
                %273 = vst [vmem:[%s197 + $0x94] sm:%s189] %v272
                %v274 = vld [vmem:[%s196 + $0x118] sm:%s189]
                %275 = vst [vmem:[%s197 + $0x98] sm:%s189] %v274
                %v276 = vld [vmem:[%s196 + $0x11c] sm:%s189]
                %277 = vst [vmem:[%s197 + $0x9c] sm:%s189] %v276
                %v278 = vld [vmem:[%s196 + $0x120] sm:%s189]
                %279 = vst [vmem:[%s197 + $0xa0] sm:%s189] %v278
                %v280 = vld [vmem:[%s196 + $0x124] sm:%s189]
                %281 = vst [vmem:[%s197 + $0xa4] sm:%s189] %v280
                %v282 = vld [vmem:[%s196 + $0x128] sm:%s189]
                %283 = vst [vmem:[%s197 + $0xa8] sm:%s189] %v282
                %v284 = vld [vmem:[%s196 + $0x12c] sm:%s189]
                %285 = vst [vmem:[%s197 + $0xac] sm:%s189] %v284
                %v286 = vld [vmem:[%s196 + $0x130] sm:%s189]
                %287 = vst [vmem:[%s197 + $0xb0] sm:%s189] %v286
                %v288 = vld [vmem:[%s196 + $0x134] sm:%s189]
                %289 = vst [vmem:[%s197 + $0xb4] sm:%s189] %v288
                %v290 = vld [vmem:[%s196 + $0x138] sm:%s189]
                %291 = vst [vmem:[%s197 + $0xb8] sm:%s189] %v290
                %v292 = vld [vmem:[%s196 + $0x13c] sm:%s189]
                %293 = vst [vmem:[%s197 + $0xbc] sm:%s189] %v292
                %v294 = vld [vmem:[%s196 + $0x180] sm:%s189]
                %295 = vst [vmem:[%s197 + $0xc0] sm:%s189] %v294
                %v296 = vld [vmem:[%s196 + $0x184] sm:%s189]
                %297 = vst [vmem:[%s197 + $0xc4] sm:%s189] %v296
                %v298 = vld [vmem:[%s196 + $0x188] sm:%s189]
                %299 = vst [vmem:[%s197 + $0xc8] sm:%s189] %v298
                %v300 = vld [vmem:[%s196 + $0x18c] sm:%s189]
                %301 = vst [vmem:[%s197 + $0xcc] sm:%s189] %v300
                %v302 = vld [vmem:[%s196 + $0x190] sm:%s189]
                %303 = vst [vmem:[%s197 + $0xd0] sm:%s189] %v302
                %v304 = vld [vmem:[%s196 + $0x194] sm:%s189]
                %305 = vst [vmem:[%s197 + $0xd4] sm:%s189] %v304
                %v306 = vld [vmem:[%s196 + $0x198] sm:%s189]
                %307 = vst [vmem:[%s197 + $0xd8] sm:%s189] %v306
                %v308 = vld [vmem:[%s196 + $0x19c] sm:%s189]
                %309 = vst [vmem:[%s197 + $0xdc] sm:%s189] %v308
                %v310 = vld [vmem:[%s196 + $0x1a0] sm:%s189]
                %311 = vst [vmem:[%s197 + $0xe0] sm:%s189] %v310
                %v312 = vld [vmem:[%s196 + $0x1a4] sm:%s189]
                %313 = vst [vmem:[%s197 + $0xe4] sm:%s189] %v312
                %v314 = vld [vmem:[%s196 + $0x1a8] sm:%s189]
                %315 = vst [vmem:[%s197 + $0xe8] sm:%s189] %v314
                %v316 = vld [vmem:[%s196 + $0x1ac] sm:%s189]
                %317 = vst [vmem:[%s197 + $0xec] sm:%s189] %v316
                %v318 = vld [vmem:[%s196 + $0x1b0] sm:%s189]
                %319 = vst [vmem:[%s197 + $0xf0] sm:%s189] %v318
                %v320 = vld [vmem:[%s196 + $0x1b4] sm:%s189]
                %321 = vst [vmem:[%s197 + $0xf4] sm:%s189] %v320
                %v322 = vld [vmem:[%s196 + $0x1b8] sm:%s189]
                %323 = vst [vmem:[%s197 + $0xf8] sm:%s189] %v322
                %v324 = vld [vmem:[%s196 + $0x1bc] sm:%s189]
                %325 = vst [vmem:[%s197 + $0xfc] sm:%s189] %v324
                %v326 = vld [vmem:[%s196 + $0x200] sm:%s189]
                %327 = vst [vmem:[%s197 + $0x100] sm:%s189] %v326
                %v328 = vld [vmem:[%s196 + $0x204] sm:%s189]
                %329 = vst [vmem:[%s197 + $0x104] sm:%s189] %v328
                %v330 = vld [vmem:[%s196 + $0x208] sm:%s189]
                %331 = vst [vmem:[%s197 + $0x108] sm:%s189] %v330
                %v332 = vld [vmem:[%s196 + $0x20c] sm:%s189]
                %333 = vst [vmem:[%s197 + $0x10c] sm:%s189] %v332
                %v334 = vld [vmem:[%s196 + $0x210] sm:%s189]
                %335 = vst [vmem:[%s197 + $0x110] sm:%s189] %v334
                %v336 = vld [vmem:[%s196 + $0x214] sm:%s189]
                %337 = vst [vmem:[%s197 + $0x114] sm:%s189] %v336
                %v338 = vld [vmem:[%s196 + $0x218] sm:%s189]
                %339 = vst [vmem:[%s197 + $0x118] sm:%s189] %v338
                %v340 = vld [vmem:[%s196 + $0x21c] sm:%s189]
                %341 = vst [vmem:[%s197 + $0x11c] sm:%s189] %v340
                %v342 = vld [vmem:[%s196 + $0x220] sm:%s189]
                %343 = vst [vmem:[%s197 + $0x120] sm:%s189] %v342
                %v344 = vld [vmem:[%s196 + $0x224] sm:%s189]
                %345 = vst [vmem:[%s197 + $0x124] sm:%s189] %v344
                %v346 = vld [vmem:[%s196 + $0x228] sm:%s189]
                %347 = vst [vmem:[%s197 + $0x128] sm:%s189] %v346
                %v348 = vld [vmem:[%s196 + $0x22c] sm:%s189]
                %349 = vst [vmem:[%s197 + $0x12c] sm:%s189] %v348
                %v350 = vld [vmem:[%s196 + $0x230] sm:%s189]
                %351 = vst [vmem:[%s197 + $0x130] sm:%s189] %v350
                %v352 = vld [vmem:[%s196 + $0x234] sm:%s189]
                %353 = vst [vmem:[%s197 + $0x134] sm:%s189] %v352
                %v354 = vld [vmem:[%s196 + $0x238] sm:%s189]
                %355 = vst [vmem:[%s197 + $0x138] sm:%s189] %v354
                %v356 = vld [vmem:[%s196 + $0x23c] sm:%s189]
                %357 = vst [vmem:[%s197 + $0x13c] sm:%s189] %v356
                %v358 = vld [vmem:[%s196 + $0x280] sm:%s189]
                %359 = vst [vmem:[%s197 + $0x140] sm:%s189] %v358
                %v360 = vld [vmem:[%s196 + $0x284] sm:%s189]
                %361 = vst [vmem:[%s197 + $0x144] sm:%s189] %v360
                %v362 = vld [vmem:[%s196 + $0x288] sm:%s189]
                %363 = vst [vmem:[%s197 + $0x148] sm:%s189] %v362
                %v364 = vld [vmem:[%s196 + $0x28c] sm:%s189]
                %365 = vst [vmem:[%s197 + $0x14c] sm:%s189] %v364
                %v366 = vld [vmem:[%s196 + $0x290] sm:%s189]
                %367 = vst [vmem:[%s197 + $0x150] sm:%s189] %v366
                %v368 = vld [vmem:[%s196 + $0x294] sm:%s189]
                %369 = vst [vmem:[%s197 + $0x154] sm:%s189] %v368
                %v370 = vld [vmem:[%s196 + $0x298] sm:%s189]
                %371 = vst [vmem:[%s197 + $0x158] sm:%s189] %v370
                %v372 = vld [vmem:[%s196 + $0x29c] sm:%s189]
                %373 = vst [vmem:[%s197 + $0x15c] sm:%s189] %v372
                %v374 = vld [vmem:[%s196 + $0x2a0] sm:%s189]
                %375 = vst [vmem:[%s197 + $0x160] sm:%s189] %v374
                %v376 = vld [vmem:[%s196 + $0x2a4] sm:%s189]
                %377 = vst [vmem:[%s197 + $0x164] sm:%s189] %v376
                %v378 = vld [vmem:[%s196 + $0x2a8] sm:%s189]
                %379 = vst [vmem:[%s197 + $0x168] sm:%s189] %v378
                %v380 = vld [vmem:[%s196 + $0x2ac] sm:%s189]
                %381 = vst [vmem:[%s197 + $0x16c] sm:%s189] %v380
                %v382 = vld [vmem:[%s196 + $0x2b0] sm:%s189]
                %383 = vst [vmem:[%s197 + $0x170] sm:%s189] %v382
                %v384 = vld [vmem:[%s196 + $0x2b4] sm:%s189]
                %385 = vst [vmem:[%s197 + $0x174] sm:%s189] %v384
                %v386 = vld [vmem:[%s196 + $0x2b8] sm:%s189]
                %387 = vst [vmem:[%s197 + $0x178] sm:%s189] %v386
                %v388 = vld [vmem:[%s196 + $0x2bc] sm:%s189]
                %389 = vst [vmem:[%s197 + $0x17c] sm:%s189] %v388
                %v390 = vld [vmem:[%s196 + $0x300] sm:%s189]
                %391 = vst [vmem:[%s197 + $0x180] sm:%s189] %v390
                %v392 = vld [vmem:[%s196 + $0x304] sm:%s189]
                %393 = vst [vmem:[%s197 + $0x184] sm:%s189] %v392
                %v394 = vld [vmem:[%s196 + $0x308] sm:%s189]
                %395 = vst [vmem:[%s197 + $0x188] sm:%s189] %v394
                %v396 = vld [vmem:[%s196 + $0x30c] sm:%s189]
                %397 = vst [vmem:[%s197 + $0x18c] sm:%s189] %v396
                %v398 = vld [vmem:[%s196 + $0x310] sm:%s189]
                %399 = vst [vmem:[%s197 + $0x190] sm:%s189] %v398
                %v400 = vld [vmem:[%s196 + $0x314] sm:%s189]
                %401 = vst [vmem:[%s197 + $0x194] sm:%s189] %v400
                %v402 = vld [vmem:[%s196 + $0x318] sm:%s189]
                %403 = vst [vmem:[%s197 + $0x198] sm:%s189] %v402
                %v404 = vld [vmem:[%s196 + $0x31c] sm:%s189]
                %405 = vst [vmem:[%s197 + $0x19c] sm:%s189] %v404
                %v406 = vld [vmem:[%s196 + $0x320] sm:%s189]
                %407 = vst [vmem:[%s197 + $0x1a0] sm:%s189] %v406
                %v408 = vld [vmem:[%s196 + $0x324] sm:%s189]
                %409 = vst [vmem:[%s197 + $0x1a4] sm:%s189] %v408
                %v410 = vld [vmem:[%s196 + $0x328] sm:%s189]
                %411 = vst [vmem:[%s197 + $0x1a8] sm:%s189] %v410
                %v412 = vld [vmem:[%s196 + $0x32c] sm:%s189]
                %413 = vst [vmem:[%s197 + $0x1ac] sm:%s189] %v412
                %v414 = vld [vmem:[%s196 + $0x330] sm:%s189]
                %415 = vst [vmem:[%s197 + $0x1b0] sm:%s189] %v414
                %v416 = vld [vmem:[%s196 + $0x334] sm:%s189]
                %417 = vst [vmem:[%s197 + $0x1b4] sm:%s189] %v416
                %v418 = vld [vmem:[%s196 + $0x338] sm:%s189]
                %419 = vst [vmem:[%s197 + $0x1b8] sm:%s189] %v418
                %v420 = vld [vmem:[%s196 + $0x33c] sm:%s189]
                %421 = vst [vmem:[%s197 + $0x1bc] sm:%s189] %v420
                %v422 = vld [vmem:[%s196 + $0x380] sm:%s189]
                %423 = vst [vmem:[%s197 + $0x1c0] sm:%s189] %v422
                %v424 = vld [vmem:[%s196 + $0x384] sm:%s189]
                %425 = vst [vmem:[%s197 + $0x1c4] sm:%s189] %v424
                %v426 = vld [vmem:[%s196 + $0x388] sm:%s189]
                %427 = vst [vmem:[%s197 + $0x1c8] sm:%s189] %v426
                %v428 = vld [vmem:[%s196 + $0x38c] sm:%s189]
                %429 = vst [vmem:[%s197 + $0x1cc] sm:%s189] %v428
                %v430 = vld [vmem:[%s196 + $0x390] sm:%s189]
                %431 = vst [vmem:[%s197 + $0x1d0] sm:%s189] %v430
                %v432 = vld [vmem:[%s196 + $0x394] sm:%s189]
                %433 = vst [vmem:[%s197 + $0x1d4] sm:%s189] %v432
                %v434 = vld [vmem:[%s196 + $0x398] sm:%s189]
                %435 = vst [vmem:[%s197 + $0x1d8] sm:%s189] %v434
                %v436 = vld [vmem:[%s196 + $0x39c] sm:%s189]
                %437 = vst [vmem:[%s197 + $0x1dc] sm:%s189] %v436
                %v438 = vld [vmem:[%s196 + $0x3a0] sm:%s189]
                %439 = vst [vmem:[%s197 + $0x1e0] sm:%s189] %v438
                %v440 = vld [vmem:[%s196 + $0x3a4] sm:%s189]
                %441 = vst [vmem:[%s197 + $0x1e4] sm:%s189] %v440
                %v442 = vld [vmem:[%s196 + $0x3a8] sm:%s189]
                %443 = vst [vmem:[%s197 + $0x1e8] sm:%s189] %v442
                %v444 = vld [vmem:[%s196 + $0x3ac] sm:%s189]
                %445 = vst [vmem:[%s197 + $0x1ec] sm:%s189] %v444
                %v446 = vld [vmem:[%s196 + $0x3b0] sm:%s189]
                %447 = vst [vmem:[%s197 + $0x1f0] sm:%s189] %v446
                %v448 = vld [vmem:[%s196 + $0x3b4] sm:%s189]
                %449 = vst [vmem:[%s197 + $0x1f4] sm:%s189] %v448
                %v450 = vld [vmem:[%s196 + $0x3b8] sm:%s189]
                %451 = vst [vmem:[%s197 + $0x1f8] sm:%s189] %v450
                %v452 = vld [vmem:[%s196 + $0x3bc] sm:%s189]
                %453 = vst [vmem:[%s197 + $0x1fc] sm:%s189] %v452
              $region41: #{tpu_custom_call.1} parent=35 // loop_footer
                %s195 = sadd.s32 1, %s191
              $region42: #{tpu_custom_call.1} parent=35 // loop_footer_branch
                %190 = sbr.rel target = $region38
              $region43: #{tpu_custom_call.1} parent=35 // loop_exit
                _
            $region36: #{tpu_custom_call.1} parent=27 // pred_fallthru
              _
          $region28: #{tpu_custom_call.1} parent=23 // pred_fallthru
            _
          %730 = vnop
        $region24: #{tpu_custom_call.1} parent=19 // pred_fallthru
          _
        // Predicated region
        $region62: #{tpu_custom_call.1} parent=19 // pred_check
          %p731 = pneg %p73
        $region63: #{tpu_custom_call.1} parent=19 // pred_check_branch
          %733 = sbr.rel (%p731) target = $region65
        $region64: #{tpu_custom_call.1} parent=19 // pred_region
          %p734 = scmp.lt.s32.totalorder %s18, 1
          %s735 = scalar_select %p734, %s18, 1
          %p736 = scmp.lt.s32.totalorder %s19, 1
          %s737 = scalar_select %p736, %s19, 1
          %s738 = smul.addr %s735, 2
          %s739 = sadd.s32 %s737, %s738
          %s740 = smul.addr %s739, 4
          %s741 = scalar_lea.vmem %s1, %s740
        $region65: #{tpu_custom_call.1} parent=19 // pred_fallthru
          _
        // Predicated region
        $region66: #{tpu_custom_call.1} parent=19 // pred_check
          %p742 = pneg %p99
        $region67: #{tpu_custom_call.1} parent=19 // pred_check_branch
          %744 = sbr.rel (%p742) target = $region69
        $region68: #{tpu_custom_call.1} parent=19 // pred_region
          %p745 = scmp.lt.s32.totalorder %s18, 1
          %s746 = scalar_select %p745, %s18, 1
          %s747 = smul.addr %s746, 8
          %s748 = scalar_lea.vmem %s2, %s747
        $region69: #{tpu_custom_call.1} parent=19 // pred_fallthru
          _
      $region20: #{tpu_custom_call.1} parent=5 // pred_fallthru
        _
      %p749 = scmp.le.s32.totalorder 1, %s11
      %p750 = scmp.lt.s32.totalorder %s11, 5
      %p751 = pnand %p749, %p750
      %p752 = pneg %p751
      // Predicated region
      $region70: #{tpu_custom_call.1} parent=5 // pred_check
        _
      $region71: #{tpu_custom_call.1} parent=5 // pred_check_branch
        %754 = sbr.rel (%p751) target = $region73
      $region72: #{tpu_custom_call.1} parent=5 // pred_region
        %s755 = ssub.s32 %s11, 1
        %s756 = sand.u32 %s38, 1
        %s757 = sand.u32 %s38, 1
        %s758 = smul.addr %s757, 512
        %s759 = scalar_lea.vmem [#allocation4], %s758
        // Predicated region
        $region74: #{tpu_custom_call.1} parent=72 // pred_check
          %p760 = pneg %p51
        $region75: #{tpu_custom_call.1} parent=72 // pred_check_branch
          %762 = sbr.rel (%p760) target = $region77
        $region76: #{tpu_custom_call.1} parent=72 // pred_region
          _
        $region77: #{tpu_custom_call.1} parent=72 // pred_fallthru
          _
        %s763 = sand.u32 %s38, 1
        %s764 = sand.u32 %s38, 1
        %s765 = smul.addr %s764, 512
        %s766 = scalar_lea.vmem [#allocation4], %s765
        %p767 = pneg %p51
        %p768 = pneg %p48
        %p769 = scmp.lt.s32.totalorder %s20, 1
        %s770 = scalar_select %p769, %s20, 1
        %p771 = scmp.lt.s32.totalorder %s21, 1
        %s772 = scalar_select %p771, %s21, 1
        %s773 = smul.addr %s770, 2
        %s774 = sadd.s32 %s772, %s773
        %s775 = smul.addr %s774, 4
        %s776 = scalar_lea.vmem %s1, %s775
        %p777 = pneg %p79
        %p778 = pneg %p76
        %p779 = scmp.lt.s32.totalorder %s20, 1
        %s780 = scalar_select %p779, %s20, 1
        %s781 = smul.addr %s780, 8
        %s782 = scalar_lea.vmem %s2, %s781
        %p783 = pneg %p105
        %p784 = pneg %p102
        %p785 = pneg %p126
        %p786 = pneg %p123
        %p787 = pneg %p147
        %p788 = pneg %p144
        %s789 = smul.u32 8, %s20
        %s790 = smul.u32 16, %s21
        %p791 = scmp.lt.s32.totalorder %s20, 1
        %s792 = scalar_select %p791, %s20, 1
        %p793 = scmp.lt.s32.totalorder %s21, 1
        %s794 = scalar_select %p793, %s21, 1
        %s795 = smul.addr %s792, 2
        %s796 = sadd.s32 %s794, %s795
        %s797 = smul.addr %s796, 4
        %s798 = scalar_lea.vmem %s1, %s797
        %p799 = scmp.lt.s32.totalorder %s20, 1
        %s800 = scalar_select %p799, %s20, 1
        %s801 = smul.addr %s800, 8
        %s802 = scalar_lea.vmem %s2, %s801
        %p803 = scmp.eq.s32.totalorder %s20, 0
        %p804 = scmp.eq.s32.totalorder %s21, 0
        %p805 = pnand %p803, %p804
        %p806 = pneg %p805
        // Predicated region
        $region78: #{tpu_custom_call.1} parent=72 // pred_check
          _
        $region79: #{tpu_custom_call.1} parent=72 // pred_check_branch
          %808 = sbr.rel (%p805) target = $region81
        $region80: #{tpu_custom_call.1} parent=72 // pred_region
          %s809 = scalar_lea.smem [#allocation3], 0
          %810 = sst [smem:[%s809]] 0.0
        $region81: #{tpu_custom_call.1} parent=72 // pred_fallthru
          _
        // Predicated region
        $region82: #{tpu_custom_call.1} parent=72 // pred_check
          %p811 = pneg %p804
        $region83: #{tpu_custom_call.1} parent=72 // pred_check_branch
          %813 = sbr.rel (%p811) target = $region85
        $region84: #{tpu_custom_call.1} parent=72 // pred_region
          %vm814 = vcmask 97280
          %815 = vst.msk [vmem:[#allocation2] sm:$0xff] %vm814, 0.0
        $region85: #{tpu_custom_call.1} parent=72 // pred_fallthru
          _
        %v816 = vld [vmem:[%s759] sm:$0xf]
        %v817 = vld [vmem:[%s759 + $0x4] sm:$0xf]
        %v818 = vld [vmem:[%s759 + $0x8] sm:$0xf]
        %v819 = vld [vmem:[%s759 + $0xc] sm:$0xf]
        %v820 = vld [vmem:[%s759 + $0x10] sm:$0xf]
        %v821 = vld [vmem:[%s759 + $0x14] sm:$0xf]
        %v822 = vld [vmem:[%s759 + $0x18] sm:$0xf]
        %v823 = vld [vmem:[%s759 + $0x1c] sm:$0xf]
        %v824 = vld [vmem:[%s759 + $0x20] sm:$0xf]
        %v825 = vld [vmem:[%s759 + $0x24] sm:$0xf]
        %v826 = vld [vmem:[%s759 + $0x28] sm:$0xf]
        %v827 = vld [vmem:[%s759 + $0x2c] sm:$0xf]
        %v828 = vld [vmem:[%s759 + $0x30] sm:$0xf]
        %v829 = vld [vmem:[%s759 + $0x34] sm:$0xf]
        %v830 = vld [vmem:[%s759 + $0x38] sm:$0xf]
        %v831 = vld [vmem:[%s759 + $0x3c] sm:$0xf]
        %v832 = vld [vmem:[%s759 + $0x40] sm:$0xf]
        %v833 = vld [vmem:[%s759 + $0x44] sm:$0xf]
        %v834 = vld [vmem:[%s759 + $0x48] sm:$0xf]
        %v835 = vld [vmem:[%s759 + $0x4c] sm:$0xf]
        %v836 = vld [vmem:[%s759 + $0x50] sm:$0xf]
        %v837 = vld [vmem:[%s759 + $0x54] sm:$0xf]
        %v838 = vld [vmem:[%s759 + $0x58] sm:$0xf]
        %v839 = vld [vmem:[%s759 + $0x5c] sm:$0xf]
        %v840 = vld [vmem:[%s759 + $0x60] sm:$0xf]
        %v841 = vld [vmem:[%s759 + $0x64] sm:$0xf]
        %v842 = vld [vmem:[%s759 + $0x68] sm:$0xf]
        %v843 = vld [vmem:[%s759 + $0x6c] sm:$0xf]
        %v844 = vld [vmem:[%s759 + $0x70] sm:$0xf]
        %v845 = vld [vmem:[%s759 + $0x74] sm:$0xf]
        %v846 = vld [vmem:[%s759 + $0x78] sm:$0xf]
        %v847 = vld [vmem:[%s759 + $0x7c] sm:$0xf]
        %v848 = vld [vmem:[%s759 + $0x80] sm:$0xf]
        %v849 = vld [vmem:[%s759 + $0x84] sm:$0xf]
        %v850 = vld [vmem:[%s759 + $0x88] sm:$0xf]
        %v851 = vld [vmem:[%s759 + $0x8c] sm:$0xf]
        %v852 = vld [vmem:[%s759 + $0x90] sm:$0xf]
        %v853 = vld [vmem:[%s759 + $0x94] sm:$0xf]
        %v854 = vld [vmem:[%s759 + $0x98] sm:$0xf]
        %v855 = vld [vmem:[%s759 + $0x9c] sm:$0xf]
        %v856 = vld [vmem:[%s759 + $0xa0] sm:$0xf]
        %v857 = vld [vmem:[%s759 + $0xa4] sm:$0xf]
        %v858 = vld [vmem:[%s759 + $0xa8] sm:$0xf]
        %v859 = vld [vmem:[%s759 + $0xac] sm:$0xf]
        %v860 = vld [vmem:[%s759 + $0xb0] sm:$0xf]
        %v861 = vld [vmem:[%s759 + $0xb4] sm:$0xf]
        %v862 = vld [vmem:[%s759 + $0xb8] sm:$0xf]
        %v863 = vld [vmem:[%s759 + $0xbc] sm:$0xf]
        %v864 = vld [vmem:[%s759 + $0xc0] sm:$0xf]
        %v865 = vld [vmem:[%s759 + $0xc4] sm:$0xf]
        %v866 = vld [vmem:[%s759 + $0xc8] sm:$0xf]
        %v867 = vld [vmem:[%s759 + $0xcc] sm:$0xf]
        %v868 = vld [vmem:[%s759 + $0xd0] sm:$0xf]
        %v869 = vld [vmem:[%s759 + $0xd4] sm:$0xf]
        %v870 = vld [vmem:[%s759 + $0xd8] sm:$0xf]
        %v871 = vld [vmem:[%s759 + $0xdc] sm:$0xf]
        %v872 = vld [vmem:[%s759 + $0xe0] sm:$0xf]
        %v873 = vld [vmem:[%s759 + $0xe4] sm:$0xf]
        %v874 = vld [vmem:[%s759 + $0xe8] sm:$0xf]
        %v875 = vld [vmem:[%s759 + $0xec] sm:$0xf]
        %v876 = vld [vmem:[%s759 + $0xf0] sm:$0xf]
        %v877 = vld [vmem:[%s759 + $0xf4] sm:$0xf]
        %v878 = vld [vmem:[%s759 + $0xf8] sm:$0xf]
        %v879 = vld [vmem:[%s759 + $0xfc] sm:$0xf]
        %v880 = vld [vmem:[%s759 + $0x100] sm:$0xf]
        %v881 = vld [vmem:[%s759 + $0x104] sm:$0xf]
        %v882 = vld [vmem:[%s759 + $0x108] sm:$0xf]
        %v883 = vld [vmem:[%s759 + $0x10c] sm:$0xf]
        %v884 = vld [vmem:[%s759 + $0x110] sm:$0xf]
        %v885 = vld [vmem:[%s759 + $0x114] sm:$0xf]
        %v886 = vld [vmem:[%s759 + $0x118] sm:$0xf]
        %v887 = vld [vmem:[%s759 + $0x11c] sm:$0xf]
        %v888 = vld [vmem:[%s759 + $0x120] sm:$0xf]
        %v889 = vld [vmem:[%s759 + $0x124] sm:$0xf]
        %v890 = vld [vmem:[%s759 + $0x128] sm:$0xf]
        %v891 = vld [vmem:[%s759 + $0x12c] sm:$0xf]
        %v892 = vld [vmem:[%s759 + $0x130] sm:$0xf]
        %v893 = vld [vmem:[%s759 + $0x134] sm:$0xf]
        %v894 = vld [vmem:[%s759 + $0x138] sm:$0xf]
        %v895 = vld [vmem:[%s759 + $0x13c] sm:$0xf]
        %v896 = vld [vmem:[%s759 + $0x140] sm:$0xf]
        %v897 = vld [vmem:[%s759 + $0x144] sm:$0xf]
        %v898 = vld [vmem:[%s759 + $0x148] sm:$0xf]
        %v899 = vld [vmem:[%s759 + $0x14c] sm:$0xf]
        %v900 = vld [vmem:[%s759 + $0x150] sm:$0xf]
        %v901 = vld [vmem:[%s759 + $0x154] sm:$0xf]
        %v902 = vld [vmem:[%s759 + $0x158] sm:$0xf]
        %v903 = vld [vmem:[%s759 + $0x15c] sm:$0xf]
        %v904 = vld [vmem:[%s759 + $0x160] sm:$0xf]
        %v905 = vld [vmem:[%s759 + $0x164] sm:$0xf]
        %v906 = vld [vmem:[%s759 + $0x168] sm:$0xf]
        %v907 = vld [vmem:[%s759 + $0x16c] sm:$0xf]
        %v908 = vld [vmem:[%s759 + $0x170] sm:$0xf]
        %v909 = vld [vmem:[%s759 + $0x174] sm:$0xf]
        %v910 = vld [vmem:[%s759 + $0x178] sm:$0xf]
        %v911 = vld [vmem:[%s759 + $0x17c] sm:$0xf]
        %v912 = vld [vmem:[%s759 + $0x180] sm:$0xf]
        %v913 = vld [vmem:[%s759 + $0x184] sm:$0xf]
        %v914 = vld [vmem:[%s759 + $0x188] sm:$0xf]
        %v915 = vld [vmem:[%s759 + $0x18c] sm:$0xf]
        %v916 = vld [vmem:[%s759 + $0x190] sm:$0xf]
        %v917 = vld [vmem:[%s759 + $0x194] sm:$0xf]
        %v918 = vld [vmem:[%s759 + $0x198] sm:$0xf]
        %v919 = vld [vmem:[%s759 + $0x19c] sm:$0xf]
        %v920 = vld [vmem:[%s759 + $0x1a0] sm:$0xf]
        %v921 = vld [vmem:[%s759 + $0x1a4] sm:$0xf]
        %v922 = vld [vmem:[%s759 + $0x1a8] sm:$0xf]
        %v923 = vld [vmem:[%s759 + $0x1ac] sm:$0xf]
        %v924 = vld [vmem:[%s759 + $0x1b0] sm:$0xf]
        %v925 = vld [vmem:[%s759 + $0x1b4] sm:$0xf]
        %v926 = vld [vmem:[%s759 + $0x1b8] sm:$0xf]
        %v927 = vld [vmem:[%s759 + $0x1bc] sm:$0xf]
        %v928 = vld [vmem:[%s759 + $0x1c0] sm:$0xf]
        %v929 = vld [vmem:[%s759 + $0x1c4] sm:$0xf]
        %v930 = vld [vmem:[%s759 + $0x1c8] sm:$0xf]
        %v931 = vld [vmem:[%s759 + $0x1cc] sm:$0xf]
        %v932 = vld [vmem:[%s759 + $0x1d0] sm:$0xf]
        %v933 = vld [vmem:[%s759 + $0x1d4] sm:$0xf]
        %v934 = vld [vmem:[%s759 + $0x1d8] sm:$0xf]
        %v935 = vld [vmem:[%s759 + $0x1dc] sm:$0xf]
        %v936 = vld [vmem:[%s759 + $0x1e0] sm:$0xf]
        %v937 = vld [vmem:[%s759 + $0x1e4] sm:$0xf]
        %v938 = vld [vmem:[%s759 + $0x1e8] sm:$0xf]
        %v939 = vld [vmem:[%s759 + $0x1ec] sm:$0xf]
        %v940 = vld [vmem:[%s759 + $0x1f0] sm:$0xf]
        %v941 = vld [vmem:[%s759 + $0x1f4] sm:$0xf]
        %v942 = vld [vmem:[%s759 + $0x1f8] sm:$0xf]
        %v943 = vld [vmem:[%s759 + $0x1fc] sm:$0xf]
        %v944 = vunpack.c.l.bf16 %v816
        %v945 = vunpack.c.l.bf16 %v817
        %v946 = vunpack.c.l.bf16 %v818
        %v947 = vunpack.c.l.bf16 %v819
        %v948 = vunpack.c.l.bf16 %v820
        %v949 = vunpack.c.l.bf16 %v821
        %v950 = vunpack.c.l.bf16 %v822
        %v951 = vunpack.c.l.bf16 %v823
        %v952 = vunpack.c.l.bf16 %v824
        %v953 = vunpack.c.l.bf16 %v825
        %v954 = vunpack.c.l.bf16 %v826
        %v955 = vunpack.c.l.bf16 %v827
        %v956 = vunpack.c.l.bf16 %v828
        %v957 = vunpack.c.l.bf16 %v829
        %v958 = vunpack.c.l.bf16 %v830
        %v959 = vunpack.c.l.bf16 %v831
        %v960 = vunpack.c.l.bf16 %v832
        %v961 = vunpack.c.l.bf16 %v833
        %v962 = vunpack.c.l.bf16 %v834
        %v963 = vunpack.c.l.bf16 %v835
        %v964 = vunpack.c.l.bf16 %v836
        %v965 = vunpack.c.l.bf16 %v837
        %v966 = vunpack.c.l.bf16 %v838
        %v967 = vunpack.c.l.bf16 %v839
        %v968 = vunpack.c.l.bf16 %v840
        %v969 = vunpack.c.l.bf16 %v841
        %v970 = vunpack.c.l.bf16 %v842
        %v971 = vunpack.c.l.bf16 %v843
        %v972 = vunpack.c.l.bf16 %v844
        %v973 = vunpack.c.l.bf16 %v845
        %v974 = vunpack.c.l.bf16 %v846
        %v975 = vunpack.c.l.bf16 %v847
        %v976 = vunpack.c.l.bf16 %v848
        %v977 = vunpack.c.l.bf16 %v849
        %v978 = vunpack.c.l.bf16 %v850
        %v979 = vunpack.c.l.bf16 %v851
        %v980 = vunpack.c.l.bf16 %v852
        %v981 = vunpack.c.l.bf16 %v853
        %v982 = vunpack.c.l.bf16 %v854
        %v983 = vunpack.c.l.bf16 %v855
        %v984 = vunpack.c.l.bf16 %v856
        %v985 = vunpack.c.l.bf16 %v857
        %v986 = vunpack.c.l.bf16 %v858
        %v987 = vunpack.c.l.bf16 %v859
        %v988 = vunpack.c.l.bf16 %v860
        %v989 = vunpack.c.l.bf16 %v861
        %v990 = vunpack.c.l.bf16 %v862
        %v991 = vunpack.c.l.bf16 %v863
        %v992 = vunpack.c.l.bf16 %v864
        %v993 = vunpack.c.l.bf16 %v865
        %v994 = vunpack.c.l.bf16 %v866
        %v995 = vunpack.c.l.bf16 %v867
        %v996 = vunpack.c.l.bf16 %v868
        %v997 = vunpack.c.l.bf16 %v869
        %v998 = vunpack.c.l.bf16 %v870
        %v999 = vunpack.c.l.bf16 %v871
        %v1000 = vunpack.c.l.bf16 %v872
        %v1001 = vunpack.c.l.bf16 %v873
        %v1002 = vunpack.c.l.bf16 %v874
        %v1003 = vunpack.c.l.bf16 %v875
        %v1004 = vunpack.c.l.bf16 %v876
        %v1005 = vunpack.c.l.bf16 %v877
        %v1006 = vunpack.c.l.bf16 %v878
        %v1007 = vunpack.c.l.bf16 %v879
        %v1008 = vunpack.c.l.bf16 %v880
        %v1009 = vunpack.c.l.bf16 %v881
        %v1010 = vunpack.c.l.bf16 %v882
        %v1011 = vunpack.c.l.bf16 %v883
        %v1012 = vunpack.c.l.bf16 %v884
        %v1013 = vunpack.c.l.bf16 %v885
        %v1014 = vunpack.c.l.bf16 %v886
        %v1015 = vunpack.c.l.bf16 %v887
        %v1016 = vunpack.c.l.bf16 %v888
        %v1017 = vunpack.c.l.bf16 %v889
        %v1018 = vunpack.c.l.bf16 %v890
        %v1019 = vunpack.c.l.bf16 %v891
        %v1020 = vunpack.c.l.bf16 %v892
        %v1021 = vunpack.c.l.bf16 %v893
        %v1022 = vunpack.c.l.bf16 %v894
        %v1023 = vunpack.c.l.bf16 %v895
        %v1024 = vunpack.c.l.bf16 %v896
        %v1025 = vunpack.c.l.bf16 %v897
        %v1026 = vunpack.c.l.bf16 %v898
        %v1027 = vunpack.c.l.bf16 %v899
        %v1028 = vunpack.c.l.bf16 %v900
        %v1029 = vunpack.c.l.bf16 %v901
        %v1030 = vunpack.c.l.bf16 %v902
        %v1031 = vunpack.c.l.bf16 %v903
        %v1032 = vunpack.c.l.bf16 %v904
        %v1033 = vunpack.c.l.bf16 %v905
        %v1034 = vunpack.c.l.bf16 %v906
        %v1035 = vunpack.c.l.bf16 %v907
        %v1036 = vunpack.c.l.bf16 %v908
        %v1037 = vunpack.c.l.bf16 %v909
        %v1038 = vunpack.c.l.bf16 %v910
        %v1039 = vunpack.c.l.bf16 %v911
        %v1040 = vunpack.c.l.bf16 %v912
        %v1041 = vunpack.c.l.bf16 %v913
        %v1042 = vunpack.c.l.bf16 %v914
        %v1043 = vunpack.c.l.bf16 %v915
        %v1044 = vunpack.c.l.bf16 %v916
        %v1045 = vunpack.c.l.bf16 %v917
        %v1046 = vunpack.c.l.bf16 %v918
        %v1047 = vunpack.c.l.bf16 %v919
        %v1048 = vunpack.c.l.bf16 %v920
        %v1049 = vunpack.c.l.bf16 %v921
        %v1050 = vunpack.c.l.bf16 %v922
        %v1051 = vunpack.c.l.bf16 %v923
        %v1052 = vunpack.c.l.bf16 %v924
        %v1053 = vunpack.c.l.bf16 %v925
        %v1054 = vunpack.c.l.bf16 %v926
        %v1055 = vunpack.c.l.bf16 %v927
        %v1056 = vunpack.c.l.bf16 %v928
        %v1057 = vunpack.c.l.bf16 %v929
        %v1058 = vunpack.c.l.bf16 %v930
        %v1059 = vunpack.c.l.bf16 %v931
        %v1060 = vunpack.c.l.bf16 %v932
        %v1061 = vunpack.c.l.bf16 %v933
        %v1062 = vunpack.c.l.bf16 %v934
        %v1063 = vunpack.c.l.bf16 %v935
        %v1064 = vunpack.c.l.bf16 %v936
        %v1065 = vunpack.c.l.bf16 %v937
        %v1066 = vunpack.c.l.bf16 %v938
        %v1067 = vunpack.c.l.bf16 %v939
        %v1068 = vunpack.c.l.bf16 %v940
        %v1069 = vunpack.c.l.bf16 %v941
        %v1070 = vunpack.c.l.bf16 %v942
        %v1071 = vunpack.c.l.bf16 %v943
        %vm1072 = vcmask 97280
        %v1073 = vsel %vm1072, %v944, -inf
        %1074 = vmax.xlane.f32.xlu0 %v1073
        %v1075 = vpop.xlane.xlu0 %1074
        %v1076 = vsel %vm1072, %v945, -inf
        %1077 = vmax.xlane.f32.xlu0 %v1076
        %v1078 = vpop.xlane.xlu0 %1077
        %v1079 = vsel %vm1072, %v946, -inf
        %1080 = vmax.xlane.f32.xlu0 %v1079
        %v1081 = vpop.xlane.xlu0 %1080
        %v1082 = vsel %vm1072, %v947, -inf
        %1083 = vmax.xlane.f32.xlu0 %v1082
        %v1084 = vpop.xlane.xlu0 %1083
        %v1085 = vsel %vm1072, %v948, -inf
        %1086 = vmax.xlane.f32.xlu0 %v1085
        %v1087 = vpop.xlane.xlu0 %1086
        %v1088 = vsel %vm1072, %v949, -inf
        %1089 = vmax.xlane.f32.xlu0 %v1088
        %v1090 = vpop.xlane.xlu0 %1089
        %v1091 = vsel %vm1072, %v950, -inf
        %1092 = vmax.xlane.f32.xlu0 %v1091
        %v1093 = vpop.xlane.xlu0 %1092
        %v1094 = vsel %vm1072, %v951, -inf
        %1095 = vmax.xlane.f32.xlu0 %v1094
        %v1096 = vpop.xlane.xlu0 %1095
        %v1097 = vsel %vm1072, %v952, -inf
        %1098 = vmax.xlane.f32.xlu0 %v1097
        %v1099 = vpop.xlane.xlu0 %1098
        %v1100 = vsel %vm1072, %v953, -inf
        %1101 = vmax.xlane.f32.xlu0 %v1100
        %v1102 = vpop.xlane.xlu0 %1101
        %v1103 = vsel %vm1072, %v954, -inf
        %1104 = vmax.xlane.f32.xlu0 %v1103
        %v1105 = vpop.xlane.xlu0 %1104
        %v1106 = vsel %vm1072, %v955, -inf
        %1107 = vmax.xlane.f32.xlu0 %v1106
        %v1108 = vpop.xlane.xlu0 %1107
        %v1109 = vsel %vm1072, %v956, -inf
        %1110 = vmax.xlane.f32.xlu0 %v1109
        %v1111 = vpop.xlane.xlu0 %1110
        %v1112 = vsel %vm1072, %v957, -inf
        %1113 = vmax.xlane.f32.xlu0 %v1112
        %v1114 = vpop.xlane.xlu0 %1113
        %v1115 = vsel %vm1072, %v958, -inf
        %1116 = vmax.xlane.f32.xlu0 %v1115
        %v1117 = vpop.xlane.xlu0 %1116
        %v1118 = vsel %vm1072, %v959, -inf
        %1119 = vmax.xlane.f32.xlu0 %v1118
        %v1120 = vpop.xlane.xlu0 %1119
        %v1121 = vsel %vm1072, %v960, -inf
        %1122 = vmax.xlane.f32.xlu0 %v1121
        %v1123 = vpop.xlane.xlu0 %1122
        %v1124 = vsel %vm1072, %v961, -inf
        %1125 = vmax.xlane.f32.xlu0 %v1124
        %v1126 = vpop.xlane.xlu0 %1125
        %v1127 = vsel %vm1072, %v962, -inf
        %1128 = vmax.xlane.f32.xlu0 %v1127
        %v1129 = vpop.xlane.xlu0 %1128
        %v1130 = vsel %vm1072, %v963, -inf
        %1131 = vmax.xlane.f32.xlu0 %v1130
        %v1132 = vpop.xlane.xlu0 %1131
        %v1133 = vsel %vm1072, %v964, -inf
        %1134 = vmax.xlane.f32.xlu0 %v1133
        %v1135 = vpop.xlane.xlu0 %1134
        %v1136 = vsel %vm1072, %v965, -inf
        %1137 = vmax.xlane.f32.xlu0 %v1136
        %v1138 = vpop.xlane.xlu0 %1137
        %v1139 = vsel %vm1072, %v966, -inf
        %1140 = vmax.xlane.f32.xlu0 %v1139
        %v1141 = vpop.xlane.xlu0 %1140
        %v1142 = vsel %vm1072, %v967, -inf
        %1143 = vmax.xlane.f32.xlu0 %v1142
        %v1144 = vpop.xlane.xlu0 %1143
        %v1145 = vsel %vm1072, %v968, -inf
        %1146 = vmax.xlane.f32.xlu0 %v1145
        %v1147 = vpop.xlane.xlu0 %1146
        %v1148 = vsel %vm1072, %v969, -inf
        %1149 = vmax.xlane.f32.xlu0 %v1148
        %v1150 = vpop.xlane.xlu0 %1149
        %v1151 = vsel %vm1072, %v970, -inf
        %1152 = vmax.xlane.f32.xlu0 %v1151
        %v1153 = vpop.xlane.xlu0 %1152
        %v1154 = vsel %vm1072, %v971, -inf
        %1155 = vmax.xlane.f32.xlu0 %v1154
        %v1156 = vpop.xlane.xlu0 %1155
        %v1157 = vsel %vm1072, %v972, -inf
        %1158 = vmax.xlane.f32.xlu0 %v1157
        %v1159 = vpop.xlane.xlu0 %1158
        %v1160 = vsel %vm1072, %v973, -inf
        %1161 = vmax.xlane.f32.xlu0 %v1160
        %v1162 = vpop.xlane.xlu0 %1161
        %v1163 = vsel %vm1072, %v974, -inf
        %1164 = vmax.xlane.f32.xlu0 %v1163
        %v1165 = vpop.xlane.xlu0 %1164
        %v1166 = vsel %vm1072, %v975, -inf
        %1167 = vmax.xlane.f32.xlu0 %v1166
        %v1168 = vpop.xlane.xlu0 %1167
        %v1169 = vsel %vm1072, %v976, -inf
        %1170 = vmax.xlane.f32.xlu0 %v1169
        %v1171 = vpop.xlane.xlu0 %1170
        %v1172 = vsel %vm1072, %v977, -inf
        %1173 = vmax.xlane.f32.xlu0 %v1172
        %v1174 = vpop.xlane.xlu0 %1173
        %v1175 = vsel %vm1072, %v978, -inf
        %1176 = vmax.xlane.f32.xlu0 %v1175
        %v1177 = vpop.xlane.xlu0 %1176
        %v1178 = vsel %vm1072, %v979, -inf
        %1179 = vmax.xlane.f32.xlu0 %v1178
        %v1180 = vpop.xlane.xlu0 %1179
        %v1181 = vsel %vm1072, %v980, -inf
        %1182 = vmax.xlane.f32.xlu0 %v1181
        %v1183 = vpop.xlane.xlu0 %1182
        %v1184 = vsel %vm1072, %v981, -inf
        %1185 = vmax.xlane.f32.xlu0 %v1184
        %v1186 = vpop.xlane.xlu0 %1185
        %v1187 = vsel %vm1072, %v982, -inf
        %1188 = vmax.xlane.f32.xlu0 %v1187
        %v1189 = vpop.xlane.xlu0 %1188
        %v1190 = vsel %vm1072, %v983, -inf
        %1191 = vmax.xlane.f32.xlu0 %v1190
        %v1192 = vpop.xlane.xlu0 %1191
        %v1193 = vsel %vm1072, %v984, -inf
        %1194 = vmax.xlane.f32.xlu0 %v1193
        %v1195 = vpop.xlane.xlu0 %1194
        %v1196 = vsel %vm1072, %v985, -inf
        %1197 = vmax.xlane.f32.xlu0 %v1196
        %v1198 = vpop.xlane.xlu0 %1197
        %v1199 = vsel %vm1072, %v986, -inf
        %1200 = vmax.xlane.f32.xlu0 %v1199
        %v1201 = vpop.xlane.xlu0 %1200
        %v1202 = vsel %vm1072, %v987, -inf
        %1203 = vmax.xlane.f32.xlu0 %v1202
        %v1204 = vpop.xlane.xlu0 %1203
        %v1205 = vsel %vm1072, %v988, -inf
        %1206 = vmax.xlane.f32.xlu0 %v1205
        %v1207 = vpop.xlane.xlu0 %1206
        %v1208 = vsel %vm1072, %v989, -inf
        %1209 = vmax.xlane.f32.xlu0 %v1208
        %v1210 = vpop.xlane.xlu0 %1209
        %v1211 = vsel %vm1072, %v990, -inf
        %1212 = vmax.xlane.f32.xlu0 %v1211
        %v1213 = vpop.xlane.xlu0 %1212
        %v1214 = vsel %vm1072, %v991, -inf
        %1215 = vmax.xlane.f32.xlu0 %v1214
        %v1216 = vpop.xlane.xlu0 %1215
        %v1217 = vsel %vm1072, %v992, -inf
        %1218 = vmax.xlane.f32.xlu0 %v1217
        %v1219 = vpop.xlane.xlu0 %1218
        %v1220 = vsel %vm1072, %v993, -inf
        %1221 = vmax.xlane.f32.xlu0 %v1220
        %v1222 = vpop.xlane.xlu0 %1221
        %v1223 = vsel %vm1072, %v994, -inf
        %1224 = vmax.xlane.f32.xlu0 %v1223
        %v1225 = vpop.xlane.xlu0 %1224
        %v1226 = vsel %vm1072, %v995, -inf
        %1227 = vmax.xlane.f32.xlu0 %v1226
        %v1228 = vpop.xlane.xlu0 %1227
        %v1229 = vsel %vm1072, %v996, -inf
        %1230 = vmax.xlane.f32.xlu0 %v1229
        %v1231 = vpop.xlane.xlu0 %1230
        %v1232 = vsel %vm1072, %v997, -inf
        %1233 = vmax.xlane.f32.xlu0 %v1232
        %v1234 = vpop.xlane.xlu0 %1233
        %v1235 = vsel %vm1072, %v998, -inf
        %1236 = vmax.xlane.f32.xlu0 %v1235
        %v1237 = vpop.xlane.xlu0 %1236
        %v1238 = vsel %vm1072, %v999, -inf
        %1239 = vmax.xlane.f32.xlu0 %v1238
        %v1240 = vpop.xlane.xlu0 %1239
        %v1241 = vsel %vm1072, %v1000, -inf
        %1242 = vmax.xlane.f32.xlu0 %v1241
        %v1243 = vpop.xlane.xlu0 %1242
        %v1244 = vsel %vm1072, %v1001, -inf
        %1245 = vmax.xlane.f32.xlu0 %v1244
        %v1246 = vpop.xlane.xlu0 %1245
        %v1247 = vsel %vm1072, %v1002, -inf
        %1248 = vmax.xlane.f32.xlu0 %v1247
        %v1249 = vpop.xlane.xlu0 %1248
        %v1250 = vsel %vm1072, %v1003, -inf
        %1251 = vmax.xlane.f32.xlu0 %v1250
        %v1252 = vpop.xlane.xlu0 %1251
        %v1253 = vsel %vm1072, %v1004, -inf
        %1254 = vmax.xlane.f32.xlu0 %v1253
        %v1255 = vpop.xlane.xlu0 %1254
        %v1256 = vsel %vm1072, %v1005, -inf
        %1257 = vmax.xlane.f32.xlu0 %v1256
        %v1258 = vpop.xlane.xlu0 %1257
        %v1259 = vsel %vm1072, %v1006, -inf
        %1260 = vmax.xlane.f32.xlu0 %v1259
        %v1261 = vpop.xlane.xlu0 %1260
        %v1262 = vsel %vm1072, %v1007, -inf
        %1263 = vmax.xlane.f32.xlu0 %v1262
        %v1264 = vpop.xlane.xlu0 %1263
        %v1265 = vsel %vm1072, %v1008, -inf
        %1266 = vmax.xlane.f32.xlu0 %v1265
        %v1267 = vpop.xlane.xlu0 %1266
        %v1268 = vsel %vm1072, %v1009, -inf
        %1269 = vmax.xlane.f32.xlu0 %v1268
        %v1270 = vpop.xlane.xlu0 %1269
        %v1271 = vsel %vm1072, %v1010, -inf
        %1272 = vmax.xlane.f32.xlu0 %v1271
        %v1273 = vpop.xlane.xlu0 %1272
        %v1274 = vsel %vm1072, %v1011, -inf
        %1275 = vmax.xlane.f32.xlu0 %v1274
        %v1276 = vpop.xlane.xlu0 %1275
        %v1277 = vsel %vm1072, %v1012, -inf
        %1278 = vmax.xlane.f32.xlu0 %v1277
        %v1279 = vpop.xlane.xlu0 %1278
        %v1280 = vsel %vm1072, %v1013, -inf
        %1281 = vmax.xlane.f32.xlu0 %v1280
        %v1282 = vpop.xlane.xlu0 %1281
        %v1283 = vsel %vm1072, %v1014, -inf
        %1284 = vmax.xlane.f32.xlu0 %v1283
        %v1285 = vpop.xlane.xlu0 %1284
        %v1286 = vsel %vm1072, %v1015, -inf
        %1287 = vmax.xlane.f32.xlu0 %v1286
        %v1288 = vpop.xlane.xlu0 %1287
        %v1289 = vsel %vm1072, %v1016, -inf
        %1290 = vmax.xlane.f32.xlu0 %v1289
        %v1291 = vpop.xlane.xlu0 %1290
        %v1292 = vsel %vm1072, %v1017, -inf
        %1293 = vmax.xlane.f32.xlu0 %v1292
        %v1294 = vpop.xlane.xlu0 %1293
        %v1295 = vsel %vm1072, %v1018, -inf
        %1296 = vmax.xlane.f32.xlu0 %v1295
        %v1297 = vpop.xlane.xlu0 %1296
        %v1298 = vsel %vm1072, %v1019, -inf
        %1299 = vmax.xlane.f32.xlu0 %v1298
        %v1300 = vpop.xlane.xlu0 %1299
        %v1301 = vsel %vm1072, %v1020, -inf
        %1302 = vmax.xlane.f32.xlu0 %v1301
        %v1303 = vpop.xlane.xlu0 %1302
        %v1304 = vsel %vm1072, %v1021, -inf
        %1305 = vmax.xlane.f32.xlu0 %v1304
        %v1306 = vpop.xlane.xlu0 %1305
        %v1307 = vsel %vm1072, %v1022, -inf
        %1308 = vmax.xlane.f32.xlu0 %v1307
        %v1309 = vpop.xlane.xlu0 %1308
        %v1310 = vsel %vm1072, %v1023, -inf
        %1311 = vmax.xlane.f32.xlu0 %v1310
        %v1312 = vpop.xlane.xlu0 %1311
        %v1313 = vsel %vm1072, %v1024, -inf
        %1314 = vmax.xlane.f32.xlu0 %v1313
        %v1315 = vpop.xlane.xlu0 %1314
        %v1316 = vsel %vm1072, %v1025, -inf
        %1317 = vmax.xlane.f32.xlu0 %v1316
        %v1318 = vpop.xlane.xlu0 %1317
        %v1319 = vsel %vm1072, %v1026, -inf
        %1320 = vmax.xlane.f32.xlu0 %v1319
        %v1321 = vpop.xlane.xlu0 %1320
        %v1322 = vsel %vm1072, %v1027, -inf
        %1323 = vmax.xlane.f32.xlu0 %v1322
        %v1324 = vpop.xlane.xlu0 %1323
        %v1325 = vsel %vm1072, %v1028, -inf
        %1326 = vmax.xlane.f32.xlu0 %v1325
        %v1327 = vpop.xlane.xlu0 %1326
        %v1328 = vsel %vm1072, %v1029, -inf
        %1329 = vmax.xlane.f32.xlu0 %v1328
        %v1330 = vpop.xlane.xlu0 %1329
        %v1331 = vsel %vm1072, %v1030, -inf
        %1332 = vmax.xlane.f32.xlu0 %v1331
        %v1333 = vpop.xlane.xlu0 %1332
        %v1334 = vsel %vm1072, %v1031, -inf
        %1335 = vmax.xlane.f32.xlu0 %v1334
        %v1336 = vpop.xlane.xlu0 %1335
        %v1337 = vsel %vm1072, %v1032, -inf
        %1338 = vmax.xlane.f32.xlu0 %v1337
        %v1339 = vpop.xlane.xlu0 %1338
        %v1340 = vsel %vm1072, %v1033, -inf
        %1341 = vmax.xlane.f32.xlu0 %v1340
        %v1342 = vpop.xlane.xlu0 %1341
        %v1343 = vsel %vm1072, %v1034, -inf
        %1344 = vmax.xlane.f32.xlu0 %v1343
        %v1345 = vpop.xlane.xlu0 %1344
        %v1346 = vsel %vm1072, %v1035, -inf
        %1347 = vmax.xlane.f32.xlu0 %v1346
        %v1348 = vpop.xlane.xlu0 %1347
        %v1349 = vsel %vm1072, %v1036, -inf
        %1350 = vmax.xlane.f32.xlu0 %v1349
        %v1351 = vpop.xlane.xlu0 %1350
        %v1352 = vsel %vm1072, %v1037, -inf
        %1353 = vmax.xlane.f32.xlu0 %v1352
        %v1354 = vpop.xlane.xlu0 %1353
        %v1355 = vsel %vm1072, %v1038, -inf
        %1356 = vmax.xlane.f32.xlu0 %v1355
        %v1357 = vpop.xlane.xlu0 %1356
        %v1358 = vsel %vm1072, %v1039, -inf
        %1359 = vmax.xlane.f32.xlu0 %v1358
        %v1360 = vpop.xlane.xlu0 %1359
        %v1361 = vsel %vm1072, %v1040, -inf
        %1362 = vmax.xlane.f32.xlu0 %v1361
        %v1363 = vpop.xlane.xlu0 %1362
        %v1364 = vsel %vm1072, %v1041, -inf
        %1365 = vmax.xlane.f32.xlu0 %v1364
        %v1366 = vpop.xlane.xlu0 %1365
        %v1367 = vsel %vm1072, %v1042, -inf
        %1368 = vmax.xlane.f32.xlu0 %v1367
        %v1369 = vpop.xlane.xlu0 %1368
        %v1370 = vsel %vm1072, %v1043, -inf
        %1371 = vmax.xlane.f32.xlu0 %v1370
        %v1372 = vpop.xlane.xlu0 %1371
        %v1373 = vsel %vm1072, %v1044, -inf
        %1374 = vmax.xlane.f32.xlu0 %v1373
        %v1375 = vpop.xlane.xlu0 %1374
        %v1376 = vsel %vm1072, %v1045, -inf
        %1377 = vmax.xlane.f32.xlu0 %v1376
        %v1378 = vpop.xlane.xlu0 %1377
        %v1379 = vsel %vm1072, %v1046, -inf
        %1380 = vmax.xlane.f32.xlu0 %v1379
        %v1381 = vpop.xlane.xlu0 %1380
        %v1382 = vsel %vm1072, %v1047, -inf
        %1383 = vmax.xlane.f32.xlu0 %v1382
        %v1384 = vpop.xlane.xlu0 %1383
        %v1385 = vsel %vm1072, %v1048, -inf
        %1386 = vmax.xlane.f32.xlu0 %v1385
        %v1387 = vpop.xlane.xlu0 %1386
        %v1388 = vsel %vm1072, %v1049, -inf
        %1389 = vmax.xlane.f32.xlu0 %v1388
        %v1390 = vpop.xlane.xlu0 %1389
        %v1391 = vsel %vm1072, %v1050, -inf
        %1392 = vmax.xlane.f32.xlu0 %v1391
        %v1393 = vpop.xlane.xlu0 %1392
        %v1394 = vsel %vm1072, %v1051, -inf
        %1395 = vmax.xlane.f32.xlu0 %v1394
        %v1396 = vpop.xlane.xlu0 %1395
        %v1397 = vsel %vm1072, %v1052, -inf
        %1398 = vmax.xlane.f32.xlu0 %v1397
        %v1399 = vpop.xlane.xlu0 %1398
        %v1400 = vsel %vm1072, %v1053, -inf
        %1401 = vmax.xlane.f32.xlu0 %v1400
        %v1402 = vpop.xlane.xlu0 %1401
        %v1403 = vsel %vm1072, %v1054, -inf
        %1404 = vmax.xlane.f32.xlu0 %v1403
        %v1405 = vpop.xlane.xlu0 %1404
        %v1406 = vsel %vm1072, %v1055, -inf
        %1407 = vmax.xlane.f32.xlu0 %v1406
        %v1408 = vpop.xlane.xlu0 %1407
        %v1409 = vsel %vm1072, %v1056, -inf
        %1410 = vmax.xlane.f32.xlu0 %v1409
        %v1411 = vpop.xlane.xlu0 %1410
        %v1412 = vsel %vm1072, %v1057, -inf
        %1413 = vmax.xlane.f32.xlu0 %v1412
        %v1414 = vpop.xlane.xlu0 %1413
        %v1415 = vsel %vm1072, %v1058, -inf
        %1416 = vmax.xlane.f32.xlu0 %v1415
        %v1417 = vpop.xlane.xlu0 %1416
        %v1418 = vsel %vm1072, %v1059, -inf
        %1419 = vmax.xlane.f32.xlu0 %v1418
        %v1420 = vpop.xlane.xlu0 %1419
        %v1421 = vsel %vm1072, %v1060, -inf
        %1422 = vmax.xlane.f32.xlu0 %v1421
        %v1423 = vpop.xlane.xlu0 %1422
        %v1424 = vsel %vm1072, %v1061, -inf
        %1425 = vmax.xlane.f32.xlu0 %v1424
        %v1426 = vpop.xlane.xlu0 %1425
        %v1427 = vsel %vm1072, %v1062, -inf
        %1428 = vmax.xlane.f32.xlu0 %v1427
        %v1429 = vpop.xlane.xlu0 %1428
        %v1430 = vsel %vm1072, %v1063, -inf
        %1431 = vmax.xlane.f32.xlu0 %v1430
        %v1432 = vpop.xlane.xlu0 %1431
        %v1433 = vsel %vm1072, %v1064, -inf
        %1434 = vmax.xlane.f32.xlu0 %v1433
        %v1435 = vpop.xlane.xlu0 %1434
        %v1436 = vsel %vm1072, %v1065, -inf
        %1437 = vmax.xlane.f32.xlu0 %v1436
        %v1438 = vpop.xlane.xlu0 %1437
        %v1439 = vsel %vm1072, %v1066, -inf
        %1440 = vmax.xlane.f32.xlu0 %v1439
        %v1441 = vpop.xlane.xlu0 %1440
        %v1442 = vsel %vm1072, %v1067, -inf
        %1443 = vmax.xlane.f32.xlu0 %v1442
        %v1444 = vpop.xlane.xlu0 %1443
        %v1445 = vsel %vm1072, %v1068, -inf
        %1446 = vmax.xlane.f32.xlu0 %v1445
        %v1447 = vpop.xlane.xlu0 %1446
        %v1448 = vsel %vm1072, %v1069, -inf
        %1449 = vmax.xlane.f32.xlu0 %v1448
        %v1450 = vpop.xlane.xlu0 %1449
        %v1451 = vsel %vm1072, %v1070, -inf
        %1452 = vmax.xlane.f32.xlu0 %v1451
        %v1453 = vpop.xlane.xlu0 %1452
        %v1454 = vsel %vm1072, %v1071, -inf
        %1455 = vmax.xlane.f32.xlu0 %v1454
        %v1456 = vpop.xlane.xlu0 %1455
        %v1457 = vsub.f32 %v944, %v1075
        %v1458 = vsub.f32 %v945, %v1078
        %v1459 = vsub.f32 %v946, %v1081
        %v1460 = vsub.f32 %v947, %v1084
        %v1461 = vsub.f32 %v948, %v1087
        %v1462 = vsub.f32 %v949, %v1090
        %v1463 = vsub.f32 %v950, %v1093
        %v1464 = vsub.f32 %v951, %v1096
        %v1465 = vsub.f32 %v952, %v1099
        %v1466 = vsub.f32 %v953, %v1102
        %v1467 = vsub.f32 %v954, %v1105
        %v1468 = vsub.f32 %v955, %v1108
        %v1469 = vsub.f32 %v956, %v1111
        %v1470 = vsub.f32 %v957, %v1114
        %v1471 = vsub.f32 %v958, %v1117
        %v1472 = vsub.f32 %v959, %v1120
        %v1473 = vsub.f32 %v960, %v1123
        %v1474 = vsub.f32 %v961, %v1126
        %v1475 = vsub.f32 %v962, %v1129
        %v1476 = vsub.f32 %v963, %v1132
        %v1477 = vsub.f32 %v964, %v1135
        %v1478 = vsub.f32 %v965, %v1138
        %v1479 = vsub.f32 %v966, %v1141
        %v1480 = vsub.f32 %v967, %v1144
        %v1481 = vsub.f32 %v968, %v1147
        %v1482 = vsub.f32 %v969, %v1150
        %v1483 = vsub.f32 %v970, %v1153
        %v1484 = vsub.f32 %v971, %v1156
        %v1485 = vsub.f32 %v972, %v1159
        %v1486 = vsub.f32 %v973, %v1162
        %v1487 = vsub.f32 %v974, %v1165
        %v1488 = vsub.f32 %v975, %v1168
        %v1489 = vsub.f32 %v976, %v1171
        %v1490 = vsub.f32 %v977, %v1174
        %v1491 = vsub.f32 %v978, %v1177
        %v1492 = vsub.f32 %v979, %v1180
        %v1493 = vsub.f32 %v980, %v1183
        %v1494 = vsub.f32 %v981, %v1186
        %v1495 = vsub.f32 %v982, %v1189
        %v1496 = vsub.f32 %v983, %v1192
        %v1497 = vsub.f32 %v984, %v1195
        %v1498 = vsub.f32 %v985, %v1198
        %v1499 = vsub.f32 %v986, %v1201
        %v1500 = vsub.f32 %v987, %v1204
        %v1501 = vsub.f32 %v988, %v1207
        %v1502 = vsub.f32 %v989, %v1210
        %v1503 = vsub.f32 %v990, %v1213
        %v1504 = vsub.f32 %v991, %v1216
        %v1505 = vsub.f32 %v992, %v1219
        %v1506 = vsub.f32 %v993, %v1222
        %v1507 = vsub.f32 %v994, %v1225
        %v1508 = vsub.f32 %v995, %v1228
        %v1509 = vsub.f32 %v996, %v1231
        %v1510 = vsub.f32 %v997, %v1234
        %v1511 = vsub.f32 %v998, %v1237
        %v1512 = vsub.f32 %v999, %v1240
        %v1513 = vsub.f32 %v1000, %v1243
        %v1514 = vsub.f32 %v1001, %v1246
        %v1515 = vsub.f32 %v1002, %v1249
        %v1516 = vsub.f32 %v1003, %v1252
        %v1517 = vsub.f32 %v1004, %v1255
        %v1518 = vsub.f32 %v1005, %v1258
        %v1519 = vsub.f32 %v1006, %v1261
        %v1520 = vsub.f32 %v1007, %v1264
        %v1521 = vsub.f32 %v1008, %v1267
        %v1522 = vsub.f32 %v1009, %v1270
        %v1523 = vsub.f32 %v1010, %v1273
        %v1524 = vsub.f32 %v1011, %v1276
        %v1525 = vsub.f32 %v1012, %v1279
        %v1526 = vsub.f32 %v1013, %v1282
        %v1527 = vsub.f32 %v1014, %v1285
        %v1528 = vsub.f32 %v1015, %v1288
        %v1529 = vsub.f32 %v1016, %v1291
        %v1530 = vsub.f32 %v1017, %v1294
        %v1531 = vsub.f32 %v1018, %v1297
        %v1532 = vsub.f32 %v1019, %v1300
        %v1533 = vsub.f32 %v1020, %v1303
        %v1534 = vsub.f32 %v1021, %v1306
        %v1535 = vsub.f32 %v1022, %v1309
        %v1536 = vsub.f32 %v1023, %v1312
        %v1537 = vsub.f32 %v1024, %v1315
        %v1538 = vsub.f32 %v1025, %v1318
        %v1539 = vsub.f32 %v1026, %v1321
        %v1540 = vsub.f32 %v1027, %v1324
        %v1541 = vsub.f32 %v1028, %v1327
        %v1542 = vsub.f32 %v1029, %v1330
        %v1543 = vsub.f32 %v1030, %v1333
        %v1544 = vsub.f32 %v1031, %v1336
        %v1545 = vsub.f32 %v1032, %v1339
        %v1546 = vsub.f32 %v1033, %v1342
        %v1547 = vsub.f32 %v1034, %v1345
        %v1548 = vsub.f32 %v1035, %v1348
        %v1549 = vsub.f32 %v1036, %v1351
        %v1550 = vsub.f32 %v1037, %v1354
        %v1551 = vsub.f32 %v1038, %v1357
        %v1552 = vsub.f32 %v1039, %v1360
        %v1553 = vsub.f32 %v1040, %v1363
        %v1554 = vsub.f32 %v1041, %v1366
        %v1555 = vsub.f32 %v1042, %v1369
        %v1556 = vsub.f32 %v1043, %v1372
        %v1557 = vsub.f32 %v1044, %v1375
        %v1558 = vsub.f32 %v1045, %v1378
        %v1559 = vsub.f32 %v1046, %v1381
        %v1560 = vsub.f32 %v1047, %v1384
        %v1561 = vsub.f32 %v1048, %v1387
        %v1562 = vsub.f32 %v1049, %v1390
        %v1563 = vsub.f32 %v1050, %v1393
        %v1564 = vsub.f32 %v1051, %v1396
        %v1565 = vsub.f32 %v1052, %v1399
        %v1566 = vsub.f32 %v1053, %v1402
        %v1567 = vsub.f32 %v1054, %v1405
        %v1568 = vsub.f32 %v1055, %v1408
        %v1569 = vsub.f32 %v1056, %v1411
        %v1570 = vsub.f32 %v1057, %v1414
        %v1571 = vsub.f32 %v1058, %v1417
        %v1572 = vsub.f32 %v1059, %v1420
        %v1573 = vsub.f32 %v1060, %v1423
        %v1574 = vsub.f32 %v1061, %v1426
        %v1575 = vsub.f32 %v1062, %v1429
        %v1576 = vsub.f32 %v1063, %v1432
        %v1577 = vsub.f32 %v1064, %v1435
        %v1578 = vsub.f32 %v1065, %v1438
        %v1579 = vsub.f32 %v1066, %v1441
        %v1580 = vsub.f32 %v1067, %v1444
        %v1581 = vsub.f32 %v1068, %v1447
        %v1582 = vsub.f32 %v1069, %v1450
        %v1583 = vsub.f32 %v1070, %v1453
        %v1584 = vsub.f32 %v1071, %v1456
        %v1585 = vmul.f32 %v1457, 1.442695
        %v1586 = vpow.pop %v1585
        %v1587 = vmul.f32 %v1458, 1.442695
        %v1588 = vpow.pop %v1587
        %v1589 = vmul.f32 %v1459, 1.442695
        %v1590 = vpow.pop %v1589
        %v1591 = vmul.f32 %v1460, 1.442695
        %v1592 = vpow.pop %v1591
        %v1593 = vmul.f32 %v1461, 1.442695
        %v1594 = vpow.pop %v1593
        %v1595 = vmul.f32 %v1462, 1.442695
        %v1596 = vpow.pop %v1595
        %v1597 = vmul.f32 %v1463, 1.442695
        %v1598 = vpow.pop %v1597
        %v1599 = vmul.f32 %v1464, 1.442695
        %v1600 = vpow.pop %v1599
        %v1601 = vmul.f32 %v1465, 1.442695
        %v1602 = vpow.pop %v1601
        %v1603 = vmul.f32 %v1466, 1.442695
        %v1604 = vpow.pop %v1603
        %v1605 = vmul.f32 %v1467, 1.442695
        %v1606 = vpow.pop %v1605
        %v1607 = vmul.f32 %v1468, 1.442695
        %v1608 = vpow.pop %v1607
        %v1609 = vmul.f32 %v1469, 1.442695
        %v1610 = vpow.pop %v1609
        %v1611 = vmul.f32 %v1470, 1.442695
        %v1612 = vpow.pop %v1611
        %v1613 = vmul.f32 %v1471, 1.442695
        %v1614 = vpow.pop %v1613
        %v1615 = vmul.f32 %v1472, 1.442695
        %v1616 = vpow.pop %v1615
        %v1617 = vmul.f32 %v1473, 1.442695
        %v1618 = vpow.pop %v1617
        %v1619 = vmul.f32 %v1474, 1.442695
        %v1620 = vpow.pop %v1619
        %v1621 = vmul.f32 %v1475, 1.442695
        %v1622 = vpow.pop %v1621
        %v1623 = vmul.f32 %v1476, 1.442695
        %v1624 = vpow.pop %v1623
        %v1625 = vmul.f32 %v1477, 1.442695
        %v1626 = vpow.pop %v1625
        %v1627 = vmul.f32 %v1478, 1.442695
        %v1628 = vpow.pop %v1627
        %v1629 = vmul.f32 %v1479, 1.442695
        %v1630 = vpow.pop %v1629
        %v1631 = vmul.f32 %v1480, 1.442695
        %v1632 = vpow.pop %v1631
        %v1633 = vmul.f32 %v1481, 1.442695
        %v1634 = vpow.pop %v1633
        %v1635 = vmul.f32 %v1482, 1.442695
        %v1636 = vpow.pop %v1635
        %v1637 = vmul.f32 %v1483, 1.442695
        %v1638 = vpow.pop %v1637
        %v1639 = vmul.f32 %v1484, 1.442695
        %v1640 = vpow.pop %v1639
        %v1641 = vmul.f32 %v1485, 1.442695
        %v1642 = vpow.pop %v1641
        %v1643 = vmul.f32 %v1486, 1.442695
        %v1644 = vpow.pop %v1643
        %v1645 = vmul.f32 %v1487, 1.442695
        %v1646 = vpow.pop %v1645
        %v1647 = vmul.f32 %v1488, 1.442695
        %v1648 = vpow.pop %v1647
        %v1649 = vmul.f32 %v1489, 1.442695
        %v1650 = vpow.pop %v1649
        %v1651 = vmul.f32 %v1490, 1.442695
        %v1652 = vpow.pop %v1651
        %v1653 = vmul.f32 %v1491, 1.442695
        %v1654 = vpow.pop %v1653
        %v1655 = vmul.f32 %v1492, 1.442695
        %v1656 = vpow.pop %v1655
        %v1657 = vmul.f32 %v1493, 1.442695
        %v1658 = vpow.pop %v1657
        %v1659 = vmul.f32 %v1494, 1.442695
        %v1660 = vpow.pop %v1659
        %v1661 = vmul.f32 %v1495, 1.442695
        %v1662 = vpow.pop %v1661
        %v1663 = vmul.f32 %v1496, 1.442695
        %v1664 = vpow.pop %v1663
        %v1665 = vmul.f32 %v1497, 1.442695
        %v1666 = vpow.pop %v1665
        %v1667 = vmul.f32 %v1498, 1.442695
        %v1668 = vpow.pop %v1667
        %v1669 = vmul.f32 %v1499, 1.442695
        %v1670 = vpow.pop %v1669
        %v1671 = vmul.f32 %v1500, 1.442695
        %v1672 = vpow.pop %v1671
        %v1673 = vmul.f32 %v1501, 1.442695
        %v1674 = vpow.pop %v1673
        %v1675 = vmul.f32 %v1502, 1.442695
        %v1676 = vpow.pop %v1675
        %v1677 = vmul.f32 %v1503, 1.442695
        %v1678 = vpow.pop %v1677
        %v1679 = vmul.f32 %v1504, 1.442695
        %v1680 = vpow.pop %v1679
        %v1681 = vmul.f32 %v1505, 1.442695
        %v1682 = vpow.pop %v1681
        %v1683 = vmul.f32 %v1506, 1.442695
        %v1684 = vpow.pop %v1683
        %v1685 = vmul.f32 %v1507, 1.442695
        %v1686 = vpow.pop %v1685
        %v1687 = vmul.f32 %v1508, 1.442695
        %v1688 = vpow.pop %v1687
        %v1689 = vmul.f32 %v1509, 1.442695
        %v1690 = vpow.pop %v1689
        %v1691 = vmul.f32 %v1510, 1.442695
        %v1692 = vpow.pop %v1691
        %v1693 = vmul.f32 %v1511, 1.442695
        %v1694 = vpow.pop %v1693
        %v1695 = vmul.f32 %v1512, 1.442695
        %v1696 = vpow.pop %v1695
        %v1697 = vmul.f32 %v1513, 1.442695
        %v1698 = vpow.pop %v1697
        %v1699 = vmul.f32 %v1514, 1.442695
        %v1700 = vpow.pop %v1699
        %v1701 = vmul.f32 %v1515, 1.442695
        %v1702 = vpow.pop %v1701
        %v1703 = vmul.f32 %v1516, 1.442695
        %v1704 = vpow.pop %v1703
        %v1705 = vmul.f32 %v1517, 1.442695
        %v1706 = vpow.pop %v1705
        %v1707 = vmul.f32 %v1518, 1.442695
        %v1708 = vpow.pop %v1707
        %v1709 = vmul.f32 %v1519, 1.442695
        %v1710 = vpow.pop %v1709
        %v1711 = vmul.f32 %v1520, 1.442695
        %v1712 = vpow.pop %v1711
        %v1713 = vmul.f32 %v1521, 1.442695
        %v1714 = vpow.pop %v1713
        %v1715 = vmul.f32 %v1522, 1.442695
        %v1716 = vpow.pop %v1715
        %v1717 = vmul.f32 %v1523, 1.442695
        %v1718 = vpow.pop %v1717
        %v1719 = vmul.f32 %v1524, 1.442695
        %v1720 = vpow.pop %v1719
        %v1721 = vmul.f32 %v1525, 1.442695
        %v1722 = vpow.pop %v1721
        %v1723 = vmul.f32 %v1526, 1.442695
        %v1724 = vpow.pop %v1723
        %v1725 = vmul.f32 %v1527, 1.442695
        %v1726 = vpow.pop %v1725
        %v1727 = vmul.f32 %v1528, 1.442695
        %v1728 = vpow.pop %v1727
        %v1729 = vmul.f32 %v1529, 1.442695
        %v1730 = vpow.pop %v1729
        %v1731 = vmul.f32 %v1530, 1.442695
        %v1732 = vpow.pop %v1731
        %v1733 = vmul.f32 %v1531, 1.442695
        %v1734 = vpow.pop %v1733
        %v1735 = vmul.f32 %v1532, 1.442695
        %v1736 = vpow.pop %v1735
        %v1737 = vmul.f32 %v1533, 1.442695
        %v1738 = vpow.pop %v1737
        %v1739 = vmul.f32 %v1534, 1.442695
        %v1740 = vpow.pop %v1739
        %v1741 = vmul.f32 %v1535, 1.442695
        %v1742 = vpow.pop %v1741
        %v1743 = vmul.f32 %v1536, 1.442695
        %v1744 = vpow.pop %v1743
        %v1745 = vmul.f32 %v1537, 1.442695
        %v1746 = vpow.pop %v1745
        %v1747 = vmul.f32 %v1538, 1.442695
        %v1748 = vpow.pop %v1747
        %v1749 = vmul.f32 %v1539, 1.442695
        %v1750 = vpow.pop %v1749
        %v1751 = vmul.f32 %v1540, 1.442695
        %v1752 = vpow.pop %v1751
        %v1753 = vmul.f32 %v1541, 1.442695
        %v1754 = vpow.pop %v1753
        %v1755 = vmul.f32 %v1542, 1.442695
        %v1756 = vpow.pop %v1755
        %v1757 = vmul.f32 %v1543, 1.442695
        %v1758 = vpow.pop %v1757
        %v1759 = vmul.f32 %v1544, 1.442695
        %v1760 = vpow.pop %v1759
        %v1761 = vmul.f32 %v1545, 1.442695
        %v1762 = vpow.pop %v1761
        %v1763 = vmul.f32 %v1546, 1.442695
        %v1764 = vpow.pop %v1763
        %v1765 = vmul.f32 %v1547, 1.442695
        %v1766 = vpow.pop %v1765
        %v1767 = vmul.f32 %v1548, 1.442695
        %v1768 = vpow.pop %v1767
        %v1769 = vmul.f32 %v1549, 1.442695
        %v1770 = vpow.pop %v1769
        %v1771 = vmul.f32 %v1550, 1.442695
        %v1772 = vpow.pop %v1771
        %v1773 = vmul.f32 %v1551, 1.442695
        %v1774 = vpow.pop %v1773
        %v1775 = vmul.f32 %v1552, 1.442695
        %v1776 = vpow.pop %v1775
        %v1777 = vmul.f32 %v1553, 1.442695
        %v1778 = vpow.pop %v1777
        %v1779 = vmul.f32 %v1554, 1.442695
        %v1780 = vpow.pop %v1779
        %v1781 = vmul.f32 %v1555, 1.442695
        %v1782 = vpow.pop %v1781
        %v1783 = vmul.f32 %v1556, 1.442695
        %v1784 = vpow.pop %v1783
        %v1785 = vmul.f32 %v1557, 1.442695
        %v1786 = vpow.pop %v1785
        %v1787 = vmul.f32 %v1558, 1.442695
        %v1788 = vpow.pop %v1787
        %v1789 = vmul.f32 %v1559, 1.442695
        %v1790 = vpow.pop %v1789
        %v1791 = vmul.f32 %v1560, 1.442695
        %v1792 = vpow.pop %v1791
        %v1793 = vmul.f32 %v1561, 1.442695
        %v1794 = vpow.pop %v1793
        %v1795 = vmul.f32 %v1562, 1.442695
        %v1796 = vpow.pop %v1795
        %v1797 = vmul.f32 %v1563, 1.442695
        %v1798 = vpow.pop %v1797
        %v1799 = vmul.f32 %v1564, 1.442695
        %v1800 = vpow.pop %v1799
        %v1801 = vmul.f32 %v1565, 1.442695
        %v1802 = vpow.pop %v1801
        %v1803 = vmul.f32 %v1566, 1.442695
        %v1804 = vpow.pop %v1803
        %v1805 = vmul.f32 %v1567, 1.442695
        %v1806 = vpow.pop %v1805
        %v1807 = vmul.f32 %v1568, 1.442695
        %v1808 = vpow.pop %v1807
        %v1809 = vmul.f32 %v1569, 1.442695
        %v1810 = vpow.pop %v1809
        %v1811 = vmul.f32 %v1570, 1.442695
        %v1812 = vpow.pop %v1811
        %v1813 = vmul.f32 %v1571, 1.442695
        %v1814 = vpow.pop %v1813
        %v1815 = vmul.f32 %v1572, 1.442695
        %v1816 = vpow.pop %v1815
        %v1817 = vmul.f32 %v1573, 1.442695
        %v1818 = vpow.pop %v1817
        %v1819 = vmul.f32 %v1574, 1.442695
        %v1820 = vpow.pop %v1819
        %v1821 = vmul.f32 %v1575, 1.442695
        %v1822 = vpow.pop %v1821
        %v1823 = vmul.f32 %v1576, 1.442695
        %v1824 = vpow.pop %v1823
        %v1825 = vmul.f32 %v1577, 1.442695
        %v1826 = vpow.pop %v1825
        %v1827 = vmul.f32 %v1578, 1.442695
        %v1828 = vpow.pop %v1827
        %v1829 = vmul.f32 %v1579, 1.442695
        %v1830 = vpow.pop %v1829
        %v1831 = vmul.f32 %v1580, 1.442695
        %v1832 = vpow.pop %v1831
        %v1833 = vmul.f32 %v1581, 1.442695
        %v1834 = vpow.pop %v1833
        %v1835 = vmul.f32 %v1582, 1.442695
        %v1836 = vpow.pop %v1835
        %v1837 = vmul.f32 %v1583, 1.442695
        %v1838 = vpow.pop %v1837
        %v1839 = vmul.f32 %v1584, 1.442695
        %v1840 = vpow.pop %v1839
        %v1841 = vsel %vm1072, %v1586, 0.0
        %1842 = vadd.xlane.f32.xlu0 %v1841
        %v1843 = vpop.xlane.xlu0 %1842
        %v1844 = vsel %vm1072, %v1588, 0.0
        %1845 = vadd.xlane.f32.xlu0 %v1844
        %v1846 = vpop.xlane.xlu0 %1845
        %v1847 = vsel %vm1072, %v1590, 0.0
        %1848 = vadd.xlane.f32.xlu0 %v1847
        %v1849 = vpop.xlane.xlu0 %1848
        %v1850 = vsel %vm1072, %v1592, 0.0
        %1851 = vadd.xlane.f32.xlu0 %v1850
        %v1852 = vpop.xlane.xlu0 %1851
        %v1853 = vsel %vm1072, %v1594, 0.0
        %1854 = vadd.xlane.f32.xlu0 %v1853
        %v1855 = vpop.xlane.xlu0 %1854
        %v1856 = vsel %vm1072, %v1596, 0.0
        %1857 = vadd.xlane.f32.xlu0 %v1856
        %v1858 = vpop.xlane.xlu0 %1857
        %v1859 = vsel %vm1072, %v1598, 0.0
        %1860 = vadd.xlane.f32.xlu0 %v1859
        %v1861 = vpop.xlane.xlu0 %1860
        %v1862 = vsel %vm1072, %v1600, 0.0
        %1863 = vadd.xlane.f32.xlu0 %v1862
        %v1864 = vpop.xlane.xlu0 %1863
        %v1865 = vsel %vm1072, %v1602, 0.0
        %1866 = vadd.xlane.f32.xlu0 %v1865
        %v1867 = vpop.xlane.xlu0 %1866
        %v1868 = vsel %vm1072, %v1604, 0.0
        %1869 = vadd.xlane.f32.xlu0 %v1868
        %v1870 = vpop.xlane.xlu0 %1869
        %v1871 = vsel %vm1072, %v1606, 0.0
        %1872 = vadd.xlane.f32.xlu0 %v1871
        %v1873 = vpop.xlane.xlu0 %1872
        %v1874 = vsel %vm1072, %v1608, 0.0
        %1875 = vadd.xlane.f32.xlu0 %v1874
        %v1876 = vpop.xlane.xlu0 %1875
        %v1877 = vsel %vm1072, %v1610, 0.0
        %1878 = vadd.xlane.f32.xlu0 %v1877
        %v1879 = vpop.xlane.xlu0 %1878
        %v1880 = vsel %vm1072, %v1612, 0.0
        %1881 = vadd.xlane.f32.xlu0 %v1880
        %v1882 = vpop.xlane.xlu0 %1881
        %v1883 = vsel %vm1072, %v1614, 0.0
        %1884 = vadd.xlane.f32.xlu0 %v1883
        %v1885 = vpop.xlane.xlu0 %1884
        %v1886 = vsel %vm1072, %v1616, 0.0
        %1887 = vadd.xlane.f32.xlu0 %v1886
        %v1888 = vpop.xlane.xlu0 %1887
        %v1889 = vsel %vm1072, %v1618, 0.0
        %1890 = vadd.xlane.f32.xlu0 %v1889
        %v1891 = vpop.xlane.xlu0 %1890
        %v1892 = vsel %vm1072, %v1620, 0.0
        %1893 = vadd.xlane.f32.xlu0 %v1892
        %v1894 = vpop.xlane.xlu0 %1893
        %v1895 = vsel %vm1072, %v1622, 0.0
        %1896 = vadd.xlane.f32.xlu0 %v1895
        %v1897 = vpop.xlane.xlu0 %1896
        %v1898 = vsel %vm1072, %v1624, 0.0
        %1899 = vadd.xlane.f32.xlu0 %v1898
        %v1900 = vpop.xlane.xlu0 %1899
        %v1901 = vsel %vm1072, %v1626, 0.0
        %1902 = vadd.xlane.f32.xlu0 %v1901
        %v1903 = vpop.xlane.xlu0 %1902
        %v1904 = vsel %vm1072, %v1628, 0.0
        %1905 = vadd.xlane.f32.xlu0 %v1904
        %v1906 = vpop.xlane.xlu0 %1905
        %v1907 = vsel %vm1072, %v1630, 0.0
        %1908 = vadd.xlane.f32.xlu0 %v1907
        %v1909 = vpop.xlane.xlu0 %1908
        %v1910 = vsel %vm1072, %v1632, 0.0
        %1911 = vadd.xlane.f32.xlu0 %v1910
        %v1912 = vpop.xlane.xlu0 %1911
        %v1913 = vsel %vm1072, %v1634, 0.0
        %1914 = vadd.xlane.f32.xlu0 %v1913
        %v1915 = vpop.xlane.xlu0 %1914
        %v1916 = vsel %vm1072, %v1636, 0.0
        %1917 = vadd.xlane.f32.xlu0 %v1916
        %v1918 = vpop.xlane.xlu0 %1917
        %v1919 = vsel %vm1072, %v1638, 0.0
        %1920 = vadd.xlane.f32.xlu0 %v1919
        %v1921 = vpop.xlane.xlu0 %1920
        %v1922 = vsel %vm1072, %v1640, 0.0
        %1923 = vadd.xlane.f32.xlu0 %v1922
        %v1924 = vpop.xlane.xlu0 %1923
        %v1925 = vsel %vm1072, %v1642, 0.0
        %1926 = vadd.xlane.f32.xlu0 %v1925
        %v1927 = vpop.xlane.xlu0 %1926
        %v1928 = vsel %vm1072, %v1644, 0.0
        %1929 = vadd.xlane.f32.xlu0 %v1928
        %v1930 = vpop.xlane.xlu0 %1929
        %v1931 = vsel %vm1072, %v1646, 0.0
        %1932 = vadd.xlane.f32.xlu0 %v1931
        %v1933 = vpop.xlane.xlu0 %1932
        %v1934 = vsel %vm1072, %v1648, 0.0
        %1935 = vadd.xlane.f32.xlu0 %v1934
        %v1936 = vpop.xlane.xlu0 %1935
        %v1937 = vsel %vm1072, %v1650, 0.0
        %1938 = vadd.xlane.f32.xlu0 %v1937
        %v1939 = vpop.xlane.xlu0 %1938
        %v1940 = vsel %vm1072, %v1652, 0.0
        %1941 = vadd.xlane.f32.xlu0 %v1940
        %v1942 = vpop.xlane.xlu0 %1941
        %v1943 = vsel %vm1072, %v1654, 0.0
        %1944 = vadd.xlane.f32.xlu0 %v1943
        %v1945 = vpop.xlane.xlu0 %1944
        %v1946 = vsel %vm1072, %v1656, 0.0
        %1947 = vadd.xlane.f32.xlu0 %v1946
        %v1948 = vpop.xlane.xlu0 %1947
        %v1949 = vsel %vm1072, %v1658, 0.0
        %1950 = vadd.xlane.f32.xlu0 %v1949
        %v1951 = vpop.xlane.xlu0 %1950
        %v1952 = vsel %vm1072, %v1660, 0.0
        %1953 = vadd.xlane.f32.xlu0 %v1952
        %v1954 = vpop.xlane.xlu0 %1953
        %v1955 = vsel %vm1072, %v1662, 0.0
        %1956 = vadd.xlane.f32.xlu0 %v1955
        %v1957 = vpop.xlane.xlu0 %1956
        %v1958 = vsel %vm1072, %v1664, 0.0
        %1959 = vadd.xlane.f32.xlu0 %v1958
        %v1960 = vpop.xlane.xlu0 %1959
        %v1961 = vsel %vm1072, %v1666, 0.0
        %1962 = vadd.xlane.f32.xlu0 %v1961
        %v1963 = vpop.xlane.xlu0 %1962
        %v1964 = vsel %vm1072, %v1668, 0.0
        %1965 = vadd.xlane.f32.xlu0 %v1964
        %v1966 = vpop.xlane.xlu0 %1965
        %v1967 = vsel %vm1072, %v1670, 0.0
        %1968 = vadd.xlane.f32.xlu0 %v1967
        %v1969 = vpop.xlane.xlu0 %1968
        %v1970 = vsel %vm1072, %v1672, 0.0
        %1971 = vadd.xlane.f32.xlu0 %v1970
        %v1972 = vpop.xlane.xlu0 %1971
        %v1973 = vsel %vm1072, %v1674, 0.0
        %1974 = vadd.xlane.f32.xlu0 %v1973
        %v1975 = vpop.xlane.xlu0 %1974
        %v1976 = vsel %vm1072, %v1676, 0.0
        %1977 = vadd.xlane.f32.xlu0 %v1976
        %v1978 = vpop.xlane.xlu0 %1977
        %v1979 = vsel %vm1072, %v1678, 0.0
        %1980 = vadd.xlane.f32.xlu0 %v1979
        %v1981 = vpop.xlane.xlu0 %1980
        %v1982 = vsel %vm1072, %v1680, 0.0
        %1983 = vadd.xlane.f32.xlu0 %v1982
        %v1984 = vpop.xlane.xlu0 %1983
        %v1985 = vsel %vm1072, %v1682, 0.0
        %1986 = vadd.xlane.f32.xlu0 %v1985
        %v1987 = vpop.xlane.xlu0 %1986
        %v1988 = vsel %vm1072, %v1684, 0.0
        %1989 = vadd.xlane.f32.xlu0 %v1988
        %v1990 = vpop.xlane.xlu0 %1989
        %v1991 = vsel %vm1072, %v1686, 0.0
        %1992 = vadd.xlane.f32.xlu0 %v1991
        %v1993 = vpop.xlane.xlu0 %1992
        %v1994 = vsel %vm1072, %v1688, 0.0
        %1995 = vadd.xlane.f32.xlu0 %v1994
        %v1996 = vpop.xlane.xlu0 %1995
        %v1997 = vsel %vm1072, %v1690, 0.0
        %1998 = vadd.xlane.f32.xlu0 %v1997
        %v1999 = vpop.xlane.xlu0 %1998
        %v2000 = vsel %vm1072, %v1692, 0.0
        %2001 = vadd.xlane.f32.xlu0 %v2000
        %v2002 = vpop.xlane.xlu0 %2001
        %v2003 = vsel %vm1072, %v1694, 0.0
        %2004 = vadd.xlane.f32.xlu0 %v2003
        %v2005 = vpop.xlane.xlu0 %2004
        %v2006 = vsel %vm1072, %v1696, 0.0
        %2007 = vadd.xlane.f32.xlu0 %v2006
        %v2008 = vpop.xlane.xlu0 %2007
        %v2009 = vsel %vm1072, %v1698, 0.0
        %2010 = vadd.xlane.f32.xlu0 %v2009
        %v2011 = vpop.xlane.xlu0 %2010
        %v2012 = vsel %vm1072, %v1700, 0.0
        %2013 = vadd.xlane.f32.xlu0 %v2012
        %v2014 = vpop.xlane.xlu0 %2013
        %v2015 = vsel %vm1072, %v1702, 0.0
        %2016 = vadd.xlane.f32.xlu0 %v2015
        %v2017 = vpop.xlane.xlu0 %2016
        %v2018 = vsel %vm1072, %v1704, 0.0
        %2019 = vadd.xlane.f32.xlu0 %v2018
        %v2020 = vpop.xlane.xlu0 %2019
        %v2021 = vsel %vm1072, %v1706, 0.0
        %2022 = vadd.xlane.f32.xlu0 %v2021
        %v2023 = vpop.xlane.xlu0 %2022
        %v2024 = vsel %vm1072, %v1708, 0.0
        %2025 = vadd.xlane.f32.xlu0 %v2024
        %v2026 = vpop.xlane.xlu0 %2025
        %v2027 = vsel %vm1072, %v1710, 0.0
        %2028 = vadd.xlane.f32.xlu0 %v2027
        %v2029 = vpop.xlane.xlu0 %2028
        %v2030 = vsel %vm1072, %v1712, 0.0
        %2031 = vadd.xlane.f32.xlu0 %v2030
        %v2032 = vpop.xlane.xlu0 %2031
        %v2033 = vsel %vm1072, %v1714, 0.0
        %2034 = vadd.xlane.f32.xlu0 %v2033
        %v2035 = vpop.xlane.xlu0 %2034
        %v2036 = vsel %vm1072, %v1716, 0.0
        %2037 = vadd.xlane.f32.xlu0 %v2036
        %v2038 = vpop.xlane.xlu0 %2037
        %v2039 = vsel %vm1072, %v1718, 0.0
        %2040 = vadd.xlane.f32.xlu0 %v2039
        %v2041 = vpop.xlane.xlu0 %2040
        %v2042 = vsel %vm1072, %v1720, 0.0
        %2043 = vadd.xlane.f32.xlu0 %v2042
        %v2044 = vpop.xlane.xlu0 %2043
        %v2045 = vsel %vm1072, %v1722, 0.0
        %2046 = vadd.xlane.f32.xlu0 %v2045
        %v2047 = vpop.xlane.xlu0 %2046
        %v2048 = vsel %vm1072, %v1724, 0.0
        %2049 = vadd.xlane.f32.xlu0 %v2048
        %v2050 = vpop.xlane.xlu0 %2049
        %v2051 = vsel %vm1072, %v1726, 0.0
        %2052 = vadd.xlane.f32.xlu0 %v2051
        %v2053 = vpop.xlane.xlu0 %2052
        %v2054 = vsel %vm1072, %v1728, 0.0
        %2055 = vadd.xlane.f32.xlu0 %v2054
        %v2056 = vpop.xlane.xlu0 %2055
        %v2057 = vsel %vm1072, %v1730, 0.0
        %2058 = vadd.xlane.f32.xlu0 %v2057
        %v2059 = vpop.xlane.xlu0 %2058
        %v2060 = vsel %vm1072, %v1732, 0.0
        %2061 = vadd.xlane.f32.xlu0 %v2060
        %v2062 = vpop.xlane.xlu0 %2061
        %v2063 = vsel %vm1072, %v1734, 0.0
        %2064 = vadd.xlane.f32.xlu0 %v2063
        %v2065 = vpop.xlane.xlu0 %2064
        %v2066 = vsel %vm1072, %v1736, 0.0
        %2067 = vadd.xlane.f32.xlu0 %v2066
        %v2068 = vpop.xlane.xlu0 %2067
        %v2069 = vsel %vm1072, %v1738, 0.0
        %2070 = vadd.xlane.f32.xlu0 %v2069
        %v2071 = vpop.xlane.xlu0 %2070
        %v2072 = vsel %vm1072, %v1740, 0.0
        %2073 = vadd.xlane.f32.xlu0 %v2072
        %v2074 = vpop.xlane.xlu0 %2073
        %v2075 = vsel %vm1072, %v1742, 0.0
        %2076 = vadd.xlane.f32.xlu0 %v2075
        %v2077 = vpop.xlane.xlu0 %2076
        %v2078 = vsel %vm1072, %v1744, 0.0
        %2079 = vadd.xlane.f32.xlu0 %v2078
        %v2080 = vpop.xlane.xlu0 %2079
        %v2081 = vsel %vm1072, %v1746, 0.0
        %2082 = vadd.xlane.f32.xlu0 %v2081
        %v2083 = vpop.xlane.xlu0 %2082
        %v2084 = vsel %vm1072, %v1748, 0.0
        %2085 = vadd.xlane.f32.xlu0 %v2084
        %v2086 = vpop.xlane.xlu0 %2085
        %v2087 = vsel %vm1072, %v1750, 0.0
        %2088 = vadd.xlane.f32.xlu0 %v2087
        %v2089 = vpop.xlane.xlu0 %2088
        %v2090 = vsel %vm1072, %v1752, 0.0
        %2091 = vadd.xlane.f32.xlu0 %v2090
        %v2092 = vpop.xlane.xlu0 %2091
        %v2093 = vsel %vm1072, %v1754, 0.0
        %2094 = vadd.xlane.f32.xlu0 %v2093
        %v2095 = vpop.xlane.xlu0 %2094
        %v2096 = vsel %vm1072, %v1756, 0.0
        %2097 = vadd.xlane.f32.xlu0 %v2096
        %v2098 = vpop.xlane.xlu0 %2097
        %v2099 = vsel %vm1072, %v1758, 0.0
        %2100 = vadd.xlane.f32.xlu0 %v2099
        %v2101 = vpop.xlane.xlu0 %2100
        %v2102 = vsel %vm1072, %v1760, 0.0
        %2103 = vadd.xlane.f32.xlu0 %v2102
        %v2104 = vpop.xlane.xlu0 %2103
        %v2105 = vsel %vm1072, %v1762, 0.0
        %2106 = vadd.xlane.f32.xlu0 %v2105
        %v2107 = vpop.xlane.xlu0 %2106
        %v2108 = vsel %vm1072, %v1764, 0.0
        %2109 = vadd.xlane.f32.xlu0 %v2108
        %v2110 = vpop.xlane.xlu0 %2109
        %v2111 = vsel %vm1072, %v1766, 0.0
        %2112 = vadd.xlane.f32.xlu0 %v2111
        %v2113 = vpop.xlane.xlu0 %2112
        %v2114 = vsel %vm1072, %v1768, 0.0
        %2115 = vadd.xlane.f32.xlu0 %v2114
        %v2116 = vpop.xlane.xlu0 %2115
        %v2117 = vsel %vm1072, %v1770, 0.0
        %2118 = vadd.xlane.f32.xlu0 %v2117
        %v2119 = vpop.xlane.xlu0 %2118
        %v2120 = vsel %vm1072, %v1772, 0.0
        %2121 = vadd.xlane.f32.xlu0 %v2120
        %v2122 = vpop.xlane.xlu0 %2121
        %v2123 = vsel %vm1072, %v1774, 0.0
        %2124 = vadd.xlane.f32.xlu0 %v2123
        %v2125 = vpop.xlane.xlu0 %2124
        %v2126 = vsel %vm1072, %v1776, 0.0
        %2127 = vadd.xlane.f32.xlu0 %v2126
        %v2128 = vpop.xlane.xlu0 %2127
        %v2129 = vsel %vm1072, %v1778, 0.0
        %2130 = vadd.xlane.f32.xlu0 %v2129
        %v2131 = vpop.xlane.xlu0 %2130
        %v2132 = vsel %vm1072, %v1780, 0.0
        %2133 = vadd.xlane.f32.xlu0 %v2132
        %v2134 = vpop.xlane.xlu0 %2133
        %v2135 = vsel %vm1072, %v1782, 0.0
        %2136 = vadd.xlane.f32.xlu0 %v2135
        %v2137 = vpop.xlane.xlu0 %2136
        %v2138 = vsel %vm1072, %v1784, 0.0
        %2139 = vadd.xlane.f32.xlu0 %v2138
        %v2140 = vpop.xlane.xlu0 %2139
        %v2141 = vsel %vm1072, %v1786, 0.0
        %2142 = vadd.xlane.f32.xlu0 %v2141
        %v2143 = vpop.xlane.xlu0 %2142
        %v2144 = vsel %vm1072, %v1788, 0.0
        %2145 = vadd.xlane.f32.xlu0 %v2144
        %v2146 = vpop.xlane.xlu0 %2145
        %v2147 = vsel %vm1072, %v1790, 0.0
        %2148 = vadd.xlane.f32.xlu0 %v2147
        %v2149 = vpop.xlane.xlu0 %2148
        %v2150 = vsel %vm1072, %v1792, 0.0
        %2151 = vadd.xlane.f32.xlu0 %v2150
        %v2152 = vpop.xlane.xlu0 %2151
        %v2153 = vsel %vm1072, %v1794, 0.0
        %2154 = vadd.xlane.f32.xlu0 %v2153
        %v2155 = vpop.xlane.xlu0 %2154
        %v2156 = vsel %vm1072, %v1796, 0.0
        %2157 = vadd.xlane.f32.xlu0 %v2156
        %v2158 = vpop.xlane.xlu0 %2157
        %v2159 = vsel %vm1072, %v1798, 0.0
        %2160 = vadd.xlane.f32.xlu0 %v2159
        %v2161 = vpop.xlane.xlu0 %2160
        %v2162 = vsel %vm1072, %v1800, 0.0
        %2163 = vadd.xlane.f32.xlu0 %v2162
        %v2164 = vpop.xlane.xlu0 %2163
        %v2165 = vsel %vm1072, %v1802, 0.0
        %2166 = vadd.xlane.f32.xlu0 %v2165
        %v2167 = vpop.xlane.xlu0 %2166
        %v2168 = vsel %vm1072, %v1804, 0.0
        %2169 = vadd.xlane.f32.xlu0 %v2168
        %v2170 = vpop.xlane.xlu0 %2169
        %v2171 = vsel %vm1072, %v1806, 0.0
        %2172 = vadd.xlane.f32.xlu0 %v2171
        %v2173 = vpop.xlane.xlu0 %2172
        %v2174 = vsel %vm1072, %v1808, 0.0
        %2175 = vadd.xlane.f32.xlu0 %v2174
        %v2176 = vpop.xlane.xlu0 %2175
        %v2177 = vsel %vm1072, %v1810, 0.0
        %2178 = vadd.xlane.f32.xlu0 %v2177
        %v2179 = vpop.xlane.xlu0 %2178
        %v2180 = vsel %vm1072, %v1812, 0.0
        %2181 = vadd.xlane.f32.xlu0 %v2180
        %v2182 = vpop.xlane.xlu0 %2181
        %v2183 = vsel %vm1072, %v1814, 0.0
        %2184 = vadd.xlane.f32.xlu0 %v2183
        %v2185 = vpop.xlane.xlu0 %2184
        %v2186 = vsel %vm1072, %v1816, 0.0
        %2187 = vadd.xlane.f32.xlu0 %v2186
        %v2188 = vpop.xlane.xlu0 %2187
        %v2189 = vsel %vm1072, %v1818, 0.0
        %2190 = vadd.xlane.f32.xlu0 %v2189
        %v2191 = vpop.xlane.xlu0 %2190
        %v2192 = vsel %vm1072, %v1820, 0.0
        %2193 = vadd.xlane.f32.xlu0 %v2192
        %v2194 = vpop.xlane.xlu0 %2193
        %v2195 = vsel %vm1072, %v1822, 0.0
        %2196 = vadd.xlane.f32.xlu0 %v2195
        %v2197 = vpop.xlane.xlu0 %2196
        %v2198 = vsel %vm1072, %v1824, 0.0
        %2199 = vadd.xlane.f32.xlu0 %v2198
        %v2200 = vpop.xlane.xlu0 %2199
        %v2201 = vsel %vm1072, %v1826, 0.0
        %2202 = vadd.xlane.f32.xlu0 %v2201
        %v2203 = vpop.xlane.xlu0 %2202
        %v2204 = vsel %vm1072, %v1828, 0.0
        %2205 = vadd.xlane.f32.xlu0 %v2204
        %v2206 = vpop.xlane.xlu0 %2205
        %v2207 = vsel %vm1072, %v1830, 0.0
        %2208 = vadd.xlane.f32.xlu0 %v2207
        %v2209 = vpop.xlane.xlu0 %2208
        %v2210 = vsel %vm1072, %v1832, 0.0
        %2211 = vadd.xlane.f32.xlu0 %v2210
        %v2212 = vpop.xlane.xlu0 %2211
        %v2213 = vsel %vm1072, %v1834, 0.0
        %2214 = vadd.xlane.f32.xlu0 %v2213
        %v2215 = vpop.xlane.xlu0 %2214
        %v2216 = vsel %vm1072, %v1836, 0.0
        %2217 = vadd.xlane.f32.xlu0 %v2216
        %v2218 = vpop.xlane.xlu0 %2217
        %v2219 = vsel %vm1072, %v1838, 0.0
        %2220 = vadd.xlane.f32.xlu0 %v2219
        %v2221 = vpop.xlane.xlu0 %2220
        %v2222 = vsel %vm1072, %v1840, 0.0
        %2223 = vadd.xlane.f32.xlu0 %v2222
        %v2224 = vpop.xlane.xlu0 %2223
        %v2225 = vld [vmem:[%s798] sm:$0xf]
        %v2226 = vunpack.c.l.bf16 %v2225
        %v2227 = vlaneseq
        %v2228 = vshrl.u32 %v2227, 7
        %v2229 = vsub.s32 0, %v2228
        %v2230 = vrot.slane %v2226, %v2229
        %2232 = vbcast.lane.b32.xlu0 %v2230, 256
        %v2233 = vpop.permute.xlu0 %2232
        %s2235 = sor.u32 256, 8
        %2236 = vbcast.lane.b32.xlu0 %v2230, %s2235
        %v2237 = vpop.permute.xlu0 %2236
        %s2239 = sor.u32 256, 16
        %2240 = vbcast.lane.b32.xlu0 %v2230, %s2239
        %v2241 = vpop.permute.xlu0 %2240
        %s2243 = sor.u32 256, 24
        %2244 = vbcast.lane.b32.xlu0 %v2230, %s2243
        %v2245 = vpop.permute.xlu0 %2244
        %s2247 = sor.u32 256, 32
        %2248 = vbcast.lane.b32.xlu0 %v2230, %s2247
        %v2249 = vpop.permute.xlu0 %2248
        %s2251 = sor.u32 256, 40
        %2252 = vbcast.lane.b32.xlu0 %v2230, %s2251
        %v2253 = vpop.permute.xlu0 %2252
        %s2255 = sor.u32 256, 48
        %2256 = vbcast.lane.b32.xlu0 %v2230, %s2255
        %v2257 = vpop.permute.xlu0 %2256
        %s2259 = sor.u32 256, 56
        %2260 = vbcast.lane.b32.xlu0 %v2230, %s2259
        %v2261 = vpop.permute.xlu0 %2260
        %s2263 = sor.u32 256, 64
        %2264 = vbcast.lane.b32.xlu0 %v2230, %s2263
        %v2265 = vpop.permute.xlu0 %2264
        %s2267 = sor.u32 256, 72
        %2268 = vbcast.lane.b32.xlu0 %v2230, %s2267
        %v2269 = vpop.permute.xlu0 %2268
        %s2271 = sor.u32 256, 80
        %2272 = vbcast.lane.b32.xlu0 %v2230, %s2271
        %v2273 = vpop.permute.xlu0 %2272
        %s2275 = sor.u32 256, 88
        %2276 = vbcast.lane.b32.xlu0 %v2230, %s2275
        %v2277 = vpop.permute.xlu0 %2276
        %s2279 = sor.u32 256, 96
        %2280 = vbcast.lane.b32.xlu0 %v2230, %s2279
        %v2281 = vpop.permute.xlu0 %2280
        %s2283 = sor.u32 256, 104
        %2284 = vbcast.lane.b32.xlu0 %v2230, %s2283
        %v2285 = vpop.permute.xlu0 %2284
        %s2287 = sor.u32 256, 112
        %2288 = vbcast.lane.b32.xlu0 %v2230, %s2287
        %v2289 = vpop.permute.xlu0 %2288
        %s2291 = sor.u32 256, 120
        %2292 = vbcast.lane.b32.xlu0 %v2230, %s2291
        %v2293 = vpop.permute.xlu0 %2292
        %v2294 = vlaneseq
        %v2295 = vshrl.u32 %v2294, 7
        %v2296 = vsub.s32 1, %v2295
        %v2297 = vrot.slane %v2226, %v2296
        %2299 = vbcast.lane.b32.xlu0 %v2297, 256
        %v2300 = vpop.permute.xlu0 %2299
        %s2302 = sor.u32 256, 8
        %2303 = vbcast.lane.b32.xlu0 %v2297, %s2302
        %v2304 = vpop.permute.xlu0 %2303
        %s2306 = sor.u32 256, 16
        %2307 = vbcast.lane.b32.xlu0 %v2297, %s2306
        %v2308 = vpop.permute.xlu0 %2307
        %s2310 = sor.u32 256, 24
        %2311 = vbcast.lane.b32.xlu0 %v2297, %s2310
        %v2312 = vpop.permute.xlu0 %2311
        %s2314 = sor.u32 256, 32
        %2315 = vbcast.lane.b32.xlu0 %v2297, %s2314
        %v2316 = vpop.permute.xlu0 %2315
        %s2318 = sor.u32 256, 40
        %2319 = vbcast.lane.b32.xlu0 %v2297, %s2318
        %v2320 = vpop.permute.xlu0 %2319
        %s2322 = sor.u32 256, 48
        %2323 = vbcast.lane.b32.xlu0 %v2297, %s2322
        %v2324 = vpop.permute.xlu0 %2323
        %s2326 = sor.u32 256, 56
        %2327 = vbcast.lane.b32.xlu0 %v2297, %s2326
        %v2328 = vpop.permute.xlu0 %2327
        %s2330 = sor.u32 256, 64
        %2331 = vbcast.lane.b32.xlu0 %v2297, %s2330
        %v2332 = vpop.permute.xlu0 %2331
        %s2334 = sor.u32 256, 72
        %2335 = vbcast.lane.b32.xlu0 %v2297, %s2334
        %v2336 = vpop.permute.xlu0 %2335
        %s2338 = sor.u32 256, 80
        %2339 = vbcast.lane.b32.xlu0 %v2297, %s2338
        %v2340 = vpop.permute.xlu0 %2339
        %s2342 = sor.u32 256, 88
        %2343 = vbcast.lane.b32.xlu0 %v2297, %s2342
        %v2344 = vpop.permute.xlu0 %2343
        %s2346 = sor.u32 256, 96
        %2347 = vbcast.lane.b32.xlu0 %v2297, %s2346
        %v2348 = vpop.permute.xlu0 %2347
        %s2350 = sor.u32 256, 104
        %2351 = vbcast.lane.b32.xlu0 %v2297, %s2350
        %v2352 = vpop.permute.xlu0 %2351
        %s2354 = sor.u32 256, 112
        %2355 = vbcast.lane.b32.xlu0 %v2297, %s2354
        %v2356 = vpop.permute.xlu0 %2355
        %s2358 = sor.u32 256, 120
        %2359 = vbcast.lane.b32.xlu0 %v2297, %s2358
        %v2360 = vpop.permute.xlu0 %2359
        %v2361 = vlaneseq
        %v2362 = vshrl.u32 %v2361, 7
        %v2363 = vsub.s32 2, %v2362
        %v2364 = vrot.slane %v2226, %v2363
        %2366 = vbcast.lane.b32.xlu0 %v2364, 256
        %v2367 = vpop.permute.xlu0 %2366
        %s2369 = sor.u32 256, 8
        %2370 = vbcast.lane.b32.xlu0 %v2364, %s2369
        %v2371 = vpop.permute.xlu0 %2370
        %s2373 = sor.u32 256, 16
        %2374 = vbcast.lane.b32.xlu0 %v2364, %s2373
        %v2375 = vpop.permute.xlu0 %2374
        %s2377 = sor.u32 256, 24
        %2378 = vbcast.lane.b32.xlu0 %v2364, %s2377
        %v2379 = vpop.permute.xlu0 %2378
        %s2381 = sor.u32 256, 32
        %2382 = vbcast.lane.b32.xlu0 %v2364, %s2381
        %v2383 = vpop.permute.xlu0 %2382
        %s2385 = sor.u32 256, 40
        %2386 = vbcast.lane.b32.xlu0 %v2364, %s2385
        %v2387 = vpop.permute.xlu0 %2386
        %s2389 = sor.u32 256, 48
        %2390 = vbcast.lane.b32.xlu0 %v2364, %s2389
        %v2391 = vpop.permute.xlu0 %2390
        %s2393 = sor.u32 256, 56
        %2394 = vbcast.lane.b32.xlu0 %v2364, %s2393
        %v2395 = vpop.permute.xlu0 %2394
        %s2397 = sor.u32 256, 64
        %2398 = vbcast.lane.b32.xlu0 %v2364, %s2397
        %v2399 = vpop.permute.xlu0 %2398
        %s2401 = sor.u32 256, 72
        %2402 = vbcast.lane.b32.xlu0 %v2364, %s2401
        %v2403 = vpop.permute.xlu0 %2402
        %s2405 = sor.u32 256, 80
        %2406 = vbcast.lane.b32.xlu0 %v2364, %s2405
        %v2407 = vpop.permute.xlu0 %2406
        %s2409 = sor.u32 256, 88
        %2410 = vbcast.lane.b32.xlu0 %v2364, %s2409
        %v2411 = vpop.permute.xlu0 %2410
        %s2413 = sor.u32 256, 96
        %2414 = vbcast.lane.b32.xlu0 %v2364, %s2413
        %v2415 = vpop.permute.xlu0 %2414
        %s2417 = sor.u32 256, 104
        %2418 = vbcast.lane.b32.xlu0 %v2364, %s2417
        %v2419 = vpop.permute.xlu0 %2418
        %s2421 = sor.u32 256, 112
        %2422 = vbcast.lane.b32.xlu0 %v2364, %s2421
        %v2423 = vpop.permute.xlu0 %2422
        %s2425 = sor.u32 256, 120
        %2426 = vbcast.lane.b32.xlu0 %v2364, %s2425
        %v2427 = vpop.permute.xlu0 %2426
        %v2428 = vlaneseq
        %v2429 = vshrl.u32 %v2428, 7
        %v2430 = vsub.s32 3, %v2429
        %v2431 = vrot.slane %v2226, %v2430
        %2433 = vbcast.lane.b32.xlu0 %v2431, 256
        %v2434 = vpop.permute.xlu0 %2433
        %s2436 = sor.u32 256, 8
        %2437 = vbcast.lane.b32.xlu0 %v2431, %s2436
        %v2438 = vpop.permute.xlu0 %2437
        %s2440 = sor.u32 256, 16
        %2441 = vbcast.lane.b32.xlu0 %v2431, %s2440
        %v2442 = vpop.permute.xlu0 %2441
        %s2444 = sor.u32 256, 24
        %2445 = vbcast.lane.b32.xlu0 %v2431, %s2444
        %v2446 = vpop.permute.xlu0 %2445
        %s2448 = sor.u32 256, 32
        %2449 = vbcast.lane.b32.xlu0 %v2431, %s2448
        %v2450 = vpop.permute.xlu0 %2449
        %s2452 = sor.u32 256, 40
        %2453 = vbcast.lane.b32.xlu0 %v2431, %s2452
        %v2454 = vpop.permute.xlu0 %2453
        %s2456 = sor.u32 256, 48
        %2457 = vbcast.lane.b32.xlu0 %v2431, %s2456
        %v2458 = vpop.permute.xlu0 %2457
        %s2460 = sor.u32 256, 56
        %2461 = vbcast.lane.b32.xlu0 %v2431, %s2460
        %v2462 = vpop.permute.xlu0 %2461
        %s2464 = sor.u32 256, 64
        %2465 = vbcast.lane.b32.xlu0 %v2431, %s2464
        %v2466 = vpop.permute.xlu0 %2465
        %s2468 = sor.u32 256, 72
        %2469 = vbcast.lane.b32.xlu0 %v2431, %s2468
        %v2470 = vpop.permute.xlu0 %2469
        %s2472 = sor.u32 256, 80
        %2473 = vbcast.lane.b32.xlu0 %v2431, %s2472
        %v2474 = vpop.permute.xlu0 %2473
        %s2476 = sor.u32 256, 88
        %2477 = vbcast.lane.b32.xlu0 %v2431, %s2476
        %v2478 = vpop.permute.xlu0 %2477
        %s2480 = sor.u32 256, 96
        %2481 = vbcast.lane.b32.xlu0 %v2431, %s2480
        %v2482 = vpop.permute.xlu0 %2481
        %s2484 = sor.u32 256, 104
        %2485 = vbcast.lane.b32.xlu0 %v2431, %s2484
        %v2486 = vpop.permute.xlu0 %2485
        %s2488 = sor.u32 256, 112
        %2489 = vbcast.lane.b32.xlu0 %v2431, %s2488
        %v2490 = vpop.permute.xlu0 %2489
        %s2492 = sor.u32 256, 120
        %2493 = vbcast.lane.b32.xlu0 %v2431, %s2492
        %v2494 = vpop.permute.xlu0 %2493
        %v2495 = vlaneseq
        %v2496 = vshrl.u32 %v2495, 7
        %v2497 = vsub.s32 4, %v2496
        %v2498 = vrot.slane %v2226, %v2497
        %2500 = vbcast.lane.b32.xlu0 %v2498, 256
        %v2501 = vpop.permute.xlu0 %2500
        %s2503 = sor.u32 256, 8
        %2504 = vbcast.lane.b32.xlu0 %v2498, %s2503
        %v2505 = vpop.permute.xlu0 %2504
        %s2507 = sor.u32 256, 16
        %2508 = vbcast.lane.b32.xlu0 %v2498, %s2507
        %v2509 = vpop.permute.xlu0 %2508
        %s2511 = sor.u32 256, 24
        %2512 = vbcast.lane.b32.xlu0 %v2498, %s2511
        %v2513 = vpop.permute.xlu0 %2512
        %s2515 = sor.u32 256, 32
        %2516 = vbcast.lane.b32.xlu0 %v2498, %s2515
        %v2517 = vpop.permute.xlu0 %2516
        %s2519 = sor.u32 256, 40
        %2520 = vbcast.lane.b32.xlu0 %v2498, %s2519
        %v2521 = vpop.permute.xlu0 %2520
        %s2523 = sor.u32 256, 48
        %2524 = vbcast.lane.b32.xlu0 %v2498, %s2523
        %v2525 = vpop.permute.xlu0 %2524
        %s2527 = sor.u32 256, 56
        %2528 = vbcast.lane.b32.xlu0 %v2498, %s2527
        %v2529 = vpop.permute.xlu0 %2528
        %s2531 = sor.u32 256, 64
        %2532 = vbcast.lane.b32.xlu0 %v2498, %s2531
        %v2533 = vpop.permute.xlu0 %2532
        %s2535 = sor.u32 256, 72
        %2536 = vbcast.lane.b32.xlu0 %v2498, %s2535
        %v2537 = vpop.permute.xlu0 %2536
        %s2539 = sor.u32 256, 80
        %2540 = vbcast.lane.b32.xlu0 %v2498, %s2539
        %v2541 = vpop.permute.xlu0 %2540
        %s2543 = sor.u32 256, 88
        %2544 = vbcast.lane.b32.xlu0 %v2498, %s2543
        %v2545 = vpop.permute.xlu0 %2544
        %s2547 = sor.u32 256, 96
        %2548 = vbcast.lane.b32.xlu0 %v2498, %s2547
        %v2549 = vpop.permute.xlu0 %2548
        %s2551 = sor.u32 256, 104
        %2552 = vbcast.lane.b32.xlu0 %v2498, %s2551
        %v2553 = vpop.permute.xlu0 %2552
        %s2555 = sor.u32 256, 112
        %2556 = vbcast.lane.b32.xlu0 %v2498, %s2555
        %v2557 = vpop.permute.xlu0 %2556
        %s2559 = sor.u32 256, 120
        %2560 = vbcast.lane.b32.xlu0 %v2498, %s2559
        %v2561 = vpop.permute.xlu0 %2560
        %v2562 = vlaneseq
        %v2563 = vshrl.u32 %v2562, 7
        %v2564 = vsub.s32 5, %v2563
        %v2565 = vrot.slane %v2226, %v2564
        %2567 = vbcast.lane.b32.xlu0 %v2565, 256
        %v2568 = vpop.permute.xlu0 %2567
        %s2570 = sor.u32 256, 8
        %2571 = vbcast.lane.b32.xlu0 %v2565, %s2570
        %v2572 = vpop.permute.xlu0 %2571
        %s2574 = sor.u32 256, 16
        %2575 = vbcast.lane.b32.xlu0 %v2565, %s2574
        %v2576 = vpop.permute.xlu0 %2575
        %s2578 = sor.u32 256, 24
        %2579 = vbcast.lane.b32.xlu0 %v2565, %s2578
        %v2580 = vpop.permute.xlu0 %2579
        %s2582 = sor.u32 256, 32
        %2583 = vbcast.lane.b32.xlu0 %v2565, %s2582
        %v2584 = vpop.permute.xlu0 %2583
        %s2586 = sor.u32 256, 40
        %2587 = vbcast.lane.b32.xlu0 %v2565, %s2586
        %v2588 = vpop.permute.xlu0 %2587
        %s2590 = sor.u32 256, 48
        %2591 = vbcast.lane.b32.xlu0 %v2565, %s2590
        %v2592 = vpop.permute.xlu0 %2591
        %s2594 = sor.u32 256, 56
        %2595 = vbcast.lane.b32.xlu0 %v2565, %s2594
        %v2596 = vpop.permute.xlu0 %2595
        %s2598 = sor.u32 256, 64
        %2599 = vbcast.lane.b32.xlu0 %v2565, %s2598
        %v2600 = vpop.permute.xlu0 %2599
        %s2602 = sor.u32 256, 72
        %2603 = vbcast.lane.b32.xlu0 %v2565, %s2602
        %v2604 = vpop.permute.xlu0 %2603
        %s2606 = sor.u32 256, 80
        %2607 = vbcast.lane.b32.xlu0 %v2565, %s2606
        %v2608 = vpop.permute.xlu0 %2607
        %s2610 = sor.u32 256, 88
        %2611 = vbcast.lane.b32.xlu0 %v2565, %s2610
        %v2612 = vpop.permute.xlu0 %2611
        %s2614 = sor.u32 256, 96
        %2615 = vbcast.lane.b32.xlu0 %v2565, %s2614
        %v2616 = vpop.permute.xlu0 %2615
        %s2618 = sor.u32 256, 104
        %2619 = vbcast.lane.b32.xlu0 %v2565, %s2618
        %v2620 = vpop.permute.xlu0 %2619
        %s2622 = sor.u32 256, 112
        %2623 = vbcast.lane.b32.xlu0 %v2565, %s2622
        %v2624 = vpop.permute.xlu0 %2623
        %s2626 = sor.u32 256, 120
        %2627 = vbcast.lane.b32.xlu0 %v2565, %s2626
        %v2628 = vpop.permute.xlu0 %2627
        %v2629 = vlaneseq
        %v2630 = vshrl.u32 %v2629, 7
        %v2631 = vsub.s32 6, %v2630
        %v2632 = vrot.slane %v2226, %v2631
        %2634 = vbcast.lane.b32.xlu0 %v2632, 256
        %v2635 = vpop.permute.xlu0 %2634
        %s2637 = sor.u32 256, 8
        %2638 = vbcast.lane.b32.xlu0 %v2632, %s2637
        %v2639 = vpop.permute.xlu0 %2638
        %s2641 = sor.u32 256, 16
        %2642 = vbcast.lane.b32.xlu0 %v2632, %s2641
        %v2643 = vpop.permute.xlu0 %2642
        %s2645 = sor.u32 256, 24
        %2646 = vbcast.lane.b32.xlu0 %v2632, %s2645
        %v2647 = vpop.permute.xlu0 %2646
        %s2649 = sor.u32 256, 32
        %2650 = vbcast.lane.b32.xlu0 %v2632, %s2649
        %v2651 = vpop.permute.xlu0 %2650
        %s2653 = sor.u32 256, 40
        %2654 = vbcast.lane.b32.xlu0 %v2632, %s2653
        %v2655 = vpop.permute.xlu0 %2654
        %s2657 = sor.u32 256, 48
        %2658 = vbcast.lane.b32.xlu0 %v2632, %s2657
        %v2659 = vpop.permute.xlu0 %2658
        %s2661 = sor.u32 256, 56
        %2662 = vbcast.lane.b32.xlu0 %v2632, %s2661
        %v2663 = vpop.permute.xlu0 %2662
        %s2665 = sor.u32 256, 64
        %2666 = vbcast.lane.b32.xlu0 %v2632, %s2665
        %v2667 = vpop.permute.xlu0 %2666
        %s2669 = sor.u32 256, 72
        %2670 = vbcast.lane.b32.xlu0 %v2632, %s2669
        %v2671 = vpop.permute.xlu0 %2670
        %s2673 = sor.u32 256, 80
        %2674 = vbcast.lane.b32.xlu0 %v2632, %s2673
        %v2675 = vpop.permute.xlu0 %2674
        %s2677 = sor.u32 256, 88
        %2678 = vbcast.lane.b32.xlu0 %v2632, %s2677
        %v2679 = vpop.permute.xlu0 %2678
        %s2681 = sor.u32 256, 96
        %2682 = vbcast.lane.b32.xlu0 %v2632, %s2681
        %v2683 = vpop.permute.xlu0 %2682
        %s2685 = sor.u32 256, 104
        %2686 = vbcast.lane.b32.xlu0 %v2632, %s2685
        %v2687 = vpop.permute.xlu0 %2686
        %s2689 = sor.u32 256, 112
        %2690 = vbcast.lane.b32.xlu0 %v2632, %s2689
        %v2691 = vpop.permute.xlu0 %2690
        %s2693 = sor.u32 256, 120
        %2694 = vbcast.lane.b32.xlu0 %v2632, %s2693
        %v2695 = vpop.permute.xlu0 %2694
        %v2696 = vlaneseq
        %v2697 = vshrl.u32 %v2696, 7
        %v2698 = vsub.s32 7, %v2697
        %v2699 = vrot.slane %v2226, %v2698
        %2701 = vbcast.lane.b32.xlu0 %v2699, 256
        %v2702 = vpop.permute.xlu0 %2701
        %s2704 = sor.u32 256, 8
        %2705 = vbcast.lane.b32.xlu0 %v2699, %s2704
        %v2706 = vpop.permute.xlu0 %2705
        %s2708 = sor.u32 256, 16
        %2709 = vbcast.lane.b32.xlu0 %v2699, %s2708
        %v2710 = vpop.permute.xlu0 %2709
        %s2712 = sor.u32 256, 24
        %2713 = vbcast.lane.b32.xlu0 %v2699, %s2712
        %v2714 = vpop.permute.xlu0 %2713
        %s2716 = sor.u32 256, 32
        %2717 = vbcast.lane.b32.xlu0 %v2699, %s2716
        %v2718 = vpop.permute.xlu0 %2717
        %s2720 = sor.u32 256, 40
        %2721 = vbcast.lane.b32.xlu0 %v2699, %s2720
        %v2722 = vpop.permute.xlu0 %2721
        %s2724 = sor.u32 256, 48
        %2725 = vbcast.lane.b32.xlu0 %v2699, %s2724
        %v2726 = vpop.permute.xlu0 %2725
        %s2728 = sor.u32 256, 56
        %2729 = vbcast.lane.b32.xlu0 %v2699, %s2728
        %v2730 = vpop.permute.xlu0 %2729
        %s2732 = sor.u32 256, 64
        %2733 = vbcast.lane.b32.xlu0 %v2699, %s2732
        %v2734 = vpop.permute.xlu0 %2733
        %s2736 = sor.u32 256, 72
        %2737 = vbcast.lane.b32.xlu0 %v2699, %s2736
        %v2738 = vpop.permute.xlu0 %2737
        %s2740 = sor.u32 256, 80
        %2741 = vbcast.lane.b32.xlu0 %v2699, %s2740
        %v2742 = vpop.permute.xlu0 %2741
        %s2744 = sor.u32 256, 88
        %2745 = vbcast.lane.b32.xlu0 %v2699, %s2744
        %v2746 = vpop.permute.xlu0 %2745
        %s2748 = sor.u32 256, 96
        %2749 = vbcast.lane.b32.xlu0 %v2699, %s2748
        %v2750 = vpop.permute.xlu0 %2749
        %s2752 = sor.u32 256, 104
        %2753 = vbcast.lane.b32.xlu0 %v2699, %s2752
        %v2754 = vpop.permute.xlu0 %2753
        %s2756 = sor.u32 256, 112
        %2757 = vbcast.lane.b32.xlu0 %v2699, %s2756
        %v2758 = vpop.permute.xlu0 %2757
        %s2760 = sor.u32 256, 120
        %2761 = vbcast.lane.b32.xlu0 %v2699, %s2760
        %v2762 = vpop.permute.xlu0 %2761
        %v2763 = vrcp.pop %v1843
        %v2764 = vrcp.pop %v1846
        %v2765 = vrcp.pop %v1849
        %v2766 = vrcp.pop %v1852
        %v2767 = vrcp.pop %v1855
        %v2768 = vrcp.pop %v1858
        %v2769 = vrcp.pop %v1861
        %v2770 = vrcp.pop %v1864
        %v2771 = vrcp.pop %v1867
        %v2772 = vrcp.pop %v1870
        %v2773 = vrcp.pop %v1873
        %v2774 = vrcp.pop %v1876
        %v2775 = vrcp.pop %v1879
        %v2776 = vrcp.pop %v1882
        %v2777 = vrcp.pop %v1885
        %v2778 = vrcp.pop %v1888
        %v2779 = vrcp.pop %v1891
        %v2780 = vrcp.pop %v1894
        %v2781 = vrcp.pop %v1897
        %v2782 = vrcp.pop %v1900
        %v2783 = vrcp.pop %v1903
        %v2784 = vrcp.pop %v1906
        %v2785 = vrcp.pop %v1909
        %v2786 = vrcp.pop %v1912
        %v2787 = vrcp.pop %v1915
        %v2788 = vrcp.pop %v1918
        %v2789 = vrcp.pop %v1921
        %v2790 = vrcp.pop %v1924
        %v2791 = vrcp.pop %v1927
        %v2792 = vrcp.pop %v1930
        %v2793 = vrcp.pop %v1933
        %v2794 = vrcp.pop %v1936
        %v2795 = vrcp.pop %v1939
        %v2796 = vrcp.pop %v1942
        %v2797 = vrcp.pop %v1945
        %v2798 = vrcp.pop %v1948
        %v2799 = vrcp.pop %v1951
        %v2800 = vrcp.pop %v1954
        %v2801 = vrcp.pop %v1957
        %v2802 = vrcp.pop %v1960
        %v2803 = vrcp.pop %v1963
        %v2804 = vrcp.pop %v1966
        %v2805 = vrcp.pop %v1969
        %v2806 = vrcp.pop %v1972
        %v2807 = vrcp.pop %v1975
        %v2808 = vrcp.pop %v1978
        %v2809 = vrcp.pop %v1981
        %v2810 = vrcp.pop %v1984
        %v2811 = vrcp.pop %v1987
        %v2812 = vrcp.pop %v1990
        %v2813 = vrcp.pop %v1993
        %v2814 = vrcp.pop %v1996
        %v2815 = vrcp.pop %v1999
        %v2816 = vrcp.pop %v2002
        %v2817 = vrcp.pop %v2005
        %v2818 = vrcp.pop %v2008
        %v2819 = vrcp.pop %v2011
        %v2820 = vrcp.pop %v2014
        %v2821 = vrcp.pop %v2017
        %v2822 = vrcp.pop %v2020
        %v2823 = vrcp.pop %v2023
        %v2824 = vrcp.pop %v2026
        %v2825 = vrcp.pop %v2029
        %v2826 = vrcp.pop %v2032
        %v2827 = vrcp.pop %v2035
        %v2828 = vrcp.pop %v2038
        %v2829 = vrcp.pop %v2041
        %v2830 = vrcp.pop %v2044
        %v2831 = vrcp.pop %v2047
        %v2832 = vrcp.pop %v2050
        %v2833 = vrcp.pop %v2053
        %v2834 = vrcp.pop %v2056
        %v2835 = vrcp.pop %v2059
        %v2836 = vrcp.pop %v2062
        %v2837 = vrcp.pop %v2065
        %v2838 = vrcp.pop %v2068
        %v2839 = vrcp.pop %v2071
        %v2840 = vrcp.pop %v2074
        %v2841 = vrcp.pop %v2077
        %v2842 = vrcp.pop %v2080
        %v2843 = vrcp.pop %v2083
        %v2844 = vrcp.pop %v2086
        %v2845 = vrcp.pop %v2089
        %v2846 = vrcp.pop %v2092
        %v2847 = vrcp.pop %v2095
        %v2848 = vrcp.pop %v2098
        %v2849 = vrcp.pop %v2101
        %v2850 = vrcp.pop %v2104
        %v2851 = vrcp.pop %v2107
        %v2852 = vrcp.pop %v2110
        %v2853 = vrcp.pop %v2113
        %v2854 = vrcp.pop %v2116
        %v2855 = vrcp.pop %v2119
        %v2856 = vrcp.pop %v2122
        %v2857 = vrcp.pop %v2125
        %v2858 = vrcp.pop %v2128
        %v2859 = vrcp.pop %v2131
        %v2860 = vrcp.pop %v2134
        %v2861 = vrcp.pop %v2137
        %v2862 = vrcp.pop %v2140
        %v2863 = vrcp.pop %v2143
        %v2864 = vrcp.pop %v2146
        %v2865 = vrcp.pop %v2149
        %v2866 = vrcp.pop %v2152
        %v2867 = vrcp.pop %v2155
        %v2868 = vrcp.pop %v2158
        %v2869 = vrcp.pop %v2161
        %v2870 = vrcp.pop %v2164
        %v2871 = vrcp.pop %v2167
        %v2872 = vrcp.pop %v2170
        %v2873 = vrcp.pop %v2173
        %v2874 = vrcp.pop %v2176
        %v2875 = vrcp.pop %v2179
        %v2876 = vrcp.pop %v2182
        %v2877 = vrcp.pop %v2185
        %v2878 = vrcp.pop %v2188
        %v2879 = vrcp.pop %v2191
        %v2880 = vrcp.pop %v2194
        %v2881 = vrcp.pop %v2197
        %v2882 = vrcp.pop %v2200
        %v2883 = vrcp.pop %v2203
        %v2884 = vrcp.pop %v2206
        %v2885 = vrcp.pop %v2209
        %v2886 = vrcp.pop %v2212
        %v2887 = vrcp.pop %v2215
        %v2888 = vrcp.pop %v2218
        %v2889 = vrcp.pop %v2221
        %v2890 = vrcp.pop %v2224
        %v2891 = vmul.f32 %v2233, %v2763
        %v2892 = vmul.f32 %v2237, %v2764
        %v2893 = vmul.f32 %v2241, %v2765
        %v2894 = vmul.f32 %v2245, %v2766
        %v2895 = vmul.f32 %v2249, %v2767
        %v2896 = vmul.f32 %v2253, %v2768
        %v2897 = vmul.f32 %v2257, %v2769
        %v2898 = vmul.f32 %v2261, %v2770
        %v2899 = vmul.f32 %v2265, %v2771
        %v2900 = vmul.f32 %v2269, %v2772
        %v2901 = vmul.f32 %v2273, %v2773
        %v2902 = vmul.f32 %v2277, %v2774
        %v2903 = vmul.f32 %v2281, %v2775
        %v2904 = vmul.f32 %v2285, %v2776
        %v2905 = vmul.f32 %v2289, %v2777
        %v2906 = vmul.f32 %v2293, %v2778
        %v2907 = vmul.f32 %v2300, %v2779
        %v2908 = vmul.f32 %v2304, %v2780
        %v2909 = vmul.f32 %v2308, %v2781
        %v2910 = vmul.f32 %v2312, %v2782
        %v2911 = vmul.f32 %v2316, %v2783
        %v2912 = vmul.f32 %v2320, %v2784
        %v2913 = vmul.f32 %v2324, %v2785
        %v2914 = vmul.f32 %v2328, %v2786
        %v2915 = vmul.f32 %v2332, %v2787
        %v2916 = vmul.f32 %v2336, %v2788
        %v2917 = vmul.f32 %v2340, %v2789
        %v2918 = vmul.f32 %v2344, %v2790
        %v2919 = vmul.f32 %v2348, %v2791
        %v2920 = vmul.f32 %v2352, %v2792
        %v2921 = vmul.f32 %v2356, %v2793
        %v2922 = vmul.f32 %v2360, %v2794
        %v2923 = vmul.f32 %v2367, %v2795
        %v2924 = vmul.f32 %v2371, %v2796
        %v2925 = vmul.f32 %v2375, %v2797
        %v2926 = vmul.f32 %v2379, %v2798
        %v2927 = vmul.f32 %v2383, %v2799
        %v2928 = vmul.f32 %v2387, %v2800
        %v2929 = vmul.f32 %v2391, %v2801
        %v2930 = vmul.f32 %v2395, %v2802
        %v2931 = vmul.f32 %v2399, %v2803
        %v2932 = vmul.f32 %v2403, %v2804
        %v2933 = vmul.f32 %v2407, %v2805
        %v2934 = vmul.f32 %v2411, %v2806
        %v2935 = vmul.f32 %v2415, %v2807
        %v2936 = vmul.f32 %v2419, %v2808
        %v2937 = vmul.f32 %v2423, %v2809
        %v2938 = vmul.f32 %v2427, %v2810
        %v2939 = vmul.f32 %v2434, %v2811
        %v2940 = vmul.f32 %v2438, %v2812
        %v2941 = vmul.f32 %v2442, %v2813
        %v2942 = vmul.f32 %v2446, %v2814
        %v2943 = vmul.f32 %v2450, %v2815
        %v2944 = vmul.f32 %v2454, %v2816
        %v2945 = vmul.f32 %v2458, %v2817
        %v2946 = vmul.f32 %v2462, %v2818
        %v2947 = vmul.f32 %v2466, %v2819
        %v2948 = vmul.f32 %v2470, %v2820
        %v2949 = vmul.f32 %v2474, %v2821
        %v2950 = vmul.f32 %v2478, %v2822
        %v2951 = vmul.f32 %v2482, %v2823
        %v2952 = vmul.f32 %v2486, %v2824
        %v2953 = vmul.f32 %v2490, %v2825
        %v2954 = vmul.f32 %v2494, %v2826
        %v2955 = vmul.f32 %v2501, %v2827
        %v2956 = vmul.f32 %v2505, %v2828
        %v2957 = vmul.f32 %v2509, %v2829
        %v2958 = vmul.f32 %v2513, %v2830
        %v2959 = vmul.f32 %v2517, %v2831
        %v2960 = vmul.f32 %v2521, %v2832
        %v2961 = vmul.f32 %v2525, %v2833
        %v2962 = vmul.f32 %v2529, %v2834
        %v2963 = vmul.f32 %v2533, %v2835
        %v2964 = vmul.f32 %v2537, %v2836
        %v2965 = vmul.f32 %v2541, %v2837
        %v2966 = vmul.f32 %v2545, %v2838
        %v2967 = vmul.f32 %v2549, %v2839
        %v2968 = vmul.f32 %v2553, %v2840
        %v2969 = vmul.f32 %v2557, %v2841
        %v2970 = vmul.f32 %v2561, %v2842
        %v2971 = vmul.f32 %v2568, %v2843
        %v2972 = vmul.f32 %v2572, %v2844
        %v2973 = vmul.f32 %v2576, %v2845
        %v2974 = vmul.f32 %v2580, %v2846
        %v2975 = vmul.f32 %v2584, %v2847
        %v2976 = vmul.f32 %v2588, %v2848
        %v2977 = vmul.f32 %v2592, %v2849
        %v2978 = vmul.f32 %v2596, %v2850
        %v2979 = vmul.f32 %v2600, %v2851
        %v2980 = vmul.f32 %v2604, %v2852
        %v2981 = vmul.f32 %v2608, %v2853
        %v2982 = vmul.f32 %v2612, %v2854
        %v2983 = vmul.f32 %v2616, %v2855
        %v2984 = vmul.f32 %v2620, %v2856
        %v2985 = vmul.f32 %v2624, %v2857
        %v2986 = vmul.f32 %v2628, %v2858
        %v2987 = vmul.f32 %v2635, %v2859
        %v2988 = vmul.f32 %v2639, %v2860
        %v2989 = vmul.f32 %v2643, %v2861
        %v2990 = vmul.f32 %v2647, %v2862
        %v2991 = vmul.f32 %v2651, %v2863
        %v2992 = vmul.f32 %v2655, %v2864
        %v2993 = vmul.f32 %v2659, %v2865
        %v2994 = vmul.f32 %v2663, %v2866
        %v2995 = vmul.f32 %v2667, %v2867
        %v2996 = vmul.f32 %v2671, %v2868
        %v2997 = vmul.f32 %v2675, %v2869
        %v2998 = vmul.f32 %v2679, %v2870
        %v2999 = vmul.f32 %v2683, %v2871
        %v3000 = vmul.f32 %v2687, %v2872
        %v3001 = vmul.f32 %v2691, %v2873
        %v3002 = vmul.f32 %v2695, %v2874
        %v3003 = vmul.f32 %v2702, %v2875
        %v3004 = vmul.f32 %v2706, %v2876
        %v3005 = vmul.f32 %v2710, %v2877
        %v3006 = vmul.f32 %v2714, %v2878
        %v3007 = vmul.f32 %v2718, %v2879
        %v3008 = vmul.f32 %v2722, %v2880
        %v3009 = vmul.f32 %v2726, %v2881
        %v3010 = vmul.f32 %v2730, %v2882
        %v3011 = vmul.f32 %v2734, %v2883
        %v3012 = vmul.f32 %v2738, %v2884
        %v3013 = vmul.f32 %v2742, %v2885
        %v3014 = vmul.f32 %v2746, %v2886
        %v3015 = vmul.f32 %v2750, %v2887
        %v3016 = vmul.f32 %v2754, %v2888
        %v3017 = vmul.f32 %v2758, %v2889
        %v3018 = vmul.f32 %v2762, %v2890
        %v3019 = vld [vmem:[#allocation2] sm:$0xff]
        %v3020 = vmul.f32 %v1586, %v2891
        %v3021 = vmul.f32 %v1588, %v2892
        %v3022 = vmul.f32 %v1590, %v2893
        %v3023 = vmul.f32 %v1592, %v2894
        %v3024 = vmul.f32 %v1594, %v2895
        %v3025 = vmul.f32 %v1596, %v2896
        %v3026 = vmul.f32 %v1598, %v2897
        %v3027 = vmul.f32 %v1600, %v2898
        %v3028 = vmul.f32 %v1602, %v2899
        %v3029 = vmul.f32 %v1604, %v2900
        %v3030 = vmul.f32 %v1606, %v2901
        %v3031 = vmul.f32 %v1608, %v2902
        %v3032 = vmul.f32 %v1610, %v2903
        %v3033 = vmul.f32 %v1612, %v2904
        %v3034 = vmul.f32 %v1614, %v2905
        %v3035 = vmul.f32 %v1616, %v2906
        %v3036 = vmul.f32 %v1618, %v2907
        %v3037 = vmul.f32 %v1620, %v2908
        %v3038 = vmul.f32 %v1622, %v2909
        %v3039 = vmul.f32 %v1624, %v2910
        %v3040 = vmul.f32 %v1626, %v2911
        %v3041 = vmul.f32 %v1628, %v2912
        %v3042 = vmul.f32 %v1630, %v2913
        %v3043 = vmul.f32 %v1632, %v2914
        %v3044 = vmul.f32 %v1634, %v2915
        %v3045 = vmul.f32 %v1636, %v2916
        %v3046 = vmul.f32 %v1638, %v2917
        %v3047 = vmul.f32 %v1640, %v2918
        %v3048 = vmul.f32 %v1642, %v2919
        %v3049 = vmul.f32 %v1644, %v2920
        %v3050 = vmul.f32 %v1646, %v2921
        %v3051 = vmul.f32 %v1648, %v2922
        %v3052 = vmul.f32 %v1650, %v2923
        %v3053 = vmul.f32 %v1652, %v2924
        %v3054 = vmul.f32 %v1654, %v2925
        %v3055 = vmul.f32 %v1656, %v2926
        %v3056 = vmul.f32 %v1658, %v2927
        %v3057 = vmul.f32 %v1660, %v2928
        %v3058 = vmul.f32 %v1662, %v2929
        %v3059 = vmul.f32 %v1664, %v2930
        %v3060 = vmul.f32 %v1666, %v2931
        %v3061 = vmul.f32 %v1668, %v2932
        %v3062 = vmul.f32 %v1670, %v2933
        %v3063 = vmul.f32 %v1672, %v2934
        %v3064 = vmul.f32 %v1674, %v2935
        %v3065 = vmul.f32 %v1676, %v2936
        %v3066 = vmul.f32 %v1678, %v2937
        %v3067 = vmul.f32 %v1680, %v2938
        %v3068 = vmul.f32 %v1682, %v2939
        %v3069 = vmul.f32 %v1684, %v2940
        %v3070 = vmul.f32 %v1686, %v2941
        %v3071 = vmul.f32 %v1688, %v2942
        %v3072 = vmul.f32 %v1690, %v2943
        %v3073 = vmul.f32 %v1692, %v2944
        %v3074 = vmul.f32 %v1694, %v2945
        %v3075 = vmul.f32 %v1696, %v2946
        %v3076 = vmul.f32 %v1698, %v2947
        %v3077 = vmul.f32 %v1700, %v2948
        %v3078 = vmul.f32 %v1702, %v2949
        %v3079 = vmul.f32 %v1704, %v2950
        %v3080 = vmul.f32 %v1706, %v2951
        %v3081 = vmul.f32 %v1708, %v2952
        %v3082 = vmul.f32 %v1710, %v2953
        %v3083 = vmul.f32 %v1712, %v2954
        %v3084 = vmul.f32 %v1714, %v2955
        %v3085 = vmul.f32 %v1716, %v2956
        %v3086 = vmul.f32 %v1718, %v2957
        %v3087 = vmul.f32 %v1720, %v2958
        %v3088 = vmul.f32 %v1722, %v2959
        %v3089 = vmul.f32 %v1724, %v2960
        %v3090 = vmul.f32 %v1726, %v2961
        %v3091 = vmul.f32 %v1728, %v2962
        %v3092 = vmul.f32 %v1730, %v2963
        %v3093 = vmul.f32 %v1732, %v2964
        %v3094 = vmul.f32 %v1734, %v2965
        %v3095 = vmul.f32 %v1736, %v2966
        %v3096 = vmul.f32 %v1738, %v2967
        %v3097 = vmul.f32 %v1740, %v2968
        %v3098 = vmul.f32 %v1742, %v2969
        %v3099 = vmul.f32 %v1744, %v2970
        %v3100 = vmul.f32 %v1746, %v2971
        %v3101 = vmul.f32 %v1748, %v2972
        %v3102 = vmul.f32 %v1750, %v2973
        %v3103 = vmul.f32 %v1752, %v2974
        %v3104 = vmul.f32 %v1754, %v2975
        %v3105 = vmul.f32 %v1756, %v2976
        %v3106 = vmul.f32 %v1758, %v2977
        %v3107 = vmul.f32 %v1760, %v2978
        %v3108 = vmul.f32 %v1762, %v2979
        %v3109 = vmul.f32 %v1764, %v2980
        %v3110 = vmul.f32 %v1766, %v2981
        %v3111 = vmul.f32 %v1768, %v2982
        %v3112 = vmul.f32 %v1770, %v2983
        %v3113 = vmul.f32 %v1772, %v2984
        %v3114 = vmul.f32 %v1774, %v2985
        %v3115 = vmul.f32 %v1776, %v2986
        %v3116 = vmul.f32 %v1778, %v2987
        %v3117 = vmul.f32 %v1780, %v2988
        %v3118 = vmul.f32 %v1782, %v2989
        %v3119 = vmul.f32 %v1784, %v2990
        %v3120 = vmul.f32 %v1786, %v2991
        %v3121 = vmul.f32 %v1788, %v2992
        %v3122 = vmul.f32 %v1790, %v2993
        %v3123 = vmul.f32 %v1792, %v2994
        %v3124 = vmul.f32 %v1794, %v2995
        %v3125 = vmul.f32 %v1796, %v2996
        %v3126 = vmul.f32 %v1798, %v2997
        %v3127 = vmul.f32 %v1800, %v2998
        %v3128 = vmul.f32 %v1802, %v2999
        %v3129 = vmul.f32 %v1804, %v3000
        %v3130 = vmul.f32 %v1806, %v3001
        %v3131 = vmul.f32 %v1808, %v3002
        %v3132 = vmul.f32 %v1810, %v3003
        %v3133 = vmul.f32 %v1812, %v3004
        %v3134 = vmul.f32 %v1814, %v3005
        %v3135 = vmul.f32 %v1816, %v3006
        %v3136 = vmul.f32 %v1818, %v3007
        %v3137 = vmul.f32 %v1820, %v3008
        %v3138 = vmul.f32 %v1822, %v3009
        %v3139 = vmul.f32 %v1824, %v3010
        %v3140 = vmul.f32 %v1826, %v3011
        %v3141 = vmul.f32 %v1828, %v3012
        %v3142 = vmul.f32 %v1830, %v3013
        %v3143 = vmul.f32 %v1832, %v3014
        %v3144 = vmul.f32 %v1834, %v3015
        %v3145 = vmul.f32 %v1836, %v3016
        %v3146 = vmul.f32 %v1838, %v3017
        %v3147 = vmul.f32 %v1840, %v3018
        %v3148 = vsel %vm1072, %v3020, 0.0
        %v3149 = vsel %vm1072, %v3021, 0.0
        %v3150 = vadd.f32 %v3148, %v3149
        %v3151 = vsel %vm1072, %v3022, 0.0
        %v3152 = vadd.f32 %v3150, %v3151
        %v3153 = vsel %vm1072, %v3023, 0.0
        %v3154 = vadd.f32 %v3152, %v3153
        %v3155 = vsel %vm1072, %v3024, 0.0
        %v3156 = vadd.f32 %v3154, %v3155
        %v3157 = vsel %vm1072, %v3025, 0.0
        %v3158 = vadd.f32 %v3156, %v3157
        %v3159 = vsel %vm1072, %v3026, 0.0
        %v3160 = vadd.f32 %v3158, %v3159
        %v3161 = vsel %vm1072, %v3027, 0.0
        %v3162 = vadd.f32 %v3160, %v3161
        %v3163 = vsel %vm1072, %v3028, 0.0
        %v3164 = vadd.f32 %v3162, %v3163
        %v3165 = vsel %vm1072, %v3029, 0.0
        %v3166 = vadd.f32 %v3164, %v3165
        %v3167 = vsel %vm1072, %v3030, 0.0
        %v3168 = vadd.f32 %v3166, %v3167
        %v3169 = vsel %vm1072, %v3031, 0.0
        %v3170 = vadd.f32 %v3168, %v3169
        %v3171 = vsel %vm1072, %v3032, 0.0
        %v3172 = vadd.f32 %v3170, %v3171
        %v3173 = vsel %vm1072, %v3033, 0.0
        %v3174 = vadd.f32 %v3172, %v3173
        %v3175 = vsel %vm1072, %v3034, 0.0
        %v3176 = vadd.f32 %v3174, %v3175
        %v3177 = vsel %vm1072, %v3035, 0.0
        %v3178 = vadd.f32 %v3176, %v3177
        %v3179 = vrot.slane %v3178, 4
        %v3180 = vadd.f32 %v3178, %v3179
        %v3181 = vrot.slane %v3180, 2
        %v3182 = vadd.f32 %v3180, %v3181
        %v3183 = vrot.slane %v3182, 1
        %v3184 = vadd.f32 %v3182, %v3183
        %v3185 = vsel %vm1072, %v3036, 0.0
        %v3186 = vsel %vm1072, %v3037, 0.0
        %v3187 = vadd.f32 %v3185, %v3186
        %v3188 = vsel %vm1072, %v3038, 0.0
        %v3189 = vadd.f32 %v3187, %v3188
        %v3190 = vsel %vm1072, %v3039, 0.0
        %v3191 = vadd.f32 %v3189, %v3190
        %v3192 = vsel %vm1072, %v3040, 0.0
        %v3193 = vadd.f32 %v3191, %v3192
        %v3194 = vsel %vm1072, %v3041, 0.0
        %v3195 = vadd.f32 %v3193, %v3194
        %v3196 = vsel %vm1072, %v3042, 0.0
        %v3197 = vadd.f32 %v3195, %v3196
        %v3198 = vsel %vm1072, %v3043, 0.0
        %v3199 = vadd.f32 %v3197, %v3198
        %v3200 = vsel %vm1072, %v3044, 0.0
        %v3201 = vadd.f32 %v3199, %v3200
        %v3202 = vsel %vm1072, %v3045, 0.0
        %v3203 = vadd.f32 %v3201, %v3202
        %v3204 = vsel %vm1072, %v3046, 0.0
        %v3205 = vadd.f32 %v3203, %v3204
        %v3206 = vsel %vm1072, %v3047, 0.0
        %v3207 = vadd.f32 %v3205, %v3206
        %v3208 = vsel %vm1072, %v3048, 0.0
        %v3209 = vadd.f32 %v3207, %v3208
        %v3210 = vsel %vm1072, %v3049, 0.0
        %v3211 = vadd.f32 %v3209, %v3210
        %v3212 = vsel %vm1072, %v3050, 0.0
        %v3213 = vadd.f32 %v3211, %v3212
        %v3214 = vsel %vm1072, %v3051, 0.0
        %v3215 = vadd.f32 %v3213, %v3214
        %v3216 = vrot.slane %v3215, 4
        %v3217 = vadd.f32 %v3215, %v3216
        %v3218 = vrot.slane %v3217, 2
        %v3219 = vadd.f32 %v3217, %v3218
        %v3220 = vrot.slane %v3219, 1
        %v3221 = vadd.f32 %v3219, %v3220
        %v3222 = vsel %vm1072, %v3052, 0.0
        %v3223 = vsel %vm1072, %v3053, 0.0
        %v3224 = vadd.f32 %v3222, %v3223
        %v3225 = vsel %vm1072, %v3054, 0.0
        %v3226 = vadd.f32 %v3224, %v3225
        %v3227 = vsel %vm1072, %v3055, 0.0
        %v3228 = vadd.f32 %v3226, %v3227
        %v3229 = vsel %vm1072, %v3056, 0.0
        %v3230 = vadd.f32 %v3228, %v3229
        %v3231 = vsel %vm1072, %v3057, 0.0
        %v3232 = vadd.f32 %v3230, %v3231
        %v3233 = vsel %vm1072, %v3058, 0.0
        %v3234 = vadd.f32 %v3232, %v3233
        %v3235 = vsel %vm1072, %v3059, 0.0
        %v3236 = vadd.f32 %v3234, %v3235
        %v3237 = vsel %vm1072, %v3060, 0.0
        %v3238 = vadd.f32 %v3236, %v3237
        %v3239 = vsel %vm1072, %v3061, 0.0
        %v3240 = vadd.f32 %v3238, %v3239
        %v3241 = vsel %vm1072, %v3062, 0.0
        %v3242 = vadd.f32 %v3240, %v3241
        %v3243 = vsel %vm1072, %v3063, 0.0
        %v3244 = vadd.f32 %v3242, %v3243
        %v3245 = vsel %vm1072, %v3064, 0.0
        %v3246 = vadd.f32 %v3244, %v3245
        %v3247 = vsel %vm1072, %v3065, 0.0
        %v3248 = vadd.f32 %v3246, %v3247
        %v3249 = vsel %vm1072, %v3066, 0.0
        %v3250 = vadd.f32 %v3248, %v3249
        %v3251 = vsel %vm1072, %v3067, 0.0
        %v3252 = vadd.f32 %v3250, %v3251
        %v3253 = vrot.slane %v3252, 4
        %v3254 = vadd.f32 %v3252, %v3253
        %v3255 = vrot.slane %v3254, 2
        %v3256 = vadd.f32 %v3254, %v3255
        %v3257 = vrot.slane %v3256, 1
        %v3258 = vadd.f32 %v3256, %v3257
        %v3259 = vsel %vm1072, %v3068, 0.0
        %v3260 = vsel %vm1072, %v3069, 0.0
        %v3261 = vadd.f32 %v3259, %v3260
        %v3262 = vsel %vm1072, %v3070, 0.0
        %v3263 = vadd.f32 %v3261, %v3262
        %v3264 = vsel %vm1072, %v3071, 0.0
        %v3265 = vadd.f32 %v3263, %v3264
        %v3266 = vsel %vm1072, %v3072, 0.0
        %v3267 = vadd.f32 %v3265, %v3266
        %v3268 = vsel %vm1072, %v3073, 0.0
        %v3269 = vadd.f32 %v3267, %v3268
        %v3270 = vsel %vm1072, %v3074, 0.0
        %v3271 = vadd.f32 %v3269, %v3270
        %v3272 = vsel %vm1072, %v3075, 0.0
        %v3273 = vadd.f32 %v3271, %v3272
        %v3274 = vsel %vm1072, %v3076, 0.0
        %v3275 = vadd.f32 %v3273, %v3274
        %v3276 = vsel %vm1072, %v3077, 0.0
        %v3277 = vadd.f32 %v3275, %v3276
        %v3278 = vsel %vm1072, %v3078, 0.0
        %v3279 = vadd.f32 %v3277, %v3278
        %v3280 = vsel %vm1072, %v3079, 0.0
        %v3281 = vadd.f32 %v3279, %v3280
        %v3282 = vsel %vm1072, %v3080, 0.0
        %v3283 = vadd.f32 %v3281, %v3282
        %v3284 = vsel %vm1072, %v3081, 0.0
        %v3285 = vadd.f32 %v3283, %v3284
        %v3286 = vsel %vm1072, %v3082, 0.0
        %v3287 = vadd.f32 %v3285, %v3286
        %v3288 = vsel %vm1072, %v3083, 0.0
        %v3289 = vadd.f32 %v3287, %v3288
        %v3290 = vrot.slane %v3289, 4
        %v3291 = vadd.f32 %v3289, %v3290
        %v3292 = vrot.slane %v3291, 2
        %v3293 = vadd.f32 %v3291, %v3292
        %v3294 = vrot.slane %v3293, 1
        %v3295 = vadd.f32 %v3293, %v3294
        %v3296 = vsel %vm1072, %v3084, 0.0
        %v3297 = vsel %vm1072, %v3085, 0.0
        %v3298 = vadd.f32 %v3296, %v3297
        %v3299 = vsel %vm1072, %v3086, 0.0
        %v3300 = vadd.f32 %v3298, %v3299
        %v3301 = vsel %vm1072, %v3087, 0.0
        %v3302 = vadd.f32 %v3300, %v3301
        %v3303 = vsel %vm1072, %v3088, 0.0
        %v3304 = vadd.f32 %v3302, %v3303
        %v3305 = vsel %vm1072, %v3089, 0.0
        %v3306 = vadd.f32 %v3304, %v3305
        %v3307 = vsel %vm1072, %v3090, 0.0
        %v3308 = vadd.f32 %v3306, %v3307
        %v3309 = vsel %vm1072, %v3091, 0.0
        %v3310 = vadd.f32 %v3308, %v3309
        %v3311 = vsel %vm1072, %v3092, 0.0
        %v3312 = vadd.f32 %v3310, %v3311
        %v3313 = vsel %vm1072, %v3093, 0.0
        %v3314 = vadd.f32 %v3312, %v3313
        %v3315 = vsel %vm1072, %v3094, 0.0
        %v3316 = vadd.f32 %v3314, %v3315
        %v3317 = vsel %vm1072, %v3095, 0.0
        %v3318 = vadd.f32 %v3316, %v3317
        %v3319 = vsel %vm1072, %v3096, 0.0
        %v3320 = vadd.f32 %v3318, %v3319
        %v3321 = vsel %vm1072, %v3097, 0.0
        %v3322 = vadd.f32 %v3320, %v3321
        %v3323 = vsel %vm1072, %v3098, 0.0
        %v3324 = vadd.f32 %v3322, %v3323
        %v3325 = vsel %vm1072, %v3099, 0.0
        %v3326 = vadd.f32 %v3324, %v3325
        %v3327 = vrot.slane %v3326, 4
        %v3328 = vadd.f32 %v3326, %v3327
        %v3329 = vrot.slane %v3328, 2
        %v3330 = vadd.f32 %v3328, %v3329
        %v3331 = vrot.slane %v3330, 1
        %v3332 = vadd.f32 %v3330, %v3331
        %v3333 = vsel %vm1072, %v3100, 0.0
        %v3334 = vsel %vm1072, %v3101, 0.0
        %v3335 = vadd.f32 %v3333, %v3334
        %v3336 = vsel %vm1072, %v3102, 0.0
        %v3337 = vadd.f32 %v3335, %v3336
        %v3338 = vsel %vm1072, %v3103, 0.0
        %v3339 = vadd.f32 %v3337, %v3338
        %v3340 = vsel %vm1072, %v3104, 0.0
        %v3341 = vadd.f32 %v3339, %v3340
        %v3342 = vsel %vm1072, %v3105, 0.0
        %v3343 = vadd.f32 %v3341, %v3342
        %v3344 = vsel %vm1072, %v3106, 0.0
        %v3345 = vadd.f32 %v3343, %v3344
        %v3346 = vsel %vm1072, %v3107, 0.0
        %v3347 = vadd.f32 %v3345, %v3346
        %v3348 = vsel %vm1072, %v3108, 0.0
        %v3349 = vadd.f32 %v3347, %v3348
        %v3350 = vsel %vm1072, %v3109, 0.0
        %v3351 = vadd.f32 %v3349, %v3350
        %v3352 = vsel %vm1072, %v3110, 0.0
        %v3353 = vadd.f32 %v3351, %v3352
        %v3354 = vsel %vm1072, %v3111, 0.0
        %v3355 = vadd.f32 %v3353, %v3354
        %v3356 = vsel %vm1072, %v3112, 0.0
        %v3357 = vadd.f32 %v3355, %v3356
        %v3358 = vsel %vm1072, %v3113, 0.0
        %v3359 = vadd.f32 %v3357, %v3358
        %v3360 = vsel %vm1072, %v3114, 0.0
        %v3361 = vadd.f32 %v3359, %v3360
        %v3362 = vsel %vm1072, %v3115, 0.0
        %v3363 = vadd.f32 %v3361, %v3362
        %v3364 = vrot.slane %v3363, 4
        %v3365 = vadd.f32 %v3363, %v3364
        %v3366 = vrot.slane %v3365, 2
        %v3367 = vadd.f32 %v3365, %v3366
        %v3368 = vrot.slane %v3367, 1
        %v3369 = vadd.f32 %v3367, %v3368
        %v3370 = vsel %vm1072, %v3116, 0.0
        %v3371 = vsel %vm1072, %v3117, 0.0
        %v3372 = vadd.f32 %v3370, %v3371
        %v3373 = vsel %vm1072, %v3118, 0.0
        %v3374 = vadd.f32 %v3372, %v3373
        %v3375 = vsel %vm1072, %v3119, 0.0
        %v3376 = vadd.f32 %v3374, %v3375
        %v3377 = vsel %vm1072, %v3120, 0.0
        %v3378 = vadd.f32 %v3376, %v3377
        %v3379 = vsel %vm1072, %v3121, 0.0
        %v3380 = vadd.f32 %v3378, %v3379
        %v3381 = vsel %vm1072, %v3122, 0.0
        %v3382 = vadd.f32 %v3380, %v3381
        %v3383 = vsel %vm1072, %v3123, 0.0
        %v3384 = vadd.f32 %v3382, %v3383
        %v3385 = vsel %vm1072, %v3124, 0.0
        %v3386 = vadd.f32 %v3384, %v3385
        %v3387 = vsel %vm1072, %v3125, 0.0
        %v3388 = vadd.f32 %v3386, %v3387
        %v3389 = vsel %vm1072, %v3126, 0.0
        %v3390 = vadd.f32 %v3388, %v3389
        %v3391 = vsel %vm1072, %v3127, 0.0
        %v3392 = vadd.f32 %v3390, %v3391
        %v3393 = vsel %vm1072, %v3128, 0.0
        %v3394 = vadd.f32 %v3392, %v3393
        %v3395 = vsel %vm1072, %v3129, 0.0
        %v3396 = vadd.f32 %v3394, %v3395
        %v3397 = vsel %vm1072, %v3130, 0.0
        %v3398 = vadd.f32 %v3396, %v3397
        %v3399 = vsel %vm1072, %v3131, 0.0
        %v3400 = vadd.f32 %v3398, %v3399
        %v3401 = vrot.slane %v3400, 4
        %v3402 = vadd.f32 %v3400, %v3401
        %v3403 = vrot.slane %v3402, 2
        %v3404 = vadd.f32 %v3402, %v3403
        %v3405 = vrot.slane %v3404, 1
        %v3406 = vadd.f32 %v3404, %v3405
        %v3407 = vsel %vm1072, %v3132, 0.0
        %v3408 = vsel %vm1072, %v3133, 0.0
        %v3409 = vadd.f32 %v3407, %v3408
        %v3410 = vsel %vm1072, %v3134, 0.0
        %v3411 = vadd.f32 %v3409, %v3410
        %v3412 = vsel %vm1072, %v3135, 0.0
        %v3413 = vadd.f32 %v3411, %v3412
        %v3414 = vsel %vm1072, %v3136, 0.0
        %v3415 = vadd.f32 %v3413, %v3414
        %v3416 = vsel %vm1072, %v3137, 0.0
        %v3417 = vadd.f32 %v3415, %v3416
        %v3418 = vsel %vm1072, %v3138, 0.0
        %v3419 = vadd.f32 %v3417, %v3418
        %v3420 = vsel %vm1072, %v3139, 0.0
        %v3421 = vadd.f32 %v3419, %v3420
        %v3422 = vsel %vm1072, %v3140, 0.0
        %v3423 = vadd.f32 %v3421, %v3422
        %v3424 = vsel %vm1072, %v3141, 0.0
        %v3425 = vadd.f32 %v3423, %v3424
        %v3426 = vsel %vm1072, %v3142, 0.0
        %v3427 = vadd.f32 %v3425, %v3426
        %v3428 = vsel %vm1072, %v3143, 0.0
        %v3429 = vadd.f32 %v3427, %v3428
        %v3430 = vsel %vm1072, %v3144, 0.0
        %v3431 = vadd.f32 %v3429, %v3430
        %v3432 = vsel %vm1072, %v3145, 0.0
        %v3433 = vadd.f32 %v3431, %v3432
        %v3434 = vsel %vm1072, %v3146, 0.0
        %v3435 = vadd.f32 %v3433, %v3434
        %v3436 = vsel %vm1072, %v3147, 0.0
        %v3437 = vadd.f32 %v3435, %v3436
        %v3438 = vrot.slane %v3437, 4
        %v3439 = vadd.f32 %v3437, %v3438
        %v3440 = vrot.slane %v3439, 2
        %v3441 = vadd.f32 %v3439, %v3440
        %v3442 = vrot.slane %v3441, 1
        %v3443 = vadd.f32 %v3441, %v3442
        %vm3452 = vcmask 1041409
        %v3453 = vsel %vm3452, %v3221, %v3184
        %vm3454 = vcmask 1042434
        %v3455 = vsel %vm3454, %v3258, %v3453
        %vm3456 = vcmask 1043459
        %v3457 = vsel %vm3456, %v3295, %v3455
        %vm3458 = vcmask 1044484
        %v3459 = vsel %vm3458, %v3332, %v3457
        %vm3460 = vcmask 1045509
        %v3461 = vsel %vm3460, %v3369, %v3459
        %vm3462 = vcmask 1046534
        %v3463 = vsel %vm3462, %v3406, %v3461
        %vm3464 = vcmask 1047559
        %v3465 = vsel %vm3464, %v3443, %v3463
        %v3467 = vadd.f32 %v3019, %v3465
        %3468 = vst.msk [vmem:[#allocation2] sm:$0xff] %vm1072, %v3467
        %p3469 = scmp.eq.s32.totalorder %s21, 1
        // Predicated region
        $region86: #{tpu_custom_call.1} parent=72 // pred_check
          %p3470 = pneg %p3469
        $region87: #{tpu_custom_call.1} parent=72 // pred_check_branch
          %3472 = sbr.rel (%p3470) target = $region89
        $region88: #{tpu_custom_call.1} parent=72 // pred_region
          %v3473 = vld [vmem:[#allocation2] sm:$0xff]
          %v3474 = vsel %vm1072, %v3473, 0.0
          %3475 = vadd.xlane.f32.xlu0 %v3474
          %v3476 = vpop.xlane.xlu0 %3475
          %v3477 = vadd.f32 %v3476, 1e-20
          %v3478 = vrcp.pop %v3477
          %v3479 = vmul.f32 %v3473, %v3478
          %v3480 = vld [vmem:[%s802] sm:$0xff]
          %vm3481 = vcmask 31744
          %v3482 = vsel %vm3481, %v3480, -inf
          %3483 = vmax.xlane.f32.xlu0 %v3482
          %v3484 = vpop.xlane.xlu0 %3483
          %v3485 = vsub.f32 %v3480, %v3484
          %v3486 = vmul.f32 %v3485, 1.442695
          %v3487 = vpow.pop %v3486
          %v3488 = vsel %vm3481, %v3487, 0.0
          %3489 = vadd.xlane.f32.xlu0 %v3488
          %v3490 = vpop.xlane.xlu0 %3489
          %v3491 = vrcp.pop %v3490
          %v3492 = vmul.f32 %v3487, %v3491
          %v3493 = vld [vmem:[%s3] sm:$0x1f]
          %vm3494 = vcmask 23552
          %v3495 = vsel %vm3494, %v3479, 0.0
          %3496 = vadd.xlane.f32.xlu0 %v3495
          %v3497 = vpop.xlane.xlu0 %3496
          %v3498 = vlaneseq
          %v3499 = vshrl.u32 %v3498, 7
          %v3500 = vsub.s32 0, %v3499
          %v3501 = vrot.slane %v3493, %v3500
          %v3502 = vsub.f32 %v3497, %v3501
          %v3503 = vmul.f32 %v3502, %v3502
          %v3504 = vadd.f32 %v3503, 0.0
          %3506 = vrot.lane.b32.xlu0 %v3479, 125
          %v3507 = vpop.permute.xlu0 %3506
          %v3509 = vsel %vm3494, %v3507, 0.0
          %3510 = vadd.xlane.f32.xlu0 %v3509
          %v3511 = vpop.xlane.xlu0 %3510
          %v3512 = vlaneseq
          %v3513 = vshrl.u32 %v3512, 7
          %v3514 = vsub.s32 1, %v3513
          %v3515 = vrot.slane %v3493, %v3514
          %v3516 = vsub.f32 %v3511, %v3515
          %v3517 = vmul.f32 %v3516, %v3516
          %v3518 = vadd.f32 %v3504, %v3517
          %3519 = vrot.lane.b32.xlu0 %v3479, 122
          %v3520 = vpop.permute.xlu0 %3519
          %v3522 = vsel %vm3494, %v3520, 0.0
          %3523 = vadd.xlane.f32.xlu0 %v3522
          %v3524 = vpop.xlane.xlu0 %3523
          %v3525 = vlaneseq
          %v3526 = vshrl.u32 %v3525, 7
          %v3527 = vsub.s32 2, %v3526
          %v3528 = vrot.slane %v3493, %v3527
          %v3529 = vsub.f32 %v3524, %v3528
          %v3530 = vmul.f32 %v3529, %v3529
          %v3531 = vadd.f32 %v3518, %v3530
          %3532 = vrot.lane.b32.xlu0 %v3479, 119
          %v3533 = vpop.permute.xlu0 %3532
          %v3535 = vsel %vm3494, %v3533, 0.0
          %3536 = vadd.xlane.f32.xlu0 %v3535
          %v3537 = vpop.xlane.xlu0 %3536
          %v3538 = vlaneseq
          %v3539 = vshrl.u32 %v3538, 7
          %v3540 = vsub.s32 3, %v3539
          %v3541 = vrot.slane %v3493, %v3540
          %v3542 = vsub.f32 %v3537, %v3541
          %v3543 = vmul.f32 %v3542, %v3542
          %v3544 = vadd.f32 %v3531, %v3543
          %v3545 = vlaneseq
          %v3546 = vshrl.u32 %v3545, 7
          %v3547 = vsub.s32 4, %v3546
          %v3548 = vrot.slane %v3493, %v3547
          %v3549 = vsub.f32 0.0, %v3548
          %v3550 = vmul.f32 %v3549, %v3549
          %v3551 = vadd.f32 %v3544, %v3550
          %s3552 = sld [smem:[#allocation3]]
          %v3553 = vsub.f32 0.0, %v3492
          %v3554 = vmul.f32 %v3553, %v3551
          %v3555 = vsel %vm3481, %v3554, 0.0
          %3556 = vadd.xlane.f32.xlu0 %v3555
          %v3557 = vpop.xlane.xlu0 %3556
          %v3558 = vrot.slane %v3557, 4
          %v3559 = vadd.f32 %v3557, %v3558
          %v3560 = vrot.slane %v3559, 2
          %v3561 = vadd.f32 %v3559, %v3560
          %v3562 = vrot.slane %v3561, 1
          %v3563 = vadd.f32 %v3561, %v3562
          %s3564 = vtos %v3563
          %s3565 = sadd.f32 %s3552, %s3564
          %s3566 = scalar_lea.smem [#allocation3], 0
          %3567 = sst [smem:[%s3566]] %s3565
        $region89: #{tpu_custom_call.1} parent=72 // pred_fallthru
          _
        %p3568 = scmp.eq.s32.totalorder %s20, 1
        %p3569 = pnand %p3568, %p3469
        %p3570 = pneg %p3569
        // Predicated region
        $region90: #{tpu_custom_call.1} parent=72 // pred_check
          _
        $region91: #{tpu_custom_call.1} parent=72 // pred_check_branch
          %3572 = sbr.rel (%p3569) target = $region93
        $region92: #{tpu_custom_call.1} parent=72 // pred_region
          %s3573 = sld [smem:[#allocation3]]
          %s3574 = scalar_lea.smem [#allocation5], 0
          %3575 = sst [smem:[%s3574]] %s3573
        $region93: #{tpu_custom_call.1} parent=72 // pred_fallthru
          _
        // Predicated region
        $region94: #{tpu_custom_call.1} parent=72 // pred_check
          %p3576 = pneg %p144
        $region95: #{tpu_custom_call.1} parent=72 // pred_check_branch
          %3578 = sbr.rel (%p3576) target = $region97
        $region96: #{tpu_custom_call.1} parent=72 // pred_region
          %s3580 = ssub.s32 16, 16
          %3581 = vsyncadd [#allocation6], %s3580
          %3584 = dma.smem_to_hbm [#allocation5], 16, %s4, [#allocation6]
        $region97: #{tpu_custom_call.1} parent=72 // pred_fallthru
          _
        // Predicated region
        $region98: #{tpu_custom_call.1} parent=72 // pred_check
          %p3585 = pneg %p144
        $region99: #{tpu_custom_call.1} parent=72 // pred_check_branch
          %3587 = sbr.rel (%p3585) target = $region101
        $region100: #{tpu_custom_call.1} parent=72 // pred_region
          %3588 = dma.done [#allocation6], 16
        $region101: #{tpu_custom_call.1} parent=72 // pred_fallthru
          _
        %3589 = sfence
      $region73: #{tpu_custom_call.1} parent=5 // pred_fallthru
        _
      %p3590 = scmp.le.s32.totalorder 2, %s11
      // Predicated region
      $region102: #{tpu_custom_call.1} parent=5 // pred_check
        %p3591 = pneg %p3590
      $region103: #{tpu_custom_call.1} parent=5 // pred_check_branch
        %3593 = sbr.rel (%p3591) target = $region105
      $region104: #{tpu_custom_call.1} parent=5 // pred_region
        %s3594 = ssub.s32 %s11, 2
      $region105: #{tpu_custom_call.1} parent=5 // pred_fallthru
        _
    $region6: #{tpu_custom_call.1} parent=1 // loop_footer
      %s15 = sadd.s32 1, %s11
    $region7: #{tpu_custom_call.1} parent=1 // loop_footer_branch
      %10 = sbr.rel target = $region3
    $region8: #{tpu_custom_call.1} parent=1 // loop_exit
      _
    %3595 = vsyncpa [#allocation6], 1
    %s3596 = scalar_lea.sflag [#allocation6], 1
    %3597 = vsyncpa %s3596, 1

</llo_original>
